<compile_context>
chip_gen: v7x
topology: tpu7x:2x2x1
jax: 0.10.0
libtpu: 0.0.40
codegen_flags: <defaults>
</compile_context>

<pallas_src>
import functools
import math

import numpy as np
import jax
import jax.numpy as jnp
from jax import lax
from jax.experimental import pallas as pl
from jax.experimental.pallas import tpu as pltpu

# ----------------------------- model config (small) -----------------------------
STATE_DIM = 4
ACT_DIM = 2
N_BLOCKS = 2
H_DIM = 32
CONTEXT_LEN = 8            # T
N_HEADS = 2
MAX_TIMESTEP = 64
SEQ_LEN = 2 * CONTEXT_LEN  # interleaved (state, action) tokens per batch element

_LANES_OUT = 128           # lane-padded packed-output width


# ----------------------------- in-kernel math helpers ----------------------------
def _erf(x):
    # Abramowitz & Stegun 7.1.26 rational approximation (max abs err ~1.5e-7).
    a1, a2, a3, a4, a5 = 0.254829592, -0.284496736, 1.421413741, -1.453152027, 1.061405429
    p = 0.3275911
    ax = jnp.abs(x)
    t = 1.0 / (1.0 + p * ax)
    poly = ((((a5 * t + a4) * t + a3) * t + a2) * t + a1) * t
    y = 1.0 - poly * jnp.exp(-ax * ax)
    return jnp.where(x >= 0, y, -y)


def _gelu(x):
    # Exact (erf-based) GELU, matching PyTorch's default nn.GELU().
    return 0.5 * x * (1.0 + _erf(x * (1.0 / math.sqrt(2.0))))


def _layernorm(x, g, b, eps=1e-5):
    mu = jnp.mean(x, axis=-1, keepdims=True)
    var = jnp.mean(jnp.square(x - mu), axis=-1, keepdims=True)
    return (x - mu) * lax.rsqrt(var + eps) * g + b        # rsqrt -> EUP slot


# ------------------------------ host-side param packing ---------------------------
class _SlabPacker:
    """Packs 2-D f32 params row-wise into one (R, width) slab (8-aligned rows)."""

    def __init__(self, width):
        self.width = width
        self.rows = 0
        self.items = []

    def add(self, name, arr):
        arr = np.asarray(arr, dtype=np.float32)
        if arr.ndim == 1:
            arr = arr[None, :]
        r, c = arr.shape
        assert c <= self.width, (name, arr.shape, self.width)
        off = self.rows
        self.items.append((name, off, r, c, arr))
        self.rows = off + ((r + 7) // 8) * 8              # next entry 8-aligned

    def finalize(self):
        total = max(8, ((self.rows + 7) // 8) * 8)
        slab = np.zeros((total, self.width), np.float32)
        layout = {}
        for name, off, r, c, arr in self.items:
            slab[off:off + r, :c] = arr
            layout[name] = (off, r, c)
        return jnp.asarray(slab), layout


def _selection_constants(B, T):
    """Batch-aware interleave selectors and block-diagonal causal bias."""
    S = 2 * T
    BT, BS = B * T, B * S
    sel_s = np.zeros((BS, BT), np.float32)
    sel_a = np.zeros((BS, BT), np.float32)
    for b in range(B):
        for t in range(T):
            sel_s[b * S + 2 * t, b * T + t] = 1.0
            sel_a[b * S + 2 * t + 1, b * T + t] = 1.0
    mask = np.full((BS, BS), -1e30, np.float32)
    tri = np.tril(np.ones((S, S), np.float32))
    for b in range(B):
        mask[b * S:(b + 1) * S, b * S:(b + 1) * S] = np.where(tri > 0, 0.0, -1e30)
    return sel_s, sel_a, mask


def prepare_params(params, B, T=CONTEXT_LEN):
    """Pack all weights + structural constants into two lane-aligned f32 slabs."""
    sel_s, sel_a, mask = _selection_constants(B, T)

    p32 = _SlabPacker(H_DIM)        # 32-lane slab
    p128 = _SlabPacker(_LANES_OUT)  # 128-lane slab

    p32.add("emb_t", params["embed_timestep"])
    p32.add("ws", params["ws"]);  p32.add("bs", params["bs"])
    p32.add("wa", params["wa"]);  p32.add("ba", params["ba"])
    p32.add("ln_g", params["ln_g"]);  p32.add("ln_b", params["ln_b"])

    for i, blk in enumerate(params["blocks"]):
        pre = f"b{i}_"
        wqkv = np.concatenate([np.asarray(blk["wq"]), np.asarray(blk["wk"]),
                               np.asarray(blk["wv"])], axis=1)           # (H, 3H)
        bqkv = np.concatenate([np.asarray(blk["bq"]), np.asarray(blk["bk"]),
                               np.asarray(blk["bv"])], axis=1)           # (1, 3H)
        p128.add(pre + "wqkv", wqkv)
        p128.add(pre + "bqkv", bqkv)
        p32.add(pre + "wp", blk["wp"]);       p32.add(pre + "bp", blk["bp"])
        p32.add(pre + "ln1_g", blk["ln1_g"]); p32.add(pre + "ln1_b", blk["ln1_b"])
        p128.add(pre + "w1", blk["w1"]);      p128.add(pre + "b1", blk["b1"])
        p32.add(pre + "w2", blk["w2"]);       p32.add(pre + "b2", blk["b2"])
        p32.add(pre + "ln2_g", blk["ln2_g"]); p32.add(pre + "ln2_b", blk["ln2_b"])

    # Prediction heads, lane-packed: state preds -> lanes [0:4), action preds -> [4:6).
    whead_s = np.zeros((H_DIM, _LANES_OUT), np.float32)
    whead_s[:, :STATE_DIM] = np.asarray(params["wps"])
    whead_a = np.zeros((H_DIM, _LANES_OUT), np.float32)
    whead_a[:, STATE_DIM:STATE_DIM + ACT_DIM] = np.asarray(params["wpa"])
    bhead = np.zeros((1, _LANES_OUT), np.float32)
    bhead[:, :STATE_DIM] = np.asarray(params["bps"])
    bhead[:, STATE_DIM:STATE_DIM + ACT_DIM] = np.asarray(params["bpa"])
    tanh_mask = np.zeros((1, _LANES_OUT), np.float32)
    tanh_mask[:, STATE_DIM:STATE_DIM + ACT_DIM] = 1.0
    p128.add("whead_s", whead_s); p128.add("whead_a", whead_a)
    p128.add("bhead", bhead);     p128.add("tanh_mask", tanh_mask)

    # Structural constants (depend only on B, T).
    p32.add("sel_s", sel_s);      p32.add("sel_a", sel_a)
    p32.add("sel_s_t", sel_s.T);  p32.add("sel_a_t", sel_a.T)
    p32.add("attn_mask", mask)

    slab32, lay32 = p32.finalize()
    slab128, lay128 = p128.finalize()
    return (slab32, slab128), (lay32, lay128)


# ------------------------------- fused forward kernel -----------------------------
def dt_fused_kernel(ts_ref, s_ref, a_ref, t32_ref, t128_ref, out_ref, *,
                    layout32, layout128, n_heads, n_blocks, max_timestep):
    f32 = jnp.float32

    def g32(name):
        off, r, c = layout32[name]
        v = t32_ref[off:off + r, :]
        return v if c == v.shape[1] else v[:, :c]

    def g128(name):
        off, r, c = layout128[name]
        v = t128_ref[off:off + r, :]
        return v if c == v.shape[1] else v[:, :c]

    BT = s_ref.shape[0]                  # B * T  (batch folded into rows)
    H = H_DIM
    D = H // n_heads
    inv_sqrt_d = 1.0 / math.sqrt(D)

    # --- timestep embedding: in-kernel one-hot gather on the (idle) MXU ----------
    ts = ts_ref[...]                                                   # (BT, 1) i32
    lane = lax.broadcasted_iota(jnp.int32, (BT, max_timestep), 1)
    onehot = (lane == ts).astype(f32)                                  # (BT, MAX_T)
    te = jnp.dot(onehot, g32("emb_t"), preferred_element_type=f32)     # (BT, H)

    # --- state / action token embeddings ------------------------------------------
    se = jnp.dot(s_ref[...], g32("ws"), preferred_element_type=f32) + g32("bs") + te
    ae = jnp.dot(a_ref[...], g32("wa"), preferred_element_type=f32) + g32("ba") + te

    # --- interleave via precomputed selection matmuls (state_t->2t, action_t->2t+1)
    h = (jnp.dot(g32("sel_s"), se, preferred_element_type=f32)
         + jnp.dot(g32("sel_a"), ae, preferred_element_type=f32))      # (B*2T, H)
    h = _layernorm(h, g32("ln_g"), g32("ln_b"))

    # Block-diagonal (per-batch) causal additive bias, precomputed host-side.
    mask_bias = g32("attn_mask")                                       # (B*2T, B*2T)

    for blk in range(n_blocks):
        nm = lambda suffix, _b=blk: f"b{_b}_{suffix}"
        qkv = (jnp.dot(h, g128(nm("wqkv")), preferred_element_type=f32)
               + g128(nm("bqkv")))                                     # (B*2T, 3H)
        wp = g32(nm("wp"))                                             # (H, H)

        # Per-head attention, accumulated straight through the output projection.
        # TODO(synk): optional further fold of the 2 heads into one block-diagonal
        # score matmul was skipped (marginal at this size).
        att_proj = None
        for hh in range(n_heads):
            qh = qkv[:, hh * D:(hh + 1) * D]
            kh = qkv[:, H + hh * D: H + (hh + 1) * D]
            vh = qkv[:, 2 * H + hh * D: 2 * H + (hh + 1) * D]
            s = lax.dot_general(qh, kh, (((1,), (1,)), ((), ())),
                                preferred_element_type=f32) * inv_sqrt_d
            s = s + mask_bias
            s = s - jnp.max(s, axis=-1, keepdims=True)
            e = jnp.exp(s)
            p_attn = e * pl.reciprocal(jnp.sum(e, axis=-1, keepdims=True), approx=True)
            oh = jnp.dot(p_attn, vh, preferred_element_type=f32)       # (B*2T, D)
            contrib = jnp.dot(oh, wp[hh * D:(hh + 1) * D, :],
                              preferred_element_type=f32)
            att_proj = contrib if att_proj is None else att_proj + contrib

        h = h + att_proj + g32(nm("bp"))
        h = _layernorm(h, g32(nm("ln1_g")), g32(nm("ln1_b")))

        mid = _gelu(jnp.dot(h, g128(nm("w1")), preferred_element_type=f32)
                    + g128(nm("b1")))
        h = h + jnp.dot(mid, g32(nm("w2")), preferred_element_type=f32) + g32(nm("b2"))
        h = _layernorm(h, g32(nm("ln2_g")), g32(nm("ln2_b")))

    # --- de-interleave + lane-packed prediction heads (one dense 128-lane store) --
    h_state = jnp.dot(g32("sel_s_t"), h, preferred_element_type=f32)   # (BT, H)
    h_action = jnp.dot(g32("sel_a_t"), h, preferred_element_type=f32)  # (BT, H)
    raw = (jnp.dot(h_action, g128("whead_s"), preferred_element_type=f32)
           + jnp.dot(h_state, g128("whead_a"), preferred_element_type=f32)
           + g128("bhead"))                                            # (BT, 128)
    tmask = g128("tanh_mask")                                          # (1, 128)
    out_ref[...] = raw + tmask * (jnp.tanh(raw) - raw)


# ------------------------------ pallas_call wrapper --------------------------------
def build_forward(layouts, B, T=CONTEXT_LEN):
    lay32, lay128 = layouts
    kernel = functools.partial(
        dt_fused_kernel, layout32=lay32, layout128=lay128,
        n_heads=N_HEADS, n_blocks=N_BLOCKS, max_timestep=MAX_TIMESTEP)
    BT = B * T
    vmem = pl.BlockSpec(memory_space=pltpu.MemorySpace.VMEM)

    @jax.jit
    def forward(theta32, theta128, timesteps, states, actions):
        ts2 = timesteps.reshape(BT, 1).astype(jnp.int32)
        s2 = states.reshape(BT, STATE_DIM).astype(jnp.float32)
        a2 = actions.reshape(BT, ACT_DIM).astype(jnp.float32)
        out = pl.pallas_call(
            kernel,
            out_shape=jax.ShapeDtypeStruct((BT, _LANES_OUT), jnp.float32),
            in_specs=[vmem, vmem, vmem, vmem, vmem],
            out_specs=vmem,
        )(ts2, s2, a2, theta32, theta128)
        state_preds = out[:, :STATE_DIM].reshape(B, T, STATE_DIM)
        action_preds = out[:, STATE_DIM:STATE_DIM + ACT_DIM].reshape(B, T, ACT_DIM)
        return state_preds, action_preds

    return forward


def dt_forward(params, timesteps, states, actions):
    """Pallas implementation of DecisionTransformer.forward (use_rtg=False)."""
    B, T, _ = states.shape
    slabs, layouts = prepare_params(params, B, T)       # one-time host-side packing
    fwd = build_forward(layouts, B, T)
    state_preds, action_preds = fwd(slabs[0], slabs[1], timesteps, states, actions)
    return state_preds, action_preds, None


# ------------------------------- parameters ----------------------------------------
def init_params(key):
    keys = iter(jax.random.split(key, 64))

    def nrm(shape, scale=0.02):
        return (scale * jax.random.normal(next(keys), shape)).astype(jnp.float32)

    ones_h = jnp.ones((1, H_DIM), jnp.float32)
    zeros_h = jnp.zeros((1, H_DIM), jnp.float32)

    params = {
        "embed_timestep": nrm((MAX_TIMESTEP, H_DIM)),
        "ws": nrm((STATE_DIM, H_DIM)), "bs": nrm((1, H_DIM)),
        "wa": nrm((ACT_DIM, H_DIM)), "ba": nrm((1, H_DIM)),
        "ln_g": ones_h, "ln_b": zeros_h,
        "wps": nrm((H_DIM, STATE_DIM)), "bps": nrm((1, STATE_DIM)),
        "wpa": nrm((H_DIM, ACT_DIM)), "bpa": nrm((1, ACT_DIM)),
        "blocks": [],
    }
    for _ in range(N_BLOCKS):
        blk = {
            "wq": nrm((H_DIM, H_DIM)), "bq": nrm((1, H_DIM)),
            "wk": nrm((H_DIM, H_DIM)), "bk": nrm((1, H_DIM)),
            "wv": nrm((H_DIM, H_DIM)), "bv": nrm((1, H_DIM)),
            "wp": nrm((H_DIM, H_DIM)), "bp": nrm((1, H_DIM)),
            "ln1_g": ones_h, "ln1_b": zeros_h,
            "w1": nrm((H_DIM, 4 * H_DIM)), "b1": nrm((1, 4 * H_DIM)),
            "w2": nrm((4 * H_DIM, H_DIM)), "b2": nrm((1, H_DIM)),
            "ln2_g": ones_h, "ln2_b": zeros_h,
        }
        params["blocks"].append(blk)
    return params


# ------------------------------- pure-JAX reference --------------------------------
def _ref_ln(x, g, b, eps=1e-5):
    mu = jnp.mean(x, axis=-1, keepdims=True)
    var = jnp.mean(jnp.square(x - mu), axis=-1, keepdims=True)
    return (x - mu) / jnp.sqrt(var + eps) * g + b


def _ref_block(x, p, n_heads):
    B, S, H = x.shape
    D = H // n_heads
    q = (x @ p["wq"] + p["bq"]).reshape(B, S, n_heads, D).transpose(0, 2, 1, 3)
    k = (x @ p["wk"] + p["bk"]).reshape(B, S, n_heads, D).transpose(0, 2, 1, 3)
    v = (x @ p["wv"] + p["bv"]).reshape(B, S, n_heads, D).transpose(0, 2, 1, 3)
    w = jnp.einsum("bhqd,bhkd->bhqk", q, k) / math.sqrt(D)
    mask = jnp.tril(jnp.ones((S, S), bool))
    w = jnp.where(mask, w, -jnp.inf)
    w = jax.nn.softmax(w, axis=-1)
    att = jnp.einsum("bhqk,bhkd->bhqd", w, v).transpose(0, 2, 1, 3).reshape(B, S, H)
    x = x + att @ p["wp"] + p["bp"]
    x = _ref_ln(x, p["ln1_g"], p["ln1_b"])
    m = jax.nn.gelu(x @ p["w1"] + p["b1"], approximate=False) @ p["w2"] + p["b2"]
    x = x + m
    x = _ref_ln(x, p["ln2_g"], p["ln2_b"])
    return x


def ref_forward(params, timesteps, states, actions):
    te = params["embed_timestep"][timesteps]
    se = states @ params["ws"] + params["bs"] + te
    ae = actions @ params["wa"] + params["ba"] + te
    B, T, H = se.shape
    h = jnp.stack([se, ae], axis=2).reshape(B, 2 * T, H)
    h = _ref_ln(h, params["ln_g"], params["ln_b"])
    for blk in params["blocks"]:
        h = _ref_block(h, blk, N_HEADS)
    h2 = h.reshape(B, T, 2, H)
    state_preds = h2[:, :, 1] @ params["wps"] + params["bps"]
    action_preds = jnp.tanh(h2[:, :, 0] @ params["wpa"] + params["bpa"])
    return state_preds, action_preds


# ------------------------------------- main ---------------------------------------
if __name__ == "__main__":
    key = jax.random.PRNGKey(0)
    kp, kt, ks, ka = jax.random.split(key, 4)

    params = init_params(kp)
    B, T = 2, CONTEXT_LEN
    timesteps = jax.random.randint(kt, (B, T), 0, MAX_TIMESTEP, dtype=jnp.int32)
    states = jax.random.normal(ks, (B, T, STATE_DIM), jnp.float32)
    actions = jax.random.normal(ka, (B, T, ACT_DIM), jnp.float32)

    state_preds, action_preds, return_preds = dt_forward(params, timesteps, states, actions)
    jax.block_until_ready((state_preds, action_preds))

    assert state_preds.shape == (B, T, STATE_DIM)
    assert action_preds.shape == (B, T, ACT_DIM)
    assert return_preds is None

    sp_ref, ap_ref = ref_forward(params, timesteps, states, actions)
    np.testing.assert_allclose(np.asarray(state_preds), np.asarray(sp_ref),
                               atol=1e-2, rtol=1e-2)
    np.testing.assert_allclose(np.asarray(action_preds), np.asarray(ap_ref),
                               atol=1e-2, rtol=1e-2)

    print("KERNEL_OK")
</pallas_src>

<mosaic_0001>
module attributes {stable_mosaic.version = 11 : i64} {
  func.func @dt_fused_kernel(%arg0: memref<16x1xi32, #tpu.memory_space<vmem>>, %arg1: memref<16x4xf32, #tpu.memory_space<vmem>>, %arg2: memref<16x2xf32, #tpu.memory_space<vmem>>, %arg3: memref<656x32xf32, #tpu.memory_space<vmem>>, %arg4: memref<240x128xf32, #tpu.memory_space<vmem>>, %arg5: memref<16x128xf32, #tpu.memory_space<vmem>>) attributes {dimension_semantics = [], scalar_prefetch = 0 : i64, scratch_operands = 0 : i64, tpu.core_type = #tpu.core_type<tc>} {
    %c0 = arith.constant 0 : index
    %c0_0 = arith.constant 0 : index
    %0 = vector.load %arg0[%c0, %c0_0] : memref<16x1xi32, #tpu.memory_space<vmem>>, vector<16x1xi32>
    %1 = tpu.iota {dimensions = array<i32: 1>} : vector<16x64xi32>
    %2 = vector.broadcast %0 : vector<16x1xi32> to vector<16x64xi32>
    %3 = arith.cmpi eq, %1, %2 : vector<16x64xi32>
    %4 = arith.extui %3 : vector<16x64xi1> to vector<16x64xi32>
    %5 = arith.sitofp %4 : vector<16x64xi32> to vector<16x64xf32>
    %c0_1 = arith.constant 0 : index
    %c0_2 = arith.constant 0 : index
    %6 = vector.load %arg3[%c0_1, %c0_2] : memref<656x32xf32, #tpu.memory_space<vmem>>, vector<64x32xf32>
    %cst = arith.constant dense<0.000000e+00> : vector<16x32xf32>
    %7 = tpu.matmul %5, %6, %cst {dimension_numbers = #tpu.dot_dimension_numbers<[1], [0], [0], [1], [0, 0, 1, 1], [], []>} : vector<16x64xf32>, vector<64x32xf32>, vector<16x32xf32> -> vector<16x32xf32>
    %c0_3 = arith.constant 0 : index
    %c0_4 = arith.constant 0 : index
    %8 = vector.load %arg1[%c0_3, %c0_4] : memref<16x4xf32, #tpu.memory_space<vmem>>, vector<16x4xf32>
    %c64 = arith.constant 64 : index
    %c0_5 = arith.constant 0 : index
    %9 = vector.load %arg3[%c64, %c0_5] : memref<656x32xf32, #tpu.memory_space<vmem>>, vector<4x32xf32>
    %cst_6 = arith.constant dense<0.000000e+00> : vector<16x32xf32>
    %10 = tpu.matmul %8, %9, %cst_6 {dimension_numbers = #tpu.dot_dimension_numbers<[1], [0], [0], [1], [0, 0, 1, 1], [], []>} : vector<16x4xf32>, vector<4x32xf32>, vector<16x32xf32> -> vector<16x32xf32>
    %c72 = arith.constant 72 : index
    %c0_7 = arith.constant 0 : index
    %11 = vector.load %arg3[%c72, %c0_7] : memref<656x32xf32, #tpu.memory_space<vmem>>, vector<1x32xf32>
    %12 = vector.broadcast %11 : vector<1x32xf32> to vector<16x32xf32>
    %13 = arith.addf %10, %12 : vector<16x32xf32>
    %14 = arith.addf %13, %7 : vector<16x32xf32>
    %c0_8 = arith.constant 0 : index
    %c0_9 = arith.constant 0 : index
    %15 = vector.load %arg2[%c0_8, %c0_9] : memref<16x2xf32, #tpu.memory_space<vmem>>, vector<16x2xf32>
    %c80 = arith.constant 80 : index
    %c0_10 = arith.constant 0 : index
    %16 = vector.load %arg3[%c80, %c0_10] : memref<656x32xf32, #tpu.memory_space<vmem>>, vector<2x32xf32>
    %cst_11 = arith.constant dense<0.000000e+00> : vector<16x32xf32>
    %17 = tpu.matmul %15, %16, %cst_11 {dimension_numbers = #tpu.dot_dimension_numbers<[1], [0], [0], [1], [0, 0, 1, 1], [], []>} : vector<16x2xf32>, vector<2x32xf32>, vector<16x32xf32> -> vector<16x32xf32>
    %c88 = arith.constant 88 : index
    %c0_12 = arith.constant 0 : index
    %18 = vector.load %arg3[%c88, %c0_12] : memref<656x32xf32, #tpu.memory_space<vmem>>, vector<1x32xf32>
    %19 = vector.broadcast %18 : vector<1x32xf32> to vector<16x32xf32>
    %20 = arith.addf %17, %19 : vector<16x32xf32>
    %21 = arith.addf %20, %7 : vector<16x32xf32>
    %c528 = arith.constant 528 : index
    %c0_13 = arith.constant 0 : index
    %22 = vector.load %arg3[%c528, %c0_13] : memref<656x32xf32, #tpu.memory_space<vmem>>, vector<32x32xf32>
    %23 = vector.extract_strided_slice %22 {offsets = [0, 0], sizes = [32, 16], strides = [1, 1]} : vector<32x32xf32> to vector<32x16xf32>
    %cst_14 = arith.constant dense<0.000000e+00> : vector<32x32xf32>
    %24 = tpu.matmul %23, %14, %cst_14 {dimension_numbers = #tpu.dot_dimension_numbers<[1], [0], [0], [1], [0, 0, 1, 1], [], []>} : vector<32x16xf32>, vector<16x32xf32>, vector<32x32xf32> -> vector<32x32xf32>
    %c560 = arith.constant 560 : index
    %c0_15 = arith.constant 0 : index
    %25 = vector.load %arg3[%c560, %c0_15] : memref<656x32xf32, #tpu.memory_space<vmem>>, vector<32x32xf32>
    %26 = vector.extract_strided_slice %25 {offsets = [0, 0], sizes = [32, 16], strides = [1, 1]} : vector<32x32xf32> to vector<32x16xf32>
    %cst_16 = arith.constant dense<0.000000e+00> : vector<32x32xf32>
    %27 = tpu.matmul %26, %21, %cst_16 {dimension_numbers = #tpu.dot_dimension_numbers<[1], [0], [0], [1], [0, 0, 1, 1], [], []>} : vector<32x16xf32>, vector<16x32xf32>, vector<32x32xf32> -> vector<32x32xf32>
    %28 = arith.addf %24, %27 : vector<32x32xf32>
    %c96 = arith.constant 96 : index
    %c0_17 = arith.constant 0 : index
    %29 = vector.load %arg3[%c96, %c0_17] : memref<656x32xf32, #tpu.memory_space<vmem>>, vector<1x32xf32>
    %c104 = arith.constant 104 : index
    %c0_18 = arith.constant 0 : index
    %30 = vector.load %arg3[%c104, %c0_18] : memref<656x32xf32, #tpu.memory_space<vmem>>, vector<1x32xf32>
    %cst_19 = arith.constant dense<0.000000e+00> : vector<32xf32>
    %31 = vector.multi_reduction <add>, %28, %cst_19 [1] : vector<32x32xf32> to vector<32xf32>
    %32 = vector.shape_cast %31 : vector<32xf32> to vector<32x1xf32>
    %cst_20 = arith.constant 3.200000e+01 : f32
    %33 = vector.broadcast %cst_20 : f32 to vector<32x1xf32>
    %34 = arith.divf %32, %33 : vector<32x1xf32>
    %35 = vector.broadcast %34 : vector<32x1xf32> to vector<32x32xf32>
    %36 = arith.subf %28, %35 : vector<32x32xf32>
    %37 = arith.mulf %36, %36 : vector<32x32xf32>
    %cst_21 = arith.constant dense<0.000000e+00> : vector<32xf32>
    %38 = vector.multi_reduction <add>, %37, %cst_21 [1] : vector<32x32xf32> to vector<32xf32>
    %39 = vector.shape_cast %38 : vector<32xf32> to vector<32x1xf32>
    %cst_22 = arith.constant 3.200000e+01 : f32
    %40 = vector.broadcast %cst_22 : f32 to vector<32x1xf32>
    %41 = arith.divf %39, %40 : vector<32x1xf32>
    %42 = vector.broadcast %34 : vector<32x1xf32> to vector<32x32xf32>
    %43 = arith.subf %28, %42 : vector<32x32xf32>
    %cst_23 = arith.constant 9.99999974E-6 : f32
    %44 = vector.broadcast %cst_23 : f32 to vector<32x1xf32>
    %45 = arith.addf %41, %44 : vector<32x1xf32>
    %46 = math.rsqrt %45 : vector<32x1xf32>
    %47 = vector.broadcast %46 : vector<32x1xf32> to vector<32x32xf32>
    %48 = arith.mulf %43, %47 : vector<32x32xf32>
    %49 = vector.broadcast %29 : vector<1x32xf32> to vector<32x32xf32>
    %50 = arith.mulf %48, %49 : vector<32x32xf32>
    %51 = vector.broadcast %30 : vector<1x32xf32> to vector<32x32xf32>
    %52 = arith.addf %50, %51 : vector<32x32xf32>
    %c624 = arith.constant 624 : index
    %c0_24 = arith.constant 0 : index
    %53 = vector.load %arg3[%c624, %c0_24] : memref<656x32xf32, #tpu.memory_space<vmem>>, vector<32x32xf32>
    %c0_25 = arith.constant 0 : index
    %c0_26 = arith.constant 0 : index
    %54 = vector.load %arg4[%c0_25, %c0_26] : memref<240x128xf32, #tpu.memory_space<vmem>>, vector<32x128xf32>
    %55 = vector.extract_strided_slice %54 {offsets = [0, 0], sizes = [32, 96], strides = [1, 1]} : vector<32x128xf32> to vector<32x96xf32>
    %cst_27 = arith.constant dense<0.000000e+00> : vector<32x96xf32>
    %56 = tpu.matmul %52, %55, %cst_27 {dimension_numbers = #tpu.dot_dimension_numbers<[1], [0], [0], [1], [0, 0, 1, 1], [], []>} : vector<32x32xf32>, vector<32x96xf32>, vector<32x96xf32> -> vector<32x96xf32>
    %c32 = arith.constant 32 : index
    %c0_28 = arith.constant 0 : index
    %57 = vector.load %arg4[%c32, %c0_28] : memref<240x128xf32, #tpu.memory_space<vmem>>, vector<1x128xf32>
    %58 = vector.extract_strided_slice %57 {offsets = [0, 0], sizes = [1, 96], strides = [1, 1]} : vector<1x128xf32> to vector<1x96xf32>
    %59 = vector.broadcast %58 : vector<1x96xf32> to vector<32x96xf32>
    %60 = arith.addf %56, %59 : vector<32x96xf32>
    %c112 = arith.constant 112 : index
    %c0_29 = arith.constant 0 : index
    %61 = vector.load %arg3[%c112, %c0_29] : memref<656x32xf32, #tpu.memory_space<vmem>>, vector<32x32xf32>
    %62 = vector.extract_strided_slice %60 {offsets = [0, 0], sizes = [32, 16], strides = [1, 1]} : vector<32x96xf32> to vector<32x16xf32>
    %63 = vector.extract_strided_slice %60 {offsets = [0, 32], sizes = [32, 16], strides = [1, 1]} : vector<32x96xf32> to vector<32x16xf32>
    %64 = vector.extract_strided_slice %60 {offsets = [0, 64], sizes = [32, 16], strides = [1, 1]} : vector<32x96xf32> to vector<32x16xf32>
    %cst_30 = arith.constant dense<0.000000e+00> : vector<32x32xf32>
    %65 = tpu.matmul %62, %63, %cst_30 {dimension_numbers = #tpu.dot_dimension_numbers<[1], [1], [0], [0], [0, 0, 1, 0], [], []>} : vector<32x16xf32>, vector<32x16xf32>, vector<32x32xf32> -> vector<32x32xf32>
    %cst_31 = arith.constant 2.500000e-01 : f32
    %66 = vector.broadcast %cst_31 : f32 to vector<32x32xf32>
    %67 = arith.mulf %65, %66 : vector<32x32xf32>
    %68 = arith.addf %67, %53 : vector<32x32xf32>
    %cst_32 = arith.constant dense<0xFF800000> : vector<32xf32>
    %69 = vector.multi_reduction <maximumf>, %68, %cst_32 [1] : vector<32x32xf32> to vector<32xf32>
    %70 = vector.shape_cast %69 : vector<32xf32> to vector<32x1xf32>
    %71 = vector.broadcast %70 : vector<32x1xf32> to vector<32x32xf32>
    %72 = arith.subf %68, %71 : vector<32x32xf32>
    %73 = math.exp %72 : vector<32x32xf32>
    %cst_33 = arith.constant dense<0.000000e+00> : vector<32xf32>
    %74 = vector.multi_reduction <add>, %73, %cst_33 [1] : vector<32x32xf32> to vector<32xf32>
    %75 = vector.shape_cast %74 : vector<32xf32> to vector<32x1xf32>
    %76 = tpu.reciprocal %75 {approx = true} : vector<32x1xf32> -> vector<32x1xf32>
    %77 = vector.broadcast %76 : vector<32x1xf32> to vector<32x32xf32>
    %78 = arith.mulf %73, %77 : vector<32x32xf32>
    %cst_34 = arith.constant dense<0.000000e+00> : vector<32x16xf32>
    %79 = tpu.matmul %78, %64, %cst_34 {dimension_numbers = #tpu.dot_dimension_numbers<[1], [0], [0], [1], [0, 0, 1, 1], [], []>} : vector<32x32xf32>, vector<32x16xf32>, vector<32x16xf32> -> vector<32x16xf32>
    %80 = vector.extract_strided_slice %61 {offsets = [0, 0], sizes = [16, 32], strides = [1, 1]} : vector<32x32xf32> to vector<16x32xf32>
    %cst_35 = arith.constant dense<0.000000e+00> : vector<32x32xf32>
    %81 = tpu.matmul %79, %80, %cst_35 {dimension_numbers = #tpu.dot_dimension_numbers<[1], [0], [0], [1], [0, 0, 1, 1], [], []>} : vector<32x16xf32>, vector<16x32xf32>, vector<32x32xf32> -> vector<32x32xf32>
    %82 = vector.extract_strided_slice %60 {offsets = [0, 16], sizes = [32, 16], strides = [1, 1]} : vector<32x96xf32> to vector<32x16xf32>
    %83 = vector.extract_strided_slice %60 {offsets = [0, 48], sizes = [32, 16], strides = [1, 1]} : vector<32x96xf32> to vector<32x16xf32>
    %84 = vector.extract_strided_slice %60 {offsets = [0, 80], sizes = [32, 16], strides = [1, 1]} : vector<32x96xf32> to vector<32x16xf32>
    %cst_36 = arith.constant dense<0.000000e+00> : vector<32x32xf32>
    %85 = tpu.matmul %82, %83, %cst_36 {dimension_numbers = #tpu.dot_dimension_numbers<[1], [1], [0], [0], [0, 0, 1, 0], [], []>} : vector<32x16xf32>, vector<32x16xf32>, vector<32x32xf32> -> vector<32x32xf32>
    %cst_37 = arith.constant 2.500000e-01 : f32
    %86 = vector.broadcast %cst_37 : f32 to vector<32x32xf32>
    %87 = arith.mulf %85, %86 : vector<32x32xf32>
    %88 = arith.addf %87, %53 : vector<32x32xf32>
    %cst_38 = arith.constant dense<0xFF800000> : vector<32xf32>
    %89 = vector.multi_reduction <maximumf>, %88, %cst_38 [1] : vector<32x32xf32> to vector<32xf32>
    %90 = vector.shape_cast %89 : vector<32xf32> to vector<32x1xf32>
    %91 = vector.broadcast %90 : vector<32x1xf32> to vector<32x32xf32>
    %92 = arith.subf %88, %91 : vector<32x32xf32>
    %93 = math.exp %92 : vector<32x32xf32>
    %cst_39 = arith.constant dense<0.000000e+00> : vector<32xf32>
    %94 = vector.multi_reduction <add>, %93, %cst_39 [1] : vector<32x32xf32> to vector<32xf32>
    %95 = vector.shape_cast %94 : vector<32xf32> to vector<32x1xf32>
    %96 = tpu.reciprocal %95 {approx = true} : vector<32x1xf32> -> vector<32x1xf32>
    %97 = vector.broadcast %96 : vector<32x1xf32> to vector<32x32xf32>
    %98 = arith.mulf %93, %97 : vector<32x32xf32>
    %cst_40 = arith.constant dense<0.000000e+00> : vector<32x16xf32>
    %99 = tpu.matmul %98, %84, %cst_40 {dimension_numbers = #tpu.dot_dimension_numbers<[1], [0], [0], [1], [0, 0, 1, 1], [], []>} : vector<32x32xf32>, vector<32x16xf32>, vector<32x16xf32> -> vector<32x16xf32>
    %100 = vector.extract_strided_slice %61 {offsets = [16, 0], sizes = [16, 32], strides = [1, 1]} : vector<32x32xf32> to vector<16x32xf32>
    %cst_41 = arith.constant dense<0.000000e+00> : vector<32x32xf32>
    %101 = tpu.matmul %99, %100, %cst_41 {dimension_numbers = #tpu.dot_dimension_numbers<[1], [0], [0], [1], [0, 0, 1, 1], [], []>} : vector<32x16xf32>, vector<16x32xf32>, vector<32x32xf32> -> vector<32x32xf32>
    %102 = arith.addf %81, %101 : vector<32x32xf32>
    %103 = arith.addf %52, %102 : vector<32x32xf32>
    %c144 = arith.constant 144 : index
    %c0_42 = arith.constant 0 : index
    %104 = vector.load %arg3[%c144, %c0_42] : memref<656x32xf32, #tpu.memory_space<vmem>>, vector<1x32xf32>
    %105 = vector.broadcast %104 : vector<1x32xf32> to vector<32x32xf32>
    %106 = arith.addf %103, %105 : vector<32x32xf32>
    %c152 = arith.constant 152 : index
    %c0_43 = arith.constant 0 : index
    %107 = vector.load %arg3[%c152, %c0_43] : memref<656x32xf32, #tpu.memory_space<vmem>>, vector<1x32xf32>
    %c160 = arith.constant 160 : index
    %c0_44 = arith.constant 0 : index
    %108 = vector.load %arg3[%c160, %c0_44] : memref<656x32xf32, #tpu.memory_space<vmem>>, vector<1x32xf32>
    %cst_45 = arith.constant dense<0.000000e+00> : vector<32xf32>
    %109 = vector.multi_reduction <add>, %106, %cst_45 [1] : vector<32x32xf32> to vector<32xf32>
    %110 = vector.shape_cast %109 : vector<32xf32> to vector<32x1xf32>
    %cst_46 = arith.constant 3.200000e+01 : f32
    %111 = vector.broadcast %cst_46 : f32 to vector<32x1xf32>
    %112 = arith.divf %110, %111 : vector<32x1xf32>
    %113 = vector.broadcast %112 : vector<32x1xf32> to vector<32x32xf32>
    %114 = arith.subf %106, %113 : vector<32x32xf32>
    %115 = arith.mulf %114, %114 : vector<32x32xf32>
    %cst_47 = arith.constant dense<0.000000e+00> : vector<32xf32>
    %116 = vector.multi_reduction <add>, %115, %cst_47 [1] : vector<32x32xf32> to vector<32xf32>
    %117 = vector.shape_cast %116 : vector<32xf32> to vector<32x1xf32>
    %cst_48 = arith.constant 3.200000e+01 : f32
    %118 = vector.broadcast %cst_48 : f32 to vector<32x1xf32>
    %119 = arith.divf %117, %118 : vector<32x1xf32>
    %120 = vector.broadcast %112 : vector<32x1xf32> to vector<32x32xf32>
    %121 = arith.subf %106, %120 : vector<32x32xf32>
    %cst_49 = arith.constant 9.99999974E-6 : f32
    %122 = vector.broadcast %cst_49 : f32 to vector<32x1xf32>
    %123 = arith.addf %119, %122 : vector<32x1xf32>
    %124 = math.rsqrt %123 : vector<32x1xf32>
    %125 = vector.broadcast %124 : vector<32x1xf32> to vector<32x32xf32>
    %126 = arith.mulf %121, %125 : vector<32x32xf32>
    %127 = vector.broadcast %107 : vector<1x32xf32> to vector<32x32xf32>
    %128 = arith.mulf %126, %127 : vector<32x32xf32>
    %129 = vector.broadcast %108 : vector<1x32xf32> to vector<32x32xf32>
    %130 = arith.addf %128, %129 : vector<32x32xf32>
    %c40 = arith.constant 40 : index
    %c0_50 = arith.constant 0 : index
    %131 = vector.load %arg4[%c40, %c0_50] : memref<240x128xf32, #tpu.memory_space<vmem>>, vector<32x128xf32>
    %cst_51 = arith.constant dense<0.000000e+00> : vector<32x128xf32>
    %132 = tpu.matmul %130, %131, %cst_51 {dimension_numbers = #tpu.dot_dimension_numbers<[1], [0], [0], [1], [0, 0, 1, 1], [], []>} : vector<32x32xf32>, vector<32x128xf32>, vector<32x128xf32> -> vector<32x128xf32>
    %c72_52 = arith.constant 72 : index
    %c0_53 = arith.constant 0 : index
    %133 = vector.load %arg4[%c72_52, %c0_53] : memref<240x128xf32, #tpu.memory_space<vmem>>, vector<1x128xf32>
    %134 = vector.broadcast %133 : vector<1x128xf32> to vector<32x128xf32>
    %135 = arith.addf %132, %134 : vector<32x128xf32>
    %cst_54 = arith.constant 5.000000e-01 : f32
    %136 = vector.broadcast %cst_54 : f32 to vector<32x128xf32>
    %137 = arith.mulf %136, %135 : vector<32x128xf32>
    %cst_55 = arith.constant 0.707106769 : f32
    %138 = vector.broadcast %cst_55 : f32 to vector<32x128xf32>
    %139 = arith.mulf %135, %138 : vector<32x128xf32>
    %140 = math.absf %139 : vector<32x128xf32>
    %cst_56 = arith.constant 0.327591091 : f32
    %141 = vector.broadcast %cst_56 : f32 to vector<32x128xf32>
    %142 = arith.mulf %141, %140 : vector<32x128xf32>
    %cst_57 = arith.constant 1.000000e+00 : f32
    %143 = vector.broadcast %cst_57 : f32 to vector<32x128xf32>
    %144 = arith.addf %143, %142 : vector<32x128xf32>
    %cst_58 = arith.constant 1.000000e+00 : f32
    %145 = vector.broadcast %cst_58 : f32 to vector<32x128xf32>
    %146 = arith.divf %145, %144 : vector<32x128xf32>
    %cst_59 = arith.constant 1.06140542 : f32
    %147 = vector.broadcast %cst_59 : f32 to vector<32x128xf32>
    %148 = arith.mulf %147, %146 : vector<32x128xf32>
    %cst_60 = arith.constant -1.45315206 : f32
    %149 = vector.broadcast %cst_60 : f32 to vector<32x128xf32>
    %150 = arith.addf %148, %149 : vector<32x128xf32>
    %151 = arith.mulf %150, %146 : vector<32x128xf32>
    %cst_61 = arith.constant 1.42141378 : f32
    %152 = vector.broadcast %cst_61 : f32 to vector<32x128xf32>
    %153 = arith.addf %151, %152 : vector<32x128xf32>
    %154 = arith.mulf %153, %146 : vector<32x128xf32>
    %cst_62 = arith.constant -0.284496725 : f32
    %155 = vector.broadcast %cst_62 : f32 to vector<32x128xf32>
    %156 = arith.addf %154, %155 : vector<32x128xf32>
    %157 = arith.mulf %156, %146 : vector<32x128xf32>
    %cst_63 = arith.constant 0.254829586 : f32
    %158 = vector.broadcast %cst_63 : f32 to vector<32x128xf32>
    %159 = arith.addf %157, %158 : vector<32x128xf32>
    %160 = arith.mulf %159, %146 : vector<32x128xf32>
    %cst_64 = arith.constant 0.000000e+00 : f32
    %161 = vector.broadcast %cst_64 : f32 to vector<32x128xf32>
    %162 = arith.subf %161, %140 : vector<32x128xf32>
    %163 = arith.mulf %162, %140 : vector<32x128xf32>
    %164 = math.exp %163 : vector<32x128xf32>
    %165 = arith.mulf %160, %164 : vector<32x128xf32>
    %cst_65 = arith.constant 1.000000e+00 : f32
    %166 = vector.broadcast %cst_65 : f32 to vector<32x128xf32>
    %167 = arith.subf %166, %165 : vector<32x128xf32>
    %cst_66 = arith.constant 0.000000e+00 : f32
    %168 = vector.broadcast %cst_66 : f32 to vector<32x128xf32>
    %169 = arith.cmpf oge, %139, %168 : vector<32x128xf32>
    %cst_67 = arith.constant 0.000000e+00 : f32
    %170 = vector.broadcast %cst_67 : f32 to vector<32x128xf32>
    %171 = arith.subf %170, %167 : vector<32x128xf32>
    %172 = arith.select %169, %167, %171 : vector<32x128xi1>, vector<32x128xf32>
    %cst_68 = arith.constant 1.000000e+00 : f32
    %173 = vector.broadcast %cst_68 : f32 to vector<32x128xf32>
    %174 = arith.addf %173, %172 : vector<32x128xf32>
    %175 = arith.mulf %137, %174 : vector<32x128xf32>
    %c168 = arith.constant 168 : index
    %c0_69 = arith.constant 0 : index
    %176 = vector.load %arg3[%c168, %c0_69] : memref<656x32xf32, #tpu.memory_space<vmem>>, vector<128x32xf32>
    %cst_70 = arith.constant dense<0.000000e+00> : vector<32x32xf32>
    %177 = tpu.matmul %175, %176, %cst_70 {dimension_numbers = #tpu.dot_dimension_numbers<[1], [0], [0], [1], [0, 0, 1, 1], [], []>} : vector<32x128xf32>, vector<128x32xf32>, vector<32x32xf32> -> vector<32x32xf32>
    %178 = arith.addf %130, %177 : vector<32x32xf32>
    %c296 = arith.constant 296 : index
    %c0_71 = arith.constant 0 : index
    %179 = vector.load %arg3[%c296, %c0_71] : memref<656x32xf32, #tpu.memory_space<vmem>>, vector<1x32xf32>
    %180 = vector.broadcast %179 : vector<1x32xf32> to vector<32x32xf32>
    %181 = arith.addf %178, %180 : vector<32x32xf32>
    %c304 = arith.constant 304 : index
    %c0_72 = arith.constant 0 : index
    %182 = vector.load %arg3[%c304, %c0_72] : memref<656x32xf32, #tpu.memory_space<vmem>>, vector<1x32xf32>
    %c312 = arith.constant 312 : index
    %c0_73 = arith.constant 0 : index
    %183 = vector.load %arg3[%c312, %c0_73] : memref<656x32xf32, #tpu.memory_space<vmem>>, vector<1x32xf32>
    %cst_74 = arith.constant dense<0.000000e+00> : vector<32xf32>
    %184 = vector.multi_reduction <add>, %181, %cst_74 [1] : vector<32x32xf32> to vector<32xf32>
    %185 = vector.shape_cast %184 : vector<32xf32> to vector<32x1xf32>
    %cst_75 = arith.constant 3.200000e+01 : f32
    %186 = vector.broadcast %cst_75 : f32 to vector<32x1xf32>
    %187 = arith.divf %185, %186 : vector<32x1xf32>
    %188 = vector.broadcast %187 : vector<32x1xf32> to vector<32x32xf32>
    %189 = arith.subf %181, %188 : vector<32x32xf32>
    %190 = arith.mulf %189, %189 : vector<32x32xf32>
    %cst_76 = arith.constant dense<0.000000e+00> : vector<32xf32>
    %191 = vector.multi_reduction <add>, %190, %cst_76 [1] : vector<32x32xf32> to vector<32xf32>
    %192 = vector.shape_cast %191 : vector<32xf32> to vector<32x1xf32>
    %cst_77 = arith.constant 3.200000e+01 : f32
    %193 = vector.broadcast %cst_77 : f32 to vector<32x1xf32>
    %194 = arith.divf %192, %193 : vector<32x1xf32>
    %195 = vector.broadcast %187 : vector<32x1xf32> to vector<32x32xf32>
    %196 = arith.subf %181, %195 : vector<32x32xf32>
    %cst_78 = arith.constant 9.99999974E-6 : f32
    %197 = vector.broadcast %cst_78 : f32 to vector<32x1xf32>
    %198 = arith.addf %194, %197 : vector<32x1xf32>
    %199 = math.rsqrt %198 : vector<32x1xf32>
    %200 = vector.broadcast %199 : vector<32x1xf32> to vector<32x32xf32>
    %201 = arith.mulf %196, %200 : vector<32x32xf32>
    %202 = vector.broadcast %182 : vector<1x32xf32> to vector<32x32xf32>
    %203 = arith.mulf %201, %202 : vector<32x32xf32>
    %204 = vector.broadcast %183 : vector<1x32xf32> to vector<32x32xf32>
    %205 = arith.addf %203, %204 : vector<32x32xf32>
    %c80_79 = arith.constant 80 : index
    %c0_80 = arith.constant 0 : index
    %206 = vector.load %arg4[%c80_79, %c0_80] : memref<240x128xf32, #tpu.memory_space<vmem>>, vector<32x128xf32>
    %207 = vector.extract_strided_slice %206 {offsets = [0, 0], sizes = [32, 96], strides = [1, 1]} : vector<32x128xf32> to vector<32x96xf32>
    %cst_81 = arith.constant dense<0.000000e+00> : vector<32x96xf32>
    %208 = tpu.matmul %205, %207, %cst_81 {dimension_numbers = #tpu.dot_dimension_numbers<[1], [0], [0], [1], [0, 0, 1, 1], [], []>} : vector<32x32xf32>, vector<32x96xf32>, vector<32x96xf32> -> vector<32x96xf32>
    %c112_82 = arith.constant 112 : index
    %c0_83 = arith.constant 0 : index
    %209 = vector.load %arg4[%c112_82, %c0_83] : memref<240x128xf32, #tpu.memory_space<vmem>>, vector<1x128xf32>
    %210 = vector.extract_strided_slice %209 {offsets = [0, 0], sizes = [1, 96], strides = [1, 1]} : vector<1x128xf32> to vector<1x96xf32>
    %211 = vector.broadcast %210 : vector<1x96xf32> to vector<32x96xf32>
    %212 = arith.addf %208, %211 : vector<32x96xf32>
    %c320 = arith.constant 320 : index
    %c0_84 = arith.constant 0 : index
    %213 = vector.load %arg3[%c320, %c0_84] : memref<656x32xf32, #tpu.memory_space<vmem>>, vector<32x32xf32>
    %214 = vector.extract_strided_slice %212 {offsets = [0, 0], sizes = [32, 16], strides = [1, 1]} : vector<32x96xf32> to vector<32x16xf32>
    %215 = vector.extract_strided_slice %212 {offsets = [0, 32], sizes = [32, 16], strides = [1, 1]} : vector<32x96xf32> to vector<32x16xf32>
    %216 = vector.extract_strided_slice %212 {offsets = [0, 64], sizes = [32, 16], strides = [1, 1]} : vector<32x96xf32> to vector<32x16xf32>
    %cst_85 = arith.constant dense<0.000000e+00> : vector<32x32xf32>
    %217 = tpu.matmul %214, %215, %cst_85 {dimension_numbers = #tpu.dot_dimension_numbers<[1], [1], [0], [0], [0, 0, 1, 0], [], []>} : vector<32x16xf32>, vector<32x16xf32>, vector<32x32xf32> -> vector<32x32xf32>
    %cst_86 = arith.constant 2.500000e-01 : f32
    %218 = vector.broadcast %cst_86 : f32 to vector<32x32xf32>
    %219 = arith.mulf %217, %218 : vector<32x32xf32>
    %220 = arith.addf %219, %53 : vector<32x32xf32>
    %cst_87 = arith.constant dense<0xFF800000> : vector<32xf32>
    %221 = vector.multi_reduction <maximumf>, %220, %cst_87 [1] : vector<32x32xf32> to vector<32xf32>
    %222 = vector.shape_cast %221 : vector<32xf32> to vector<32x1xf32>
    %223 = vector.broadcast %222 : vector<32x1xf32> to vector<32x32xf32>
    %224 = arith.subf %220, %223 : vector<32x32xf32>
    %225 = math.exp %224 : vector<32x32xf32>
    %cst_88 = arith.constant dense<0.000000e+00> : vector<32xf32>
    %226 = vector.multi_reduction <add>, %225, %cst_88 [1] : vector<32x32xf32> to vector<32xf32>
    %227 = vector.shape_cast %226 : vector<32xf32> to vector<32x1xf32>
    %228 = tpu.reciprocal %227 {approx = true} : vector<32x1xf32> -> vector<32x1xf32>
    %229 = vector.broadcast %228 : vector<32x1xf32> to vector<32x32xf32>
    %230 = arith.mulf %225, %229 : vector<32x32xf32>
    %cst_89 = arith.constant dense<0.000000e+00> : vector<32x16xf32>
    %231 = tpu.matmul %230, %216, %cst_89 {dimension_numbers = #tpu.dot_dimension_numbers<[1], [0], [0], [1], [0, 0, 1, 1], [], []>} : vector<32x32xf32>, vector<32x16xf32>, vector<32x16xf32> -> vector<32x16xf32>
    %232 = vector.extract_strided_slice %213 {offsets = [0, 0], sizes = [16, 32], strides = [1, 1]} : vector<32x32xf32> to vector<16x32xf32>
    %cst_90 = arith.constant dense<0.000000e+00> : vector<32x32xf32>
    %233 = tpu.matmul %231, %232, %cst_90 {dimension_numbers = #tpu.dot_dimension_numbers<[1], [0], [0], [1], [0, 0, 1, 1], [], []>} : vector<32x16xf32>, vector<16x32xf32>, vector<32x32xf32> -> vector<32x32xf32>
    %234 = vector.extract_strided_slice %212 {offsets = [0, 16], sizes = [32, 16], strides = [1, 1]} : vector<32x96xf32> to vector<32x16xf32>
    %235 = vector.extract_strided_slice %212 {offsets = [0, 48], sizes = [32, 16], strides = [1, 1]} : vector<32x96xf32> to vector<32x16xf32>
    %236 = vector.extract_strided_slice %212 {offsets = [0, 80], sizes = [32, 16], strides = [1, 1]} : vector<32x96xf32> to vector<32x16xf32>
    %cst_91 = arith.constant dense<0.000000e+00> : vector<32x32xf32>
    %237 = tpu.matmul %234, %235, %cst_91 {dimension_numbers = #tpu.dot_dimension_numbers<[1], [1], [0], [0], [0, 0, 1, 0], [], []>} : vector<32x16xf32>, vector<32x16xf32>, vector<32x32xf32> -> vector<32x32xf32>
    %cst_92 = arith.constant 2.500000e-01 : f32
    %238 = vector.broadcast %cst_92 : f32 to vector<32x32xf32>
    %239 = arith.mulf %237, %238 : vector<32x32xf32>
    %240 = arith.addf %239, %53 : vector<32x32xf32>
    %cst_93 = arith.constant dense<0xFF800000> : vector<32xf32>
    %241 = vector.multi_reduction <maximumf>, %240, %cst_93 [1] : vector<32x32xf32> to vector<32xf32>
    %242 = vector.shape_cast %241 : vector<32xf32> to vector<32x1xf32>
    %243 = vector.broadcast %242 : vector<32x1xf32> to vector<32x32xf32>
    %244 = arith.subf %240, %243 : vector<32x32xf32>
    %245 = math.exp %244 : vector<32x32xf32>
    %cst_94 = arith.constant dense<0.000000e+00> : vector<32xf32>
    %246 = vector.multi_reduction <add>, %245, %cst_94 [1] : vector<32x32xf32> to vector<32xf32>
    %247 = vector.shape_cast %246 : vector<32xf32> to vector<32x1xf32>
    %248 = tpu.reciprocal %247 {approx = true} : vector<32x1xf32> -> vector<32x1xf32>
    %249 = vector.broadcast %248 : vector<32x1xf32> to vector<32x32xf32>
    %250 = arith.mulf %245, %249 : vector<32x32xf32>
    %cst_95 = arith.constant dense<0.000000e+00> : vector<32x16xf32>
    %251 = tpu.matmul %250, %236, %cst_95 {dimension_numbers = #tpu.dot_dimension_numbers<[1], [0], [0], [1], [0, 0, 1, 1], [], []>} : vector<32x32xf32>, vector<32x16xf32>, vector<32x16xf32> -> vector<32x16xf32>
    %252 = vector.extract_strided_slice %213 {offsets = [16, 0], sizes = [16, 32], strides = [1, 1]} : vector<32x32xf32> to vector<16x32xf32>
    %cst_96 = arith.constant dense<0.000000e+00> : vector<32x32xf32>
    %253 = tpu.matmul %251, %252, %cst_96 {dimension_numbers = #tpu.dot_dimension_numbers<[1], [0], [0], [1], [0, 0, 1, 1], [], []>} : vector<32x16xf32>, vector<16x32xf32>, vector<32x32xf32> -> vector<32x32xf32>
    %254 = arith.addf %233, %253 : vector<32x32xf32>
    %255 = arith.addf %205, %254 : vector<32x32xf32>
    %c352 = arith.constant 352 : index
    %c0_97 = arith.constant 0 : index
    %256 = vector.load %arg3[%c352, %c0_97] : memref<656x32xf32, #tpu.memory_space<vmem>>, vector<1x32xf32>
    %257 = vector.broadcast %256 : vector<1x32xf32> to vector<32x32xf32>
    %258 = arith.addf %255, %257 : vector<32x32xf32>
    %c360 = arith.constant 360 : index
    %c0_98 = arith.constant 0 : index
    %259 = vector.load %arg3[%c360, %c0_98] : memref<656x32xf32, #tpu.memory_space<vmem>>, vector<1x32xf32>
    %c368 = arith.constant 368 : index
    %c0_99 = arith.constant 0 : index
    %260 = vector.load %arg3[%c368, %c0_99] : memref<656x32xf32, #tpu.memory_space<vmem>>, vector<1x32xf32>
    %cst_100 = arith.constant dense<0.000000e+00> : vector<32xf32>
    %261 = vector.multi_reduction <add>, %258, %cst_100 [1] : vector<32x32xf32> to vector<32xf32>
    %262 = vector.shape_cast %261 : vector<32xf32> to vector<32x1xf32>
    %cst_101 = arith.constant 3.200000e+01 : f32
    %263 = vector.broadcast %cst_101 : f32 to vector<32x1xf32>
    %264 = arith.divf %262, %263 : vector<32x1xf32>
    %265 = vector.broadcast %264 : vector<32x1xf32> to vector<32x32xf32>
    %266 = arith.subf %258, %265 : vector<32x32xf32>
    %267 = arith.mulf %266, %266 : vector<32x32xf32>
    %cst_102 = arith.constant dense<0.000000e+00> : vector<32xf32>
    %268 = vector.multi_reduction <add>, %267, %cst_102 [1] : vector<32x32xf32> to vector<32xf32>
    %269 = vector.shape_cast %268 : vector<32xf32> to vector<32x1xf32>
    %cst_103 = arith.constant 3.200000e+01 : f32
    %270 = vector.broadcast %cst_103 : f32 to vector<32x1xf32>
    %271 = arith.divf %269, %270 : vector<32x1xf32>
    %272 = vector.broadcast %264 : vector<32x1xf32> to vector<32x32xf32>
    %273 = arith.subf %258, %272 : vector<32x32xf32>
    %cst_104 = arith.constant 9.99999974E-6 : f32
    %274 = vector.broadcast %cst_104 : f32 to vector<32x1xf32>
    %275 = arith.addf %271, %274 : vector<32x1xf32>
    %276 = math.rsqrt %275 : vector<32x1xf32>
    %277 = vector.broadcast %276 : vector<32x1xf32> to vector<32x32xf32>
    %278 = arith.mulf %273, %277 : vector<32x32xf32>
    %279 = vector.broadcast %259 : vector<1x32xf32> to vector<32x32xf32>
    %280 = arith.mulf %278, %279 : vector<32x32xf32>
    %281 = vector.broadcast %260 : vector<1x32xf32> to vector<32x32xf32>
    %282 = arith.addf %280, %281 : vector<32x32xf32>
    %c120 = arith.constant 120 : index
    %c0_105 = arith.constant 0 : index
    %283 = vector.load %arg4[%c120, %c0_105] : memref<240x128xf32, #tpu.memory_space<vmem>>, vector<32x128xf32>
    %cst_106 = arith.constant dense<0.000000e+00> : vector<32x128xf32>
    %284 = tpu.matmul %282, %283, %cst_106 {dimension_numbers = #tpu.dot_dimension_numbers<[1], [0], [0], [1], [0, 0, 1, 1], [], []>} : vector<32x32xf32>, vector<32x128xf32>, vector<32x128xf32> -> vector<32x128xf32>
    %c152_107 = arith.constant 152 : index
    %c0_108 = arith.constant 0 : index
    %285 = vector.load %arg4[%c152_107, %c0_108] : memref<240x128xf32, #tpu.memory_space<vmem>>, vector<1x128xf32>
    %286 = vector.broadcast %285 : vector<1x128xf32> to vector<32x128xf32>
    %287 = arith.addf %284, %286 : vector<32x128xf32>
    %cst_109 = arith.constant 5.000000e-01 : f32
    %288 = vector.broadcast %cst_109 : f32 to vector<32x128xf32>
    %289 = arith.mulf %288, %287 : vector<32x128xf32>
    %cst_110 = arith.constant 0.707106769 : f32
    %290 = vector.broadcast %cst_110 : f32 to vector<32x128xf32>
    %291 = arith.mulf %287, %290 : vector<32x128xf32>
    %292 = math.absf %291 : vector<32x128xf32>
    %cst_111 = arith.constant 0.327591091 : f32
    %293 = vector.broadcast %cst_111 : f32 to vector<32x128xf32>
    %294 = arith.mulf %293, %292 : vector<32x128xf32>
    %cst_112 = arith.constant 1.000000e+00 : f32
    %295 = vector.broadcast %cst_112 : f32 to vector<32x128xf32>
    %296 = arith.addf %295, %294 : vector<32x128xf32>
    %cst_113 = arith.constant 1.000000e+00 : f32
    %297 = vector.broadcast %cst_113 : f32 to vector<32x128xf32>
    %298 = arith.divf %297, %296 : vector<32x128xf32>
    %cst_114 = arith.constant 1.06140542 : f32
    %299 = vector.broadcast %cst_114 : f32 to vector<32x128xf32>
    %300 = arith.mulf %299, %298 : vector<32x128xf32>
    %cst_115 = arith.constant -1.45315206 : f32
    %301 = vector.broadcast %cst_115 : f32 to vector<32x128xf32>
    %302 = arith.addf %300, %301 : vector<32x128xf32>
    %303 = arith.mulf %302, %298 : vector<32x128xf32>
    %cst_116 = arith.constant 1.42141378 : f32
    %304 = vector.broadcast %cst_116 : f32 to vector<32x128xf32>
    %305 = arith.addf %303, %304 : vector<32x128xf32>
    %306 = arith.mulf %305, %298 : vector<32x128xf32>
    %cst_117 = arith.constant -0.284496725 : f32
    %307 = vector.broadcast %cst_117 : f32 to vector<32x128xf32>
    %308 = arith.addf %306, %307 : vector<32x128xf32>
    %309 = arith.mulf %308, %298 : vector<32x128xf32>
    %cst_118 = arith.constant 0.254829586 : f32
    %310 = vector.broadcast %cst_118 : f32 to vector<32x128xf32>
    %311 = arith.addf %309, %310 : vector<32x128xf32>
    %312 = arith.mulf %311, %298 : vector<32x128xf32>
    %cst_119 = arith.constant 0.000000e+00 : f32
    %313 = vector.broadcast %cst_119 : f32 to vector<32x128xf32>
    %314 = arith.subf %313, %292 : vector<32x128xf32>
    %315 = arith.mulf %314, %292 : vector<32x128xf32>
    %316 = math.exp %315 : vector<32x128xf32>
    %317 = arith.mulf %312, %316 : vector<32x128xf32>
    %cst_120 = arith.constant 1.000000e+00 : f32
    %318 = vector.broadcast %cst_120 : f32 to vector<32x128xf32>
    %319 = arith.subf %318, %317 : vector<32x128xf32>
    %cst_121 = arith.constant 0.000000e+00 : f32
    %320 = vector.broadcast %cst_121 : f32 to vector<32x128xf32>
    %321 = arith.cmpf oge, %291, %320 : vector<32x128xf32>
    %cst_122 = arith.constant 0.000000e+00 : f32
    %322 = vector.broadcast %cst_122 : f32 to vector<32x128xf32>
    %323 = arith.subf %322, %319 : vector<32x128xf32>
    %324 = arith.select %321, %319, %323 : vector<32x128xi1>, vector<32x128xf32>
    %cst_123 = arith.constant 1.000000e+00 : f32
    %325 = vector.broadcast %cst_123 : f32 to vector<32x128xf32>
    %326 = arith.addf %325, %324 : vector<32x128xf32>
    %327 = arith.mulf %289, %326 : vector<32x128xf32>
    %c376 = arith.constant 376 : index
    %c0_124 = arith.constant 0 : index
    %328 = vector.load %arg3[%c376, %c0_124] : memref<656x32xf32, #tpu.memory_space<vmem>>, vector<128x32xf32>
    %cst_125 = arith.constant dense<0.000000e+00> : vector<32x32xf32>
    %329 = tpu.matmul %327, %328, %cst_125 {dimension_numbers = #tpu.dot_dimension_numbers<[1], [0], [0], [1], [0, 0, 1, 1], [], []>} : vector<32x128xf32>, vector<128x32xf32>, vector<32x32xf32> -> vector<32x32xf32>
    %330 = arith.addf %282, %329 : vector<32x32xf32>
    %c504 = arith.constant 504 : index
    %c0_126 = arith.constant 0 : index
    %331 = vector.load %arg3[%c504, %c0_126] : memref<656x32xf32, #tpu.memory_space<vmem>>, vector<1x32xf32>
    %332 = vector.broadcast %331 : vector<1x32xf32> to vector<32x32xf32>
    %333 = arith.addf %330, %332 : vector<32x32xf32>
    %c512 = arith.constant 512 : index
    %c0_127 = arith.constant 0 : index
    %334 = vector.load %arg3[%c512, %c0_127] : memref<656x32xf32, #tpu.memory_space<vmem>>, vector<1x32xf32>
    %c520 = arith.constant 520 : index
    %c0_128 = arith.constant 0 : index
    %335 = vector.load %arg3[%c520, %c0_128] : memref<656x32xf32, #tpu.memory_space<vmem>>, vector<1x32xf32>
    %cst_129 = arith.constant dense<0.000000e+00> : vector<32xf32>
    %336 = vector.multi_reduction <add>, %333, %cst_129 [1] : vector<32x32xf32> to vector<32xf32>
    %337 = vector.shape_cast %336 : vector<32xf32> to vector<32x1xf32>
    %cst_130 = arith.constant 3.200000e+01 : f32
    %338 = vector.broadcast %cst_130 : f32 to vector<32x1xf32>
    %339 = arith.divf %337, %338 : vector<32x1xf32>
    %340 = vector.broadcast %339 : vector<32x1xf32> to vector<32x32xf32>
    %341 = arith.subf %333, %340 : vector<32x32xf32>
    %342 = arith.mulf %341, %341 : vector<32x32xf32>
    %cst_131 = arith.constant dense<0.000000e+00> : vector<32xf32>
    %343 = vector.multi_reduction <add>, %342, %cst_131 [1] : vector<32x32xf32> to vector<32xf32>
    %344 = vector.shape_cast %343 : vector<32xf32> to vector<32x1xf32>
    %cst_132 = arith.constant 3.200000e+01 : f32
    %345 = vector.broadcast %cst_132 : f32 to vector<32x1xf32>
    %346 = arith.divf %344, %345 : vector<32x1xf32>
    %347 = vector.broadcast %339 : vector<32x1xf32> to vector<32x32xf32>
    %348 = arith.subf %333, %347 : vector<32x32xf32>
    %cst_133 = arith.constant 9.99999974E-6 : f32
    %349 = vector.broadcast %cst_133 : f32 to vector<32x1xf32>
    %350 = arith.addf %346, %349 : vector<32x1xf32>
    %351 = math.rsqrt %350 : vector<32x1xf32>
    %352 = vector.broadcast %351 : vector<32x1xf32> to vector<32x32xf32>
    %353 = arith.mulf %348, %352 : vector<32x32xf32>
    %354 = vector.broadcast %334 : vector<1x32xf32> to vector<32x32xf32>
    %355 = arith.mulf %353, %354 : vector<32x32xf32>
    %356 = vector.broadcast %335 : vector<1x32xf32> to vector<32x32xf32>
    %357 = arith.addf %355, %356 : vector<32x32xf32>
    %c592 = arith.constant 592 : index
    %c0_134 = arith.constant 0 : index
    %358 = vector.load %arg3[%c592, %c0_134] : memref<656x32xf32, #tpu.memory_space<vmem>>, vector<16x32xf32>
    %cst_135 = arith.constant dense<0.000000e+00> : vector<16x32xf32>
    %359 = tpu.matmul %358, %357, %cst_135 {dimension_numbers = #tpu.dot_dimension_numbers<[1], [0], [0], [1], [0, 0, 1, 1], [], []>} : vector<16x32xf32>, vector<32x32xf32>, vector<16x32xf32> -> vector<16x32xf32>
    %c608 = arith.constant 608 : index
    %c0_136 = arith.constant 0 : index
    %360 = vector.load %arg3[%c608, %c0_136] : memref<656x32xf32, #tpu.memory_space<vmem>>, vector<16x32xf32>
    %cst_137 = arith.constant dense<0.000000e+00> : vector<16x32xf32>
    %361 = tpu.matmul %360, %357, %cst_137 {dimension_numbers = #tpu.dot_dimension_numbers<[1], [0], [0], [1], [0, 0, 1, 1], [], []>} : vector<16x32xf32>, vector<32x32xf32>, vector<16x32xf32> -> vector<16x32xf32>
    %c160_138 = arith.constant 160 : index
    %c0_139 = arith.constant 0 : index
    %362 = vector.load %arg4[%c160_138, %c0_139] : memref<240x128xf32, #tpu.memory_space<vmem>>, vector<32x128xf32>
    %cst_140 = arith.constant dense<0.000000e+00> : vector<16x128xf32>
    %363 = tpu.matmul %361, %362, %cst_140 {dimension_numbers = #tpu.dot_dimension_numbers<[1], [0], [0], [1], [0, 0, 1, 1], [], []>} : vector<16x32xf32>, vector<32x128xf32>, vector<16x128xf32> -> vector<16x128xf32>
    %c192 = arith.constant 192 : index
    %c0_141 = arith.constant 0 : index
    %364 = vector.load %arg4[%c192, %c0_141] : memref<240x128xf32, #tpu.memory_space<vmem>>, vector<32x128xf32>
    %cst_142 = arith.constant dense<0.000000e+00> : vector<16x128xf32>
    %365 = tpu.matmul %359, %364, %cst_142 {dimension_numbers = #tpu.dot_dimension_numbers<[1], [0], [0], [1], [0, 0, 1, 1], [], []>} : vector<16x32xf32>, vector<32x128xf32>, vector<16x128xf32> -> vector<16x128xf32>
    %366 = arith.addf %363, %365 : vector<16x128xf32>
    %c224 = arith.constant 224 : index
    %c0_143 = arith.constant 0 : index
    %367 = vector.load %arg4[%c224, %c0_143] : memref<240x128xf32, #tpu.memory_space<vmem>>, vector<1x128xf32>
    %368 = vector.broadcast %367 : vector<1x128xf32> to vector<16x128xf32>
    %369 = arith.addf %366, %368 : vector<16x128xf32>
    %c232 = arith.constant 232 : index
    %c0_144 = arith.constant 0 : index
    %370 = vector.load %arg4[%c232, %c0_144] : memref<240x128xf32, #tpu.memory_space<vmem>>, vector<1x128xf32>
    %371 = math.tanh %369 : vector<16x128xf32>
    %372 = arith.subf %371, %369 : vector<16x128xf32>
    %373 = vector.broadcast %370 : vector<1x128xf32> to vector<16x128xf32>
    %374 = arith.mulf %373, %372 : vector<16x128xf32>
    %375 = arith.addf %369, %374 : vector<16x128xf32>
    %c0_145 = arith.constant 0 : index
    %c0_146 = arith.constant 0 : index
    %376 = vector.load %arg5[%c0_145, %c0_146] : memref<16x128xf32, #tpu.memory_space<vmem>>, vector<16x128xf32>
    tpu.vector_store %arg5[%c0_145, %c0_146], %375 {strides = array<i32>} : memref<16x128xf32, #tpu.memory_space<vmem>>, vector<16x128xf32>,
    return
  }
}

</mosaic_0001>

<llo_original>
// kernel: forward.1
$region0: #{forward.1}
  #allocation0 [shape = 'u32[]', space=smem, size = 0x4, offset = 0x4, fixed_abs, tag = 'smem constant byte address 0x4 - core index']
  #allocation1 [shape = 'u32[144,128]{1,0:T(1,128)}', space=vmem, size = 0x12000, scoped, tag = 'internal scratch']
  %s0 = inlined_call_operand.vmem [shape: s32[16,1], index: 0, kind: input, shape index: {}]
  %s1 = inlined_call_operand.vmem [shape: f32[16,4], index: 1, kind: input, shape index: {}]
  %s2 = inlined_call_operand.vmem [shape: f32[16,2], index: 2, kind: input, shape index: {}]
  %s3 = inlined_call_operand.vmem [shape: f32[656,32], index: 3, kind: input, shape index: {}]
  %s4 = inlined_call_operand.vmem [shape: f32[240,128], index: 4, kind: input, shape index: {}]
  %s5 = inlined_call_operand.vmem [shape: f32[16,128], index: 5, kind: output, shape index: {}]
  %s6 = sld [smem:[#allocation0]]
  $region30: #{forward.1} parent=0
    _
  %s8 = ssub.s32 1, %s6
  %s9 = scalar_select 0, %s8, %s6
  // Predicated region
  $region2: #{forward.1} parent=0 // pred_check
    _
  $region3: #{forward.1} parent=0 // pred_check_branch
    %11 = sbr.rel (0) target = $region5
  $region4: #{forward.1} parent=0 // pred_region
    _
  $region5: #{forward.1} parent=0 // pred_fallthru
    _
  // Predicated region
  $region6: #{forward.1} parent=0 // pred_check
    _
  $region7: #{forward.1} parent=0 // pred_check_branch
    %13 = sbr.rel (0) target = $region9
  $region8: #{forward.1} parent=0 // pred_region
    _
  $region9: #{forward.1} parent=0 // pred_fallthru
    _
  // Predicated region
  $region10: #{forward.1} parent=0 // pred_check
    _
  $region11: #{forward.1} parent=0 // pred_check_branch
    %15 = sbr.rel (0) target = $region13
  $region12: #{forward.1} parent=0 // pred_region
    _
  $region13: #{forward.1} parent=0 // pred_fallthru
    _
  // Predicated region
  $region14: #{forward.1} parent=0 // pred_check
    _
  $region15: #{forward.1} parent=0 // pred_check_branch
    %17 = sbr.rel (0) target = $region17
  $region16: #{forward.1} parent=0 // pred_region
    _
  $region17: #{forward.1} parent=0 // pred_fallthru
    _
  // Predicated region
  $region18: #{forward.1} parent=0 // pred_check
    _
  $region19: #{forward.1} parent=0 // pred_check_branch
    %19 = sbr.rel (0) target = $region21
  $region20: #{forward.1} parent=0 // pred_region
    _
  $region21: #{forward.1} parent=0 // pred_fallthru
    _
  %v20 = vld [vmem:[%s0] sm:$0xff]
  %v21 = vld [vmem:[%s0 + $0x8] sm:$0xff]
  %v22 = vlaneseq
  %v23 = vand.u32 %v22, 127
  %24 = vset.pattern.permute.xlu0 0
  %25 = vperm.xlu0 %24, %v20
  %v26 = vpop.permute.xlu0 %25
  %27 = vset.pattern.permute.xlu0 0
  %28 = vperm.xlu0 %27, %v21
  %v29 = vpop.permute.xlu0 %28
  %vm30 = vcmp.eq.s32.totalorder %v23, %v26
  %vm31 = vcmp.eq.s32.totalorder %v23, %v29
  %v32 = vsel %vm30, 1, 0
  %v33 = vsel %vm31, 1, 0
  %v34 = vcvt.s32.f32 %v32
  %v35 = vcvt.s32.f32 %v33
  %v36 = vld [vmem:[%s3] sm:$0xff]
  %v37 = vld [vmem:[%s3 + $0x8] sm:$0xff]
  %v38 = vld [vmem:[%s3 + $0x10] sm:$0xff]
  %v39 = vld [vmem:[%s3 + $0x18] sm:$0xff]
  %v40 = vld [vmem:[%s3 + $0x20] sm:$0xff]
  %v41 = vld [vmem:[%s3 + $0x28] sm:$0xff]
  %v42 = vld [vmem:[%s3 + $0x30] sm:$0xff]
  %v43 = vld [vmem:[%s3 + $0x38] sm:$0xff]
  %vm44 = vcmask 523264
  %v46 = vsel %vm44, %v34, 0
  %v49 = vsel %vm44, %v35, 0
  %51 = vmatprep.subr.mxu0 0.0
  %52 = vmatpush1.msra.mxu0 %v36
  %53 = vmatprep.subr.mxu0 0.0
  %54 = vmatpush1.msra.mxu0 %v37
  %55 = vmatprep.subr.mxu0 0.0
  %56 = vmatpush1.msra.mxu0 %v38
  %57 = vmatprep.subr.mxu0 0.0
  %58 = vmatpush1.msra.mxu0 %v39
  %59 = vmatprep.subr.mxu0 0.0
  %60 = vmatpush1.msra.mxu0 %v40
  %61 = vmatprep.subr.mxu0 0.0
  %62 = vmatpush1.msra.mxu0 %v41
  %63 = vmatprep.subr.mxu0 0.0
  %64 = vmatpush1.msra.mxu0 %v42
  %65 = vmatprep.subr.mxu0 0.0
  %66 = vmatpush1.msra.mxu0 %v43
  %67 = vmatprep.subr.mxu0 0.0
  %68 = vmatpush1.msra.mxu0 0.0
  %69 = vmatprep.subr.mxu0 0.0
  %70 = vmatpush1.msra.mxu0 0.0
  %71 = vmatprep.subr.mxu0 0.0
  %72 = vmatpush1.msra.mxu0 0.0
  %73 = vmatprep.subr.mxu0 0.0
  %74 = vmatpush1.msra.mxu0 0.0
  %75 = vmatprep.subr.mxu0 0.0
  %76 = vmatpush1.msra.mxu0 0.0
  %77 = vmatprep.subr.mxu0 0.0
  %78 = vmatpush1.msra.mxu0 0.0
  %79 = vmatprep.subr.mxu0 0.0
  %80 = vmatpush1.msra.mxu0 0.0
  %81 = vmatprep.subr.mxu0 0.0
  %82 = vmatpush1.msra.mxu0 0.0
  %83 = vmatprep.subr.mxu0 0.0
  %84 = vmatpush1.msra.mxu0 0.0
  %85 = vmatprep.subr.mxu0 0.0
  %86 = vmatpush1.msra.mxu0 0.0
  %87 = vmatprep.subr.mxu0 0.0
  %88 = vmatpush1.msra.mxu0 0.0
  %89 = vmatprep.subr.mxu0 0.0
  %90 = vmatpush1.msra.mxu0 0.0
  %91 = vmatprep.subr.mxu0 0.0
  %92 = vmatpush1.msra.mxu0 0.0
  %93 = vmatprep.subr.mxu0 0.0
  %94 = vmatpush1.msra.mxu0 0.0
  %95 = vmatprep.subr.mxu0 0.0
  %96 = vmatpush1.msra.mxu0 0.0
  %97 = vmatprep.subr.mxu0 0.0
  %98 = vmatpush1.msra.mxu0 0.0
  %99 = vmatprep.subr.mxu0 0.0
  %100 = vmatpush1.msra.mxu0 0.0
  %101 = vmatprep.subr.mxu0 0.0
  %102 = vmatpush1.msra.mxu0 0.0
  %103 = vmatprep.subr.mxu0 0.0
  %104 = vmatpush1.msra.mxu0 0.0
  %105 = vmatprep.subr.mxu0 0.0
  %106 = vmatpush1.msra.mxu0 0.0
  %107 = vmatprep.subr.mxu0 0.0
  %108 = vmatpush1.msra.mxu0 0.0
  %109 = vmatprep.subr.mxu0 0.0
  %110 = vmatpush1.msra.mxu0 0.0
  %111 = vmatprep.subr.mxu0 0.0
  %112 = vmatpush1.msra.mxu0 0.0
  %113 = vmatprep.subr.mxu0 0.0
  %114 = vmatpush1.msra.mxu0 0.0
  %115 = vmatprep.mubr.f32.mxu0 0.0
  %116 = vmatmul.mubr.f32.gmra.mrb[0].mxu0 %v46
  %v117 = vpop.f32.mrb[0].mxu0
  %v118 = vadd.f32 0.0, %v117
  %v119 = vpop.f32.mrb[0].mxu0
  %120 = vmatprep.mubr.f32.mxu0 0.0
  %121 = vmatmul.mubr.f32.gmra.mrb[0].mxu0 %v49
  %v122 = vpop.f32.mrb[0].mxu0
  %v123 = vadd.f32 0.0, %v122
  %v124 = vpop.f32.mrb[0].mxu0
  %125 = vdwg.mxu0
  %v126 = vld [vmem:[%s1] sm:$0xff]
  %v127 = vld [vmem:[%s1 + $0x8] sm:$0xff]
  %v128 = vld [vmem:[%s3 + $0x40] sm:$0xf]
  %v129 = vld [vmem:[%s3 + $0x48] sm:$0x1]
  %v130 = vlaneseq
  %v131 = vshrl.u32 %v130, 7
  %v132 = vsub.s32 0, %v131
  %v133 = vrot.slane %v129, %v132
  %vm134 = vcmask 31744
  %v136 = vsel %vm134, %v126, 0
  %v139 = vsel %vm134, %v127, 0
  %vm141 = vcmask 1043456
  %v143 = vsel %vm141, %v128, 0
  %145 = vmatprep.subr.mxu0 0.0
  %146 = vmatpush1.msra.mxu0 %v143
  %147 = vmatprep.subr.mxu0 0.0
  %148 = vmatpush1.msra.mxu0 0.0
  %149 = vmatprep.subr.mxu0 0.0
  %150 = vmatpush1.msra.mxu0 0.0
  %151 = vmatprep.subr.mxu0 0.0
  %152 = vmatpush1.msra.mxu0 0.0
  %153 = vmatprep.subr.mxu0 0.0
  %154 = vmatpush1.msra.mxu0 0.0
  %155 = vmatprep.subr.mxu0 0.0
  %156 = vmatpush1.msra.mxu0 0.0
  %157 = vmatprep.subr.mxu0 0.0
  %158 = vmatpush1.msra.mxu0 0.0
  %159 = vmatprep.subr.mxu0 0.0
  %160 = vmatpush1.msra.mxu0 0.0
  %161 = vmatprep.subr.mxu0 0.0
  %162 = vmatpush1.msra.mxu0 0.0
  %163 = vmatprep.subr.mxu0 0.0
  %164 = vmatpush1.msra.mxu0 0.0
  %165 = vmatprep.subr.mxu0 0.0
  %166 = vmatpush1.msra.mxu0 0.0
  %167 = vmatprep.subr.mxu0 0.0
  %168 = vmatpush1.msra.mxu0 0.0
  %169 = vmatprep.subr.mxu0 0.0
  %170 = vmatpush1.msra.mxu0 0.0
  %171 = vmatprep.subr.mxu0 0.0
  %172 = vmatpush1.msra.mxu0 0.0
  %173 = vmatprep.subr.mxu0 0.0
  %174 = vmatpush1.msra.mxu0 0.0
  %175 = vmatprep.subr.mxu0 0.0
  %176 = vmatpush1.msra.mxu0 0.0
  %177 = vmatprep.subr.mxu0 0.0
  %178 = vmatpush1.msra.mxu0 0.0
  %179 = vmatprep.subr.mxu0 0.0
  %180 = vmatpush1.msra.mxu0 0.0
  %181 = vmatprep.subr.mxu0 0.0
  %182 = vmatpush1.msra.mxu0 0.0
  %183 = vmatprep.subr.mxu0 0.0
  %184 = vmatpush1.msra.mxu0 0.0
  %185 = vmatprep.subr.mxu0 0.0
  %186 = vmatpush1.msra.mxu0 0.0
  %187 = vmatprep.subr.mxu0 0.0
  %188 = vmatpush1.msra.mxu0 0.0
  %189 = vmatprep.subr.mxu0 0.0
  %190 = vmatpush1.msra.mxu0 0.0
  %191 = vmatprep.subr.mxu0 0.0
  %192 = vmatpush1.msra.mxu0 0.0
  %193 = vmatprep.subr.mxu0 0.0
  %194 = vmatpush1.msra.mxu0 0.0
  %195 = vmatprep.subr.mxu0 0.0
  %196 = vmatpush1.msra.mxu0 0.0
  %197 = vmatprep.subr.mxu0 0.0
  %198 = vmatpush1.msra.mxu0 0.0
  %199 = vmatprep.subr.mxu0 0.0
  %200 = vmatpush1.msra.mxu0 0.0
  %201 = vmatprep.subr.mxu0 0.0
  %202 = vmatpush1.msra.mxu0 0.0
  %203 = vmatprep.subr.mxu0 0.0
  %204 = vmatpush1.msra.mxu0 0.0
  %205 = vmatprep.subr.mxu0 0.0
  %206 = vmatpush1.msra.mxu0 0.0
  %207 = vmatprep.subr.mxu0 0.0
  %208 = vmatpush1.msra.mxu0 0.0
  %209 = vmatprep.mubr.f32.mxu0 0.0
  %210 = vmatmul.mubr.f32.gmra.mrb[0].mxu0 %v136
  %v211 = vpop.f32.mrb[0].mxu0
  %v212 = vadd.f32 %v133, %v211
  %v213 = vpop.f32.mrb[0].mxu0
  %214 = vmatprep.mubr.f32.mxu0 0.0
  %215 = vmatmul.mubr.f32.gmra.mrb[0].mxu0 %v139
  %v216 = vpop.f32.mrb[0].mxu0
  %v217 = vadd.f32 %v133, %v216
  %v218 = vpop.f32.mrb[0].mxu0
  %219 = vdwg.mxu0
  %v220 = vadd.f32 %v212, %v118
  %v221 = vadd.f32 %v217, %v123
  %v222 = vld [vmem:[%s2] sm:$0xff]
  %v223 = vld [vmem:[%s2 + $0x8] sm:$0xff]
  %v224 = vld [vmem:[%s3 + $0x50] sm:$0x3]
  %v225 = vld [vmem:[%s3 + $0x58] sm:$0x1]
  %v226 = vlaneseq
  %v227 = vshrl.u32 %v226, 7
  %v228 = vsub.s32 0, %v227
  %v229 = vrot.slane %v225, %v228
  %vm230 = vcmask 15360
  %v232 = vsel %vm230, %v222, 0
  %v235 = vsel %vm230, %v223, 0
  %vm237 = vcmask 1041408
  %v239 = vsel %vm237, %v224, 0
  %241 = vmatprep.subr.mxu0 0.0
  %242 = vmatpush1.msra.mxu0 %v239
  %243 = vmatprep.subr.mxu0 0.0
  %244 = vmatpush1.msra.mxu0 0.0
  %245 = vmatprep.subr.mxu0 0.0
  %246 = vmatpush1.msra.mxu0 0.0
  %247 = vmatprep.subr.mxu0 0.0
  %248 = vmatpush1.msra.mxu0 0.0
  %249 = vmatprep.subr.mxu0 0.0
  %250 = vmatpush1.msra.mxu0 0.0
  %251 = vmatprep.subr.mxu0 0.0
  %252 = vmatpush1.msra.mxu0 0.0
  %253 = vmatprep.subr.mxu0 0.0
  %254 = vmatpush1.msra.mxu0 0.0
  %255 = vmatprep.subr.mxu0 0.0
  %256 = vmatpush1.msra.mxu0 0.0
  %257 = vmatprep.subr.mxu0 0.0
  %258 = vmatpush1.msra.mxu0 0.0
  %259 = vmatprep.subr.mxu0 0.0
  %260 = vmatpush1.msra.mxu0 0.0
  %261 = vmatprep.subr.mxu0 0.0
  %262 = vmatpush1.msra.mxu0 0.0
  %263 = vmatprep.subr.mxu0 0.0
  %264 = vmatpush1.msra.mxu0 0.0
  %265 = vmatprep.subr.mxu0 0.0
  %266 = vmatpush1.msra.mxu0 0.0
  %267 = vmatprep.subr.mxu0 0.0
  %268 = vmatpush1.msra.mxu0 0.0
  %269 = vmatprep.subr.mxu0 0.0
  %270 = vmatpush1.msra.mxu0 0.0
  %271 = vmatprep.subr.mxu0 0.0
  %272 = vmatpush1.msra.mxu0 0.0
  %273 = vmatprep.subr.mxu0 0.0
  %274 = vmatpush1.msra.mxu0 0.0
  %275 = vmatprep.subr.mxu0 0.0
  %276 = vmatpush1.msra.mxu0 0.0
  %277 = vmatprep.subr.mxu0 0.0
  %278 = vmatpush1.msra.mxu0 0.0
  %279 = vmatprep.subr.mxu0 0.0
  %280 = vmatpush1.msra.mxu0 0.0
  %281 = vmatprep.subr.mxu0 0.0
  %282 = vmatpush1.msra.mxu0 0.0
  %283 = vmatprep.subr.mxu0 0.0
  %284 = vmatpush1.msra.mxu0 0.0
  %285 = vmatprep.subr.mxu0 0.0
  %286 = vmatpush1.msra.mxu0 0.0
  %287 = vmatprep.subr.mxu0 0.0
  %288 = vmatpush1.msra.mxu0 0.0
  %289 = vmatprep.subr.mxu0 0.0
  %290 = vmatpush1.msra.mxu0 0.0
  %291 = vmatprep.subr.mxu0 0.0
  %292 = vmatpush1.msra.mxu0 0.0
  %293 = vmatprep.subr.mxu0 0.0
  %294 = vmatpush1.msra.mxu0 0.0
  %295 = vmatprep.subr.mxu0 0.0
  %296 = vmatpush1.msra.mxu0 0.0
  %297 = vmatprep.subr.mxu0 0.0
  %298 = vmatpush1.msra.mxu0 0.0
  %299 = vmatprep.subr.mxu0 0.0
  %300 = vmatpush1.msra.mxu0 0.0
  %301 = vmatprep.subr.mxu0 0.0
  %302 = vmatpush1.msra.mxu0 0.0
  %303 = vmatprep.subr.mxu0 0.0
  %304 = vmatpush1.msra.mxu0 0.0
  %305 = vmatprep.mubr.f32.mxu0 0.0
  %306 = vmatmul.mubr.f32.gmra.mrb[0].mxu0 %v232
  %v307 = vpop.f32.mrb[0].mxu0
  %v308 = vadd.f32 %v229, %v307
  %v309 = vpop.f32.mrb[0].mxu0
  %310 = vmatprep.mubr.f32.mxu0 0.0
  %311 = vmatmul.mubr.f32.gmra.mrb[0].mxu0 %v235
  %v312 = vpop.f32.mrb[0].mxu0
  %v313 = vadd.f32 %v229, %v312
  %v314 = vpop.f32.mrb[0].mxu0
  %315 = vdwg.mxu0
  %v316 = vadd.f32 %v308, %v118
  %v317 = vadd.f32 %v313, %v123
  %v318 = vld [vmem:[%s3 + $0x210] sm:$0xff]
  %v319 = vld [vmem:[%s3 + $0x218] sm:$0xff]
  %v320 = vld [vmem:[%s3 + $0x220] sm:$0xff]
  %v321 = vld [vmem:[%s3 + $0x228] sm:$0xff]
  %v322 = vld [vmem:[%s3 + $0x230] sm:$0xff]
  %v323 = vld [vmem:[%s3 + $0x238] sm:$0xff]
  %v324 = vld [vmem:[%s3 + $0x240] sm:$0xff]
  %v325 = vld [vmem:[%s3 + $0x248] sm:$0xff]
  %vm326 = vcmask 130048
  %v328 = vsel %vm326, %v322, 0
  %v331 = vsel %vm326, %v323, 0
  %v334 = vsel %vm326, %v324, 0
  %v337 = vsel %vm326, %v325, 0
  %339 = vmatprep.subr.mxu0 0.0
  %340 = vmatpush1.msra.mxu0 %v316
  %341 = vmatprep.subr.mxu0 0.0
  %342 = vmatpush1.msra.mxu0 %v317
  %343 = vmatprep.subr.mxu0 0.0
  %344 = vmatpush1.msra.mxu0 0.0
  %345 = vmatprep.subr.mxu0 0.0
  %346 = vmatpush1.msra.mxu0 0.0
  %347 = vmatprep.subr.mxu0 0.0
  %348 = vmatpush1.msra.mxu0 0.0
  %349 = vmatprep.subr.mxu0 0.0
  %350 = vmatpush1.msra.mxu0 0.0
  %351 = vmatprep.subr.mxu0 0.0
  %352 = vmatpush1.msra.mxu0 0.0
  %353 = vmatprep.subr.mxu0 0.0
  %354 = vmatpush1.msra.mxu0 0.0
  %355 = vmatprep.subr.mxu0 0.0
  %356 = vmatpush1.msra.mxu0 0.0
  %357 = vmatprep.subr.mxu0 0.0
  %358 = vmatpush1.msra.mxu0 0.0
  %359 = vmatprep.subr.mxu0 0.0
  %360 = vmatpush1.msra.mxu0 0.0
  %361 = vmatprep.subr.mxu0 0.0
  %362 = vmatpush1.msra.mxu0 0.0
  %363 = vmatprep.subr.mxu0 0.0
  %364 = vmatpush1.msra.mxu0 0.0
  %365 = vmatprep.subr.mxu0 0.0
  %366 = vmatpush1.msra.mxu0 0.0
  %367 = vmatprep.subr.mxu0 0.0
  %368 = vmatpush1.msra.mxu0 0.0
  %369 = vmatprep.subr.mxu0 0.0
  %370 = vmatpush1.msra.mxu0 0.0
  %371 = vmatprep.subr.mxu0 0.0
  %372 = vmatpush1.msra.mxu0 0.0
  %373 = vmatprep.subr.mxu0 0.0
  %374 = vmatpush1.msra.mxu0 0.0
  %375 = vmatprep.subr.mxu0 0.0
  %376 = vmatpush1.msra.mxu0 0.0
  %377 = vmatprep.subr.mxu0 0.0
  %378 = vmatpush1.msra.mxu0 0.0
  %379 = vmatprep.subr.mxu0 0.0
  %380 = vmatpush1.msra.mxu0 0.0
  %381 = vmatprep.subr.mxu0 0.0
  %382 = vmatpush1.msra.mxu0 0.0
  %383 = vmatprep.subr.mxu0 0.0
  %384 = vmatpush1.msra.mxu0 0.0
  %385 = vmatprep.subr.mxu0 0.0
  %386 = vmatpush1.msra.mxu0 0.0
  %387 = vmatprep.subr.mxu0 0.0
  %388 = vmatpush1.msra.mxu0 0.0
  %389 = vmatprep.subr.mxu0 0.0
  %390 = vmatpush1.msra.mxu0 0.0
  %391 = vmatprep.subr.mxu0 0.0
  %392 = vmatpush1.msra.mxu0 0.0
  %393 = vmatprep.subr.mxu0 0.0
  %394 = vmatpush1.msra.mxu0 0.0
  %395 = vmatprep.subr.mxu0 0.0
  %396 = vmatpush1.msra.mxu0 0.0
  %397 = vmatprep.subr.mxu0 0.0
  %398 = vmatpush1.msra.mxu0 0.0
  %399 = vmatprep.subr.mxu0 0.0
  %400 = vmatpush1.msra.mxu0 0.0
  %401 = vmatprep.subr.mxu0 0.0
  %402 = vmatpush1.msra.mxu0 0.0
  %403 = vmatprep.mubr.f32.mxu0 0.0
  %404 = vmatmul.mubr.f32.gmra.mrb[0].mxu0 %v328
  %v405 = vpop.f32.mrb[0].mxu0
  %v406 = vadd.f32 0.0, %v405
  %v407 = vpop.f32.mrb[0].mxu0
  %408 = vmatprep.mubr.f32.mxu0 0.0
  %409 = vmatmul.mubr.f32.gmra.mrb[0].mxu0 %v331
  %v410 = vpop.f32.mrb[0].mxu0
  %v411 = vadd.f32 0.0, %v410
  %v412 = vpop.f32.mrb[0].mxu0
  %413 = vmatprep.mubr.f32.mxu0 0.0
  %414 = vmatmul.mubr.f32.gmra.mrb[0].mxu0 %v334
  %v415 = vpop.f32.mrb[0].mxu0
  %v416 = vadd.f32 0.0, %v415
  %v417 = vpop.f32.mrb[0].mxu0
  %418 = vmatprep.mubr.f32.mxu0 0.0
  %419 = vmatmul.mubr.f32.gmra.mrb[0].mxu0 %v337
  %v420 = vpop.f32.mrb[0].mxu0
  %v421 = vadd.f32 0.0, %v420
  %v422 = vpop.f32.mrb[0].mxu0
  %423 = vdwg.mxu0
  %v425 = vsel %vm326, %v318, 0
  %v428 = vsel %vm326, %v319, 0
  %v431 = vsel %vm326, %v320, 0
  %v434 = vsel %vm326, %v321, 0
  %436 = vmatprep.subr.mxu0 0.0
  %437 = vmatpush1.msra.mxu0 %v220
  %438 = vmatprep.subr.mxu0 0.0
  %439 = vmatpush1.msra.mxu0 %v221
  %440 = vmatprep.subr.mxu0 0.0
  %441 = vmatpush1.msra.mxu0 0.0
  %442 = vmatprep.subr.mxu0 0.0
  %443 = vmatpush1.msra.mxu0 0.0
  %444 = vmatprep.subr.mxu0 0.0
  %445 = vmatpush1.msra.mxu0 0.0
  %446 = vmatprep.subr.mxu0 0.0
  %447 = vmatpush1.msra.mxu0 0.0
  %448 = vmatprep.subr.mxu0 0.0
  %449 = vmatpush1.msra.mxu0 0.0
  %450 = vmatprep.subr.mxu0 0.0
  %451 = vmatpush1.msra.mxu0 0.0
  %452 = vmatprep.subr.mxu0 0.0
  %453 = vmatpush1.msra.mxu0 0.0
  %454 = vmatprep.subr.mxu0 0.0
  %455 = vmatpush1.msra.mxu0 0.0
  %456 = vmatprep.subr.mxu0 0.0
  %457 = vmatpush1.msra.mxu0 0.0
  %458 = vmatprep.subr.mxu0 0.0
  %459 = vmatpush1.msra.mxu0 0.0
  %460 = vmatprep.subr.mxu0 0.0
  %461 = vmatpush1.msra.mxu0 0.0
  %462 = vmatprep.subr.mxu0 0.0
  %463 = vmatpush1.msra.mxu0 0.0
  %464 = vmatprep.subr.mxu0 0.0
  %465 = vmatpush1.msra.mxu0 0.0
  %466 = vmatprep.subr.mxu0 0.0
  %467 = vmatpush1.msra.mxu0 0.0
  %468 = vmatprep.subr.mxu0 0.0
  %469 = vmatpush1.msra.mxu0 0.0
  %470 = vmatprep.subr.mxu0 0.0
  %471 = vmatpush1.msra.mxu0 0.0
  %472 = vmatprep.subr.mxu0 0.0
  %473 = vmatpush1.msra.mxu0 0.0
  %474 = vmatprep.subr.mxu0 0.0
  %475 = vmatpush1.msra.mxu0 0.0
  %476 = vmatprep.subr.mxu0 0.0
  %477 = vmatpush1.msra.mxu0 0.0
  %478 = vmatprep.subr.mxu0 0.0
  %479 = vmatpush1.msra.mxu0 0.0
  %480 = vmatprep.subr.mxu0 0.0
  %481 = vmatpush1.msra.mxu0 0.0
  %482 = vmatprep.subr.mxu0 0.0
  %483 = vmatpush1.msra.mxu0 0.0
  %484 = vmatprep.subr.mxu0 0.0
  %485 = vmatpush1.msra.mxu0 0.0
  %486 = vmatprep.subr.mxu0 0.0
  %487 = vmatpush1.msra.mxu0 0.0
  %488 = vmatprep.subr.mxu0 0.0
  %489 = vmatpush1.msra.mxu0 0.0
  %490 = vmatprep.subr.mxu0 0.0
  %491 = vmatpush1.msra.mxu0 0.0
  %492 = vmatprep.subr.mxu0 0.0
  %493 = vmatpush1.msra.mxu0 0.0
  %494 = vmatprep.subr.mxu0 0.0
  %495 = vmatpush1.msra.mxu0 0.0
  %496 = vmatprep.subr.mxu0 0.0
  %497 = vmatpush1.msra.mxu0 0.0
  %498 = vmatprep.subr.mxu0 0.0
  %499 = vmatpush1.msra.mxu0 0.0
  %500 = vmatprep.mubr.f32.mxu0 0.0
  %501 = vmatmul.mubr.f32.gmra.mrb[0].mxu0 %v425
  %v502 = vpop.f32.mrb[0].mxu0
  %v503 = vadd.f32 %v406, %v502
  %v504 = vpop.f32.mrb[0].mxu0
  %505 = vmatprep.mubr.f32.mxu0 0.0
  %506 = vmatmul.mubr.f32.gmra.mrb[0].mxu0 %v428
  %v507 = vpop.f32.mrb[0].mxu0
  %v508 = vadd.f32 %v411, %v507
  %v509 = vpop.f32.mrb[0].mxu0
  %510 = vmatprep.mubr.f32.mxu0 0.0
  %511 = vmatmul.mubr.f32.gmra.mrb[0].mxu0 %v431
  %v512 = vpop.f32.mrb[0].mxu0
  %v513 = vadd.f32 %v416, %v512
  %v514 = vpop.f32.mrb[0].mxu0
  %515 = vmatprep.mubr.f32.mxu0 0.0
  %516 = vmatmul.mubr.f32.gmra.mrb[0].mxu0 %v434
  %v517 = vpop.f32.mrb[0].mxu0
  %v518 = vadd.f32 %v421, %v517
  %v519 = vpop.f32.mrb[0].mxu0
  %520 = vdwg.mxu0
  %v521 = vld [vmem:[%s3 + $0x60] sm:$0x1]
  %v522 = vld [vmem:[%s3 + $0x68] sm:$0x1]
  %vm523 = vcmask 261120
  %v524 = vsel %vm523, %v503, 0.0
  %525 = vadd.xlane.f32.xlu0 %v524
  %v526 = vpop.xlane.xlu0 %525
  %v527 = vsel %vm523, %v508, 0.0
  %528 = vadd.xlane.f32.xlu0 %v527
  %v529 = vpop.xlane.xlu0 %528
  %v530 = vsel %vm523, %v513, 0.0
  %531 = vadd.xlane.f32.xlu0 %v530
  %v532 = vpop.xlane.xlu0 %531
  %v533 = vsel %vm523, %v518, 0.0
  %534 = vadd.xlane.f32.xlu0 %v533
  %v535 = vpop.xlane.xlu0 %534
  %v536 = vrcp.pop 32.0
  %v537 = vmul.f32 %v526, %v536
  %v538 = vmul.f32 %v529, %v536
  %v539 = vmul.f32 %v532, %v536
  %v540 = vmul.f32 %v535, %v536
  %v541 = vsub.f32 %v503, %v537
  %v542 = vsub.f32 %v508, %v538
  %v543 = vsub.f32 %v513, %v539
  %v544 = vsub.f32 %v518, %v540
  %v545 = vmul.f32 %v541, %v541
  %v546 = vmul.f32 %v542, %v542
  %v547 = vmul.f32 %v543, %v543
  %v548 = vmul.f32 %v544, %v544
  %v549 = vsel %vm523, %v545, 0.0
  %550 = vadd.xlane.f32.xlu0 %v549
  %v551 = vpop.xlane.xlu0 %550
  %v552 = vsel %vm523, %v546, 0.0
  %553 = vadd.xlane.f32.xlu0 %v552
  %v554 = vpop.xlane.xlu0 %553
  %v555 = vsel %vm523, %v547, 0.0
  %556 = vadd.xlane.f32.xlu0 %v555
  %v557 = vpop.xlane.xlu0 %556
  %v558 = vsel %vm523, %v548, 0.0
  %559 = vadd.xlane.f32.xlu0 %v558
  %v560 = vpop.xlane.xlu0 %559
  %v561 = vmul.f32 %v551, %v536
  %v562 = vmul.f32 %v554, %v536
  %v563 = vmul.f32 %v557, %v536
  %v564 = vmul.f32 %v560, %v536
  %v565 = vadd.f32 %v561, 1e-05
  %v566 = vadd.f32 %v562, 1e-05
  %v567 = vadd.f32 %v563, 1e-05
  %v568 = vadd.f32 %v564, 1e-05
  %v569 = vrsqrt.pop %v565
  %v570 = vrsqrt.pop %v566
  %v571 = vrsqrt.pop %v567
  %v572 = vrsqrt.pop %v568
  %v573 = vmul.f32 %v541, %v569
  %v574 = vmul.f32 %v542, %v570
  %v575 = vmul.f32 %v543, %v571
  %v576 = vmul.f32 %v544, %v572
  %v577 = vlaneseq
  %v578 = vshrl.u32 %v577, 7
  %v579 = vsub.s32 0, %v578
  %v580 = vrot.slane %v521, %v579
  %v581 = vmul.f32 %v573, %v580
  %v582 = vmul.f32 %v574, %v580
  %v583 = vmul.f32 %v575, %v580
  %v584 = vmul.f32 %v576, %v580
  %v585 = vlaneseq
  %v586 = vshrl.u32 %v585, 7
  %v587 = vsub.s32 0, %v586
  %v588 = vrot.slane %v522, %v587
  %v589 = vadd.f32 %v581, %v588
  %v590 = vadd.f32 %v582, %v588
  %v591 = vadd.f32 %v583, %v588
  %v592 = vadd.f32 %v584, %v588
  %v593 = vld [vmem:[%s3 + $0x270] sm:$0xff]
  %v594 = vld [vmem:[%s3 + $0x278] sm:$0xff]
  %v595 = vld [vmem:[%s3 + $0x280] sm:$0xff]
  %v596 = vld [vmem:[%s3 + $0x288] sm:$0xff]
  %v597 = vld [vmem:[%s4] sm:$0xff]
  %v598 = vld [vmem:[%s4 + $0x8] sm:$0xff]
  %v599 = vld [vmem:[%s4 + $0x10] sm:$0xff]
  %v600 = vld [vmem:[%s4 + $0x18] sm:$0xff]
  %v601 = vld [vmem:[%s4 + $0x20] sm:$0x1]
  %v602 = vlaneseq
  %v603 = vshrl.u32 %v602, 7
  %v604 = vsub.s32 0, %v603
  %v605 = vrot.slane %v601, %v604
  %v607 = vsel %vm523, %v589, 0
  %v610 = vsel %vm523, %v590, 0
  %v613 = vsel %vm523, %v591, 0
  %v616 = vsel %vm523, %v592, 0
  %618 = vmatprep.subr.mxu0 0.0
  %619 = vmatpush1.msra.mxu0 %v597
  %620 = vmatprep.subr.mxu0 0.0
  %621 = vmatpush1.msra.mxu0 %v598
  %622 = vmatprep.subr.mxu0 0.0
  %623 = vmatpush1.msra.mxu0 %v599
  %624 = vmatprep.subr.mxu0 0.0
  %625 = vmatpush1.msra.mxu0 %v600
  %626 = vmatprep.subr.mxu0 0.0
  %627 = vmatpush1.msra.mxu0 0.0
  %628 = vmatprep.subr.mxu0 0.0
  %629 = vmatpush1.msra.mxu0 0.0
  %630 = vmatprep.subr.mxu0 0.0
  %631 = vmatpush1.msra.mxu0 0.0
  %632 = vmatprep.subr.mxu0 0.0
  %633 = vmatpush1.msra.mxu0 0.0
  %634 = vmatprep.subr.mxu0 0.0
  %635 = vmatpush1.msra.mxu0 0.0
  %636 = vmatprep.subr.mxu0 0.0
  %637 = vmatpush1.msra.mxu0 0.0
  %638 = vmatprep.subr.mxu0 0.0
  %639 = vmatpush1.msra.mxu0 0.0
  %640 = vmatprep.subr.mxu0 0.0
  %641 = vmatpush1.msra.mxu0 0.0
  %642 = vmatprep.subr.mxu0 0.0
  %643 = vmatpush1.msra.mxu0 0.0
  %644 = vmatprep.subr.mxu0 0.0
  %645 = vmatpush1.msra.mxu0 0.0
  %646 = vmatprep.subr.mxu0 0.0
  %647 = vmatpush1.msra.mxu0 0.0
  %648 = vmatprep.subr.mxu0 0.0
  %649 = vmatpush1.msra.mxu0 0.0
  %650 = vmatprep.subr.mxu0 0.0
  %651 = vmatpush1.msra.mxu0 0.0
  %652 = vmatprep.subr.mxu0 0.0
  %653 = vmatpush1.msra.mxu0 0.0
  %654 = vmatprep.subr.mxu0 0.0
  %655 = vmatpush1.msra.mxu0 0.0
  %656 = vmatprep.subr.mxu0 0.0
  %657 = vmatpush1.msra.mxu0 0.0
  %658 = vmatprep.subr.mxu0 0.0
  %659 = vmatpush1.msra.mxu0 0.0
  %660 = vmatprep.subr.mxu0 0.0
  %661 = vmatpush1.msra.mxu0 0.0
  %662 = vmatprep.subr.mxu0 0.0
  %663 = vmatpush1.msra.mxu0 0.0
  %664 = vmatprep.subr.mxu0 0.0
  %665 = vmatpush1.msra.mxu0 0.0
  %666 = vmatprep.subr.mxu0 0.0
  %667 = vmatpush1.msra.mxu0 0.0
  %668 = vmatprep.subr.mxu0 0.0
  %669 = vmatpush1.msra.mxu0 0.0
  %670 = vmatprep.subr.mxu0 0.0
  %671 = vmatpush1.msra.mxu0 0.0
  %672 = vmatprep.subr.mxu0 0.0
  %673 = vmatpush1.msra.mxu0 0.0
  %674 = vmatprep.subr.mxu0 0.0
  %675 = vmatpush1.msra.mxu0 0.0
  %676 = vmatprep.subr.mxu0 0.0
  %677 = vmatpush1.msra.mxu0 0.0
  %678 = vmatprep.subr.mxu0 0.0
  %679 = vmatpush1.msra.mxu0 0.0
  %680 = vmatprep.subr.mxu0 0.0
  %681 = vmatpush1.msra.mxu0 0.0
  %682 = vmatprep.mubr.f32.mxu0 0.0
  %683 = vmatmul.mubr.f32.gmra.mrb[0].mxu0 %v607
  %v684 = vpop.f32.mrb[0].mxu0
  %v685 = vadd.f32 %v605, %v684
  %v686 = vpop.f32.mrb[0].mxu0
  %687 = vmatprep.mubr.f32.mxu0 0.0
  %688 = vmatmul.mubr.f32.gmra.mrb[0].mxu0 %v610
  %v689 = vpop.f32.mrb[0].mxu0
  %v690 = vadd.f32 %v605, %v689
  %v691 = vpop.f32.mrb[0].mxu0
  %692 = vmatprep.mubr.f32.mxu0 0.0
  %693 = vmatmul.mubr.f32.gmra.mrb[0].mxu0 %v613
  %v694 = vpop.f32.mrb[0].mxu0
  %v695 = vadd.f32 %v605, %v694
  %v696 = vpop.f32.mrb[0].mxu0
  %697 = vmatprep.mubr.f32.mxu0 0.0
  %698 = vmatmul.mubr.f32.gmra.mrb[0].mxu0 %v616
  %v699 = vpop.f32.mrb[0].mxu0
  %v700 = vadd.f32 %v605, %v699
  %v701 = vpop.f32.mrb[0].mxu0
  %702 = vdwg.mxu0
  %v703 = vld [vmem:[%s3 + $0x70] sm:$0xff]
  %v704 = vld [vmem:[%s3 + $0x78] sm:$0xff]
  %v705 = vld [vmem:[%s3 + $0x80] sm:$0xff]
  %v706 = vld [vmem:[%s3 + $0x88] sm:$0xff]
  %711 = vrot.lane.b32.xlu0 %v685, 96
  %v712 = vpop.permute.xlu0 %711
  %713 = vrot.lane.b32.xlu0 %v690, 96
  %v714 = vpop.permute.xlu0 %713
  %715 = vrot.lane.b32.xlu0 %v695, 96
  %v716 = vpop.permute.xlu0 %715
  %717 = vrot.lane.b32.xlu0 %v700, 96
  %v718 = vpop.permute.xlu0 %717
  %v719 = vsel %vm326, %v685, 0
  %v721 = vsel %vm326, %v690, 0
  %v723 = vsel %vm326, %v695, 0
  %v725 = vsel %vm326, %v700, 0
  %v727 = vsel %vm326, %v712, 0
  %v729 = vsel %vm326, %v714, 0
  %v731 = vsel %vm326, %v716, 0
  %v733 = vsel %vm326, %v718, 0
  %735 = vmatprep.subr.mxu0 0.0
  %736 = vmatpush1.xpose.msra.mxu0 %v727
  %737 = vmatprep.subr.mxu0 0.0
  %738 = vmatpush1.xpose.msra.mxu0 %v729
  %739 = vmatprep.subr.mxu0 0.0
  %740 = vmatpush1.xpose.msra.mxu0 %v731
  %741 = vmatprep.subr.mxu0 0.0
  %742 = vmatpush1.xpose.msra.mxu0 %v733
  %743 = vmatprep.subr.mxu0 0.0
  %744 = vmatpush1.xpose.msra.mxu0 0.0
  %745 = vmatprep.subr.mxu0 0.0
  %746 = vmatpush1.xpose.msra.mxu0 0.0
  %747 = vmatprep.subr.mxu0 0.0
  %748 = vmatpush1.xpose.msra.mxu0 0.0
  %749 = vmatprep.subr.mxu0 0.0
  %750 = vmatpush1.xpose.msra.mxu0 0.0
  %751 = vmatprep.subr.mxu0 0.0
  %752 = vmatpush1.xpose.msra.mxu0 0.0
  %753 = vmatprep.subr.mxu0 0.0
  %754 = vmatpush1.xpose.msra.mxu0 0.0
  %755 = vmatprep.subr.mxu0 0.0
  %756 = vmatpush1.xpose.msra.mxu0 0.0
  %757 = vmatprep.subr.mxu0 0.0
  %758 = vmatpush1.xpose.msra.mxu0 0.0
  %759 = vmatprep.subr.mxu0 0.0
  %760 = vmatpush1.xpose.msra.mxu0 0.0
  %761 = vmatprep.subr.mxu0 0.0
  %762 = vmatpush1.xpose.msra.mxu0 0.0
  %763 = vmatprep.subr.mxu0 0.0
  %764 = vmatpush1.xpose.msra.mxu0 0.0
  %765 = vmatprep.subr.mxu0 0.0
  %766 = vmatpush1.xpose.msra.mxu0 0.0
  %767 = vmatprep.subr.mxu0 0.0
  %768 = vmatpush1.xpose.msra.mxu0 0.0
  %769 = vmatprep.subr.mxu0 0.0
  %770 = vmatpush1.xpose.msra.mxu0 0.0
  %771 = vmatprep.subr.mxu0 0.0
  %772 = vmatpush1.xpose.msra.mxu0 0.0
  %773 = vmatprep.subr.mxu0 0.0
  %774 = vmatpush1.xpose.msra.mxu0 0.0
  %775 = vmatprep.subr.mxu0 0.0
  %776 = vmatpush1.xpose.msra.mxu0 0.0
  %777 = vmatprep.subr.mxu0 0.0
  %778 = vmatpush1.xpose.msra.mxu0 0.0
  %779 = vmatprep.subr.mxu0 0.0
  %780 = vmatpush1.xpose.msra.mxu0 0.0
  %781 = vmatprep.subr.mxu0 0.0
  %782 = vmatpush1.xpose.msra.mxu0 0.0
  %783 = vmatprep.subr.mxu0 0.0
  %784 = vmatpush1.xpose.msra.mxu0 0.0
  %785 = vmatprep.subr.mxu0 0.0
  %786 = vmatpush1.xpose.msra.mxu0 0.0
  %787 = vmatprep.subr.mxu0 0.0
  %788 = vmatpush1.xpose.msra.mxu0 0.0
  %789 = vmatprep.subr.mxu0 0.0
  %790 = vmatpush1.xpose.msra.mxu0 0.0
  %791 = vmatprep.subr.mxu0 0.0
  %792 = vmatpush1.xpose.msra.mxu0 0.0
  %793 = vmatprep.subr.mxu0 0.0
  %794 = vmatpush1.xpose.msra.mxu0 0.0
  %795 = vmatprep.subr.mxu0 0.0
  %796 = vmatpush1.xpose.msra.mxu0 0.0
  %797 = vmatprep.subr.mxu0 0.0
  %798 = vmatpush1.xpose.msra.mxu0 0.0
  %799 = vmatprep.mubr.f32.mxu0 0.0
  %800 = vmatmul.mubr.f32.gmra.mrb[0].mxu0 %v719
  %v801 = vpop.f32.mrb[0].mxu0
  %v802 = vadd.f32 0.0, %v801
  %v803 = vpop.f32.mrb[0].mxu0
  %804 = vmatprep.mubr.f32.mxu0 0.0
  %805 = vmatmul.mubr.f32.gmra.mrb[0].mxu0 %v721
  %v806 = vpop.f32.mrb[0].mxu0
  %v807 = vadd.f32 0.0, %v806
  %v808 = vpop.f32.mrb[0].mxu0
  %809 = vmatprep.mubr.f32.mxu0 0.0
  %810 = vmatmul.mubr.f32.gmra.mrb[0].mxu0 %v723
  %v811 = vpop.f32.mrb[0].mxu0
  %v812 = vadd.f32 0.0, %v811
  %v813 = vpop.f32.mrb[0].mxu0
  %814 = vmatprep.mubr.f32.mxu0 0.0
  %815 = vmatmul.mubr.f32.gmra.mrb[0].mxu0 %v725
  %v816 = vpop.f32.mrb[0].mxu0
  %v817 = vadd.f32 0.0, %v816
  %v818 = vpop.f32.mrb[0].mxu0
  %819 = vdwg.mxu0
  %v820 = vmul.f32 %v802, 0.25
  %v821 = vmul.f32 %v807, 0.25
  %v822 = vmul.f32 %v812, 0.25
  %v823 = vmul.f32 %v817, 0.25
  %v824 = vadd.f32 %v820, %v593
  %v825 = vadd.f32 %v821, %v594
  %v826 = vadd.f32 %v822, %v595
  %v827 = vadd.f32 %v823, %v596
  %v828 = vsel %vm523, %v824, -inf
  %829 = vmax.xlane.f32.xlu0 %v828
  %v830 = vpop.xlane.xlu0 %829
  %v831 = vsel %vm523, %v825, -inf
  %832 = vmax.xlane.f32.xlu0 %v831
  %v833 = vpop.xlane.xlu0 %832
  %v834 = vsel %vm523, %v826, -inf
  %835 = vmax.xlane.f32.xlu0 %v834
  %v836 = vpop.xlane.xlu0 %835
  %v837 = vsel %vm523, %v827, -inf
  %838 = vmax.xlane.f32.xlu0 %v837
  %v839 = vpop.xlane.xlu0 %838
  %v840 = vsub.f32 %v824, %v830
  %v841 = vsub.f32 %v825, %v833
  %v842 = vsub.f32 %v826, %v836
  %v843 = vsub.f32 %v827, %v839
  %v844 = vmul.f32 %v840, 1.442695
  %v845 = vpow.pop %v844
  %v846 = vmul.f32 %v841, 1.442695
  %v847 = vpow.pop %v846
  %v848 = vmul.f32 %v842, 1.442695
  %v849 = vpow.pop %v848
  %v850 = vmul.f32 %v843, 1.442695
  %v851 = vpow.pop %v850
  %v852 = vsel %vm523, %v845, 0.0
  %853 = vadd.xlane.f32.xlu0 %v852
  %v854 = vpop.xlane.xlu0 %853
  %v855 = vsel %vm523, %v847, 0.0
  %856 = vadd.xlane.f32.xlu0 %v855
  %v857 = vpop.xlane.xlu0 %856
  %v858 = vsel %vm523, %v849, 0.0
  %859 = vadd.xlane.f32.xlu0 %v858
  %v860 = vpop.xlane.xlu0 %859
  %v861 = vsel %vm523, %v851, 0.0
  %862 = vadd.xlane.f32.xlu0 %v861
  %v863 = vpop.xlane.xlu0 %862
  %v864 = vrcp.pop %v854
  %v865 = vrcp.pop %v857
  %v866 = vrcp.pop %v860
  %v867 = vrcp.pop %v863
  %v868 = vmul.f32 %v845, %v864
  %v869 = vmul.f32 %v847, %v865
  %v870 = vmul.f32 %v849, %v866
  %v871 = vmul.f32 %v851, %v867
  %872 = vrot.lane.b32.xlu0 %v685, 64
  %v873 = vpop.permute.xlu0 %872
  %874 = vrot.lane.b32.xlu0 %v690, 64
  %v875 = vpop.permute.xlu0 %874
  %876 = vrot.lane.b32.xlu0 %v695, 64
  %v877 = vpop.permute.xlu0 %876
  %878 = vrot.lane.b32.xlu0 %v700, 64
  %v879 = vpop.permute.xlu0 %878
  %v885 = vsel %vm523, %v868, 0
  %v888 = vsel %vm523, %v869, 0
  %v891 = vsel %vm523, %v870, 0
  %v894 = vsel %vm523, %v871, 0
  %896 = vmatprep.subr.mxu0 0.0
  %897 = vmatpush1.msra.mxu0 %v873
  %898 = vmatprep.subr.mxu0 0.0
  %899 = vmatpush1.msra.mxu0 %v875
  %900 = vmatprep.subr.mxu0 0.0
  %901 = vmatpush1.msra.mxu0 %v877
  %902 = vmatprep.subr.mxu0 0.0
  %903 = vmatpush1.msra.mxu0 %v879
  %904 = vmatprep.subr.mxu0 0.0
  %905 = vmatpush1.msra.mxu0 0.0
  %906 = vmatprep.subr.mxu0 0.0
  %907 = vmatpush1.msra.mxu0 0.0
  %908 = vmatprep.subr.mxu0 0.0
  %909 = vmatpush1.msra.mxu0 0.0
  %910 = vmatprep.subr.mxu0 0.0
  %911 = vmatpush1.msra.mxu0 0.0
  %912 = vmatprep.subr.mxu0 0.0
  %913 = vmatpush1.msra.mxu0 0.0
  %914 = vmatprep.subr.mxu0 0.0
  %915 = vmatpush1.msra.mxu0 0.0
  %916 = vmatprep.subr.mxu0 0.0
  %917 = vmatpush1.msra.mxu0 0.0
  %918 = vmatprep.subr.mxu0 0.0
  %919 = vmatpush1.msra.mxu0 0.0
  %920 = vmatprep.subr.mxu0 0.0
  %921 = vmatpush1.msra.mxu0 0.0
  %922 = vmatprep.subr.mxu0 0.0
  %923 = vmatpush1.msra.mxu0 0.0
  %924 = vmatprep.subr.mxu0 0.0
  %925 = vmatpush1.msra.mxu0 0.0
  %926 = vmatprep.subr.mxu0 0.0
  %927 = vmatpush1.msra.mxu0 0.0
  %928 = vmatprep.subr.mxu0 0.0
  %929 = vmatpush1.msra.mxu0 0.0
  %930 = vmatprep.subr.mxu0 0.0
  %931 = vmatpush1.msra.mxu0 0.0
  %932 = vmatprep.subr.mxu0 0.0
  %933 = vmatpush1.msra.mxu0 0.0
  %934 = vmatprep.subr.mxu0 0.0
  %935 = vmatpush1.msra.mxu0 0.0
  %936 = vmatprep.subr.mxu0 0.0
  %937 = vmatpush1.msra.mxu0 0.0
  %938 = vmatprep.subr.mxu0 0.0
  %939 = vmatpush1.msra.mxu0 0.0
  %940 = vmatprep.subr.mxu0 0.0
  %941 = vmatpush1.msra.mxu0 0.0
  %942 = vmatprep.subr.mxu0 0.0
  %943 = vmatpush1.msra.mxu0 0.0
  %944 = vmatprep.subr.mxu0 0.0
  %945 = vmatpush1.msra.mxu0 0.0
  %946 = vmatprep.subr.mxu0 0.0
  %947 = vmatpush1.msra.mxu0 0.0
  %948 = vmatprep.subr.mxu0 0.0
  %949 = vmatpush1.msra.mxu0 0.0
  %950 = vmatprep.subr.mxu0 0.0
  %951 = vmatpush1.msra.mxu0 0.0
  %952 = vmatprep.subr.mxu0 0.0
  %953 = vmatpush1.msra.mxu0 0.0
  %954 = vmatprep.subr.mxu0 0.0
  %955 = vmatpush1.msra.mxu0 0.0
  %956 = vmatprep.subr.mxu0 0.0
  %957 = vmatpush1.msra.mxu0 0.0
  %958 = vmatprep.subr.mxu0 0.0
  %959 = vmatpush1.msra.mxu0 0.0
  %960 = vmatprep.mubr.f32.mxu0 0.0
  %961 = vmatmul.mubr.f32.gmra.mrb[0].mxu0 %v885
  %v962 = vpop.f32.mrb[0].mxu0
  %v963 = vadd.f32 0.0, %v962
  %v964 = vpop.f32.mrb[0].mxu0
  %965 = vmatprep.mubr.f32.mxu0 0.0
  %966 = vmatmul.mubr.f32.gmra.mrb[0].mxu0 %v888
  %v967 = vpop.f32.mrb[0].mxu0
  %v968 = vadd.f32 0.0, %v967
  %v969 = vpop.f32.mrb[0].mxu0
  %970 = vmatprep.mubr.f32.mxu0 0.0
  %971 = vmatmul.mubr.f32.gmra.mrb[0].mxu0 %v891
  %v972 = vpop.f32.mrb[0].mxu0
  %v973 = vadd.f32 0.0, %v972
  %v974 = vpop.f32.mrb[0].mxu0
  %975 = vmatprep.mubr.f32.mxu0 0.0
  %976 = vmatmul.mubr.f32.gmra.mrb[0].mxu0 %v894
  %v977 = vpop.f32.mrb[0].mxu0
  %v978 = vadd.f32 0.0, %v977
  %v979 = vpop.f32.mrb[0].mxu0
  %980 = vdwg.mxu0
  %981 = vrot.lane.b32.xlu0 %v685, 112
  %v982 = vpop.permute.xlu0 %981
  %983 = vrot.lane.b32.xlu0 %v690, 112
  %v984 = vpop.permute.xlu0 %983
  %985 = vrot.lane.b32.xlu0 %v695, 112
  %v986 = vpop.permute.xlu0 %985
  %987 = vrot.lane.b32.xlu0 %v700, 112
  %v988 = vpop.permute.xlu0 %987
  %989 = vrot.lane.b32.xlu0 %v685, 80
  %v990 = vpop.permute.xlu0 %989
  %991 = vrot.lane.b32.xlu0 %v690, 80
  %v992 = vpop.permute.xlu0 %991
  %993 = vrot.lane.b32.xlu0 %v695, 80
  %v994 = vpop.permute.xlu0 %993
  %995 = vrot.lane.b32.xlu0 %v700, 80
  %v996 = vpop.permute.xlu0 %995
  %v997 = vsel %vm326, %v982, 0
  %v999 = vsel %vm326, %v984, 0
  %v1001 = vsel %vm326, %v986, 0
  %v1003 = vsel %vm326, %v988, 0
  %v1005 = vsel %vm326, %v990, 0
  %v1007 = vsel %vm326, %v992, 0
  %v1009 = vsel %vm326, %v994, 0
  %v1011 = vsel %vm326, %v996, 0
  %1013 = vmatprep.subr.mxu0 0.0
  %1014 = vmatpush1.xpose.msra.mxu0 %v1005
  %1015 = vmatprep.subr.mxu0 0.0
  %1016 = vmatpush1.xpose.msra.mxu0 %v1007
  %1017 = vmatprep.subr.mxu0 0.0
  %1018 = vmatpush1.xpose.msra.mxu0 %v1009
  %1019 = vmatprep.subr.mxu0 0.0
  %1020 = vmatpush1.xpose.msra.mxu0 %v1011
  %1021 = vmatprep.subr.mxu0 0.0
  %1022 = vmatpush1.xpose.msra.mxu0 0.0
  %1023 = vmatprep.subr.mxu0 0.0
  %1024 = vmatpush1.xpose.msra.mxu0 0.0
  %1025 = vmatprep.subr.mxu0 0.0
  %1026 = vmatpush1.xpose.msra.mxu0 0.0
  %1027 = vmatprep.subr.mxu0 0.0
  %1028 = vmatpush1.xpose.msra.mxu0 0.0
  %1029 = vmatprep.subr.mxu0 0.0
  %1030 = vmatpush1.xpose.msra.mxu0 0.0
  %1031 = vmatprep.subr.mxu0 0.0
  %1032 = vmatpush1.xpose.msra.mxu0 0.0
  %1033 = vmatprep.subr.mxu0 0.0
  %1034 = vmatpush1.xpose.msra.mxu0 0.0
  %1035 = vmatprep.subr.mxu0 0.0
  %1036 = vmatpush1.xpose.msra.mxu0 0.0
  %1037 = vmatprep.subr.mxu0 0.0
  %1038 = vmatpush1.xpose.msra.mxu0 0.0
  %1039 = vmatprep.subr.mxu0 0.0
  %1040 = vmatpush1.xpose.msra.mxu0 0.0
  %1041 = vmatprep.subr.mxu0 0.0
  %1042 = vmatpush1.xpose.msra.mxu0 0.0
  %1043 = vmatprep.subr.mxu0 0.0
  %1044 = vmatpush1.xpose.msra.mxu0 0.0
  %1045 = vmatprep.subr.mxu0 0.0
  %1046 = vmatpush1.xpose.msra.mxu0 0.0
  %1047 = vmatprep.subr.mxu0 0.0
  %1048 = vmatpush1.xpose.msra.mxu0 0.0
  %1049 = vmatprep.subr.mxu0 0.0
  %1050 = vmatpush1.xpose.msra.mxu0 0.0
  %1051 = vmatprep.subr.mxu0 0.0
  %1052 = vmatpush1.xpose.msra.mxu0 0.0
  %1053 = vmatprep.subr.mxu0 0.0
  %1054 = vmatpush1.xpose.msra.mxu0 0.0
  %1055 = vmatprep.subr.mxu0 0.0
  %1056 = vmatpush1.xpose.msra.mxu0 0.0
  %1057 = vmatprep.subr.mxu0 0.0
  %1058 = vmatpush1.xpose.msra.mxu0 0.0
  %1059 = vmatprep.subr.mxu0 0.0
  %1060 = vmatpush1.xpose.msra.mxu0 0.0
  %1061 = vmatprep.subr.mxu0 0.0
  %1062 = vmatpush1.xpose.msra.mxu0 0.0
  %1063 = vmatprep.subr.mxu0 0.0
  %1064 = vmatpush1.xpose.msra.mxu0 0.0
  %1065 = vmatprep.subr.mxu0 0.0
  %1066 = vmatpush1.xpose.msra.mxu0 0.0
  %1067 = vmatprep.subr.mxu0 0.0
  %1068 = vmatpush1.xpose.msra.mxu0 0.0
  %1069 = vmatprep.subr.mxu0 0.0
  %1070 = vmatpush1.xpose.msra.mxu0 0.0
  %1071 = vmatprep.subr.mxu0 0.0
  %1072 = vmatpush1.xpose.msra.mxu0 0.0
  %1073 = vmatprep.subr.mxu0 0.0
  %1074 = vmatpush1.xpose.msra.mxu0 0.0
  %1075 = vmatprep.subr.mxu0 0.0
  %1076 = vmatpush1.xpose.msra.mxu0 0.0
  %1077 = vmatprep.mubr.f32.mxu0 0.0
  %1078 = vmatmul.mubr.f32.gmra.mrb[0].mxu0 %v997
  %v1079 = vpop.f32.mrb[0].mxu0
  %v1080 = vadd.f32 0.0, %v1079
  %v1081 = vpop.f32.mrb[0].mxu0
  %1082 = vmatprep.mubr.f32.mxu0 0.0
  %1083 = vmatmul.mubr.f32.gmra.mrb[0].mxu0 %v999
  %v1084 = vpop.f32.mrb[0].mxu0
  %v1085 = vadd.f32 0.0, %v1084
  %v1086 = vpop.f32.mrb[0].mxu0
  %1087 = vmatprep.mubr.f32.mxu0 0.0
  %1088 = vmatmul.mubr.f32.gmra.mrb[0].mxu0 %v1001
  %v1089 = vpop.f32.mrb[0].mxu0
  %v1090 = vadd.f32 0.0, %v1089
  %v1091 = vpop.f32.mrb[0].mxu0
  %1092 = vmatprep.mubr.f32.mxu0 0.0
  %1093 = vmatmul.mubr.f32.gmra.mrb[0].mxu0 %v1003
  %v1094 = vpop.f32.mrb[0].mxu0
  %v1095 = vadd.f32 0.0, %v1094
  %v1096 = vpop.f32.mrb[0].mxu0
  %1097 = vdwg.mxu0
  %v1098 = vmul.f32 %v1080, 0.25
  %v1099 = vmul.f32 %v1085, 0.25
  %v1100 = vmul.f32 %v1090, 0.25
  %v1101 = vmul.f32 %v1095, 0.25
  %v1102 = vadd.f32 %v1098, %v593
  %v1103 = vadd.f32 %v1099, %v594
  %v1104 = vadd.f32 %v1100, %v595
  %v1105 = vadd.f32 %v1101, %v596
  %v1106 = vsel %vm523, %v1102, -inf
  %1107 = vmax.xlane.f32.xlu0 %v1106
  %v1108 = vpop.xlane.xlu0 %1107
  %v1109 = vsel %vm523, %v1103, -inf
  %1110 = vmax.xlane.f32.xlu0 %v1109
  %v1111 = vpop.xlane.xlu0 %1110
  %v1112 = vsel %vm523, %v1104, -inf
  %1113 = vmax.xlane.f32.xlu0 %v1112
  %v1114 = vpop.xlane.xlu0 %1113
  %v1115 = vsel %vm523, %v1105, -inf
  %1116 = vmax.xlane.f32.xlu0 %v1115
  %v1117 = vpop.xlane.xlu0 %1116
  %v1118 = vsub.f32 %v1102, %v1108
  %v1119 = vsub.f32 %v1103, %v1111
  %v1120 = vsub.f32 %v1104, %v1114
  %v1121 = vsub.f32 %v1105, %v1117
  %v1122 = vmul.f32 %v1118, 1.442695
  %v1123 = vpow.pop %v1122
  %v1124 = vmul.f32 %v1119, 1.442695
  %v1125 = vpow.pop %v1124
  %v1126 = vmul.f32 %v1120, 1.442695
  %v1127 = vpow.pop %v1126
  %v1128 = vmul.f32 %v1121, 1.442695
  %v1129 = vpow.pop %v1128
  %v1130 = vsel %vm523, %v1123, 0.0
  %1131 = vadd.xlane.f32.xlu0 %v1130
  %v1132 = vpop.xlane.xlu0 %1131
  %v1133 = vsel %vm523, %v1125, 0.0
  %1134 = vadd.xlane.f32.xlu0 %v1133
  %v1135 = vpop.xlane.xlu0 %1134
  %v1136 = vsel %vm523, %v1127, 0.0
  %1137 = vadd.xlane.f32.xlu0 %v1136
  %v1138 = vpop.xlane.xlu0 %1137
  %v1139 = vsel %vm523, %v1129, 0.0
  %1140 = vadd.xlane.f32.xlu0 %v1139
  %v1141 = vpop.xlane.xlu0 %1140
  %v1142 = vrcp.pop %v1132
  %v1143 = vrcp.pop %v1135
  %v1144 = vrcp.pop %v1138
  %v1145 = vrcp.pop %v1141
  %v1146 = vmul.f32 %v1123, %v1142
  %v1147 = vmul.f32 %v1125, %v1143
  %v1148 = vmul.f32 %v1127, %v1144
  %v1149 = vmul.f32 %v1129, %v1145
  %1150 = vrot.lane.b32.xlu0 %v685, 48
  %v1151 = vpop.permute.xlu0 %1150
  %1152 = vrot.lane.b32.xlu0 %v690, 48
  %v1153 = vpop.permute.xlu0 %1152
  %1154 = vrot.lane.b32.xlu0 %v695, 48
  %v1155 = vpop.permute.xlu0 %1154
  %1156 = vrot.lane.b32.xlu0 %v700, 48
  %v1157 = vpop.permute.xlu0 %1156
  %v1163 = vsel %vm523, %v1146, 0
  %v1166 = vsel %vm523, %v1147, 0
  %v1169 = vsel %vm523, %v1148, 0
  %v1172 = vsel %vm523, %v1149, 0
  %1174 = vmatprep.subr.mxu0 0.0
  %1175 = vmatpush1.msra.mxu0 %v1151
  %1176 = vmatprep.subr.mxu0 0.0
  %1177 = vmatpush1.msra.mxu0 %v1153
  %1178 = vmatprep.subr.mxu0 0.0
  %1179 = vmatpush1.msra.mxu0 %v1155
  %1180 = vmatprep.subr.mxu0 0.0
  %1181 = vmatpush1.msra.mxu0 %v1157
  %1182 = vmatprep.subr.mxu0 0.0
  %1183 = vmatpush1.msra.mxu0 0.0
  %1184 = vmatprep.subr.mxu0 0.0
  %1185 = vmatpush1.msra.mxu0 0.0
  %1186 = vmatprep.subr.mxu0 0.0
  %1187 = vmatpush1.msra.mxu0 0.0
  %1188 = vmatprep.subr.mxu0 0.0
  %1189 = vmatpush1.msra.mxu0 0.0
  %1190 = vmatprep.subr.mxu0 0.0
  %1191 = vmatpush1.msra.mxu0 0.0
  %1192 = vmatprep.subr.mxu0 0.0
  %1193 = vmatpush1.msra.mxu0 0.0
  %1194 = vmatprep.subr.mxu0 0.0
  %1195 = vmatpush1.msra.mxu0 0.0
  %1196 = vmatprep.subr.mxu0 0.0
  %1197 = vmatpush1.msra.mxu0 0.0
  %1198 = vmatprep.subr.mxu0 0.0
  %1199 = vmatpush1.msra.mxu0 0.0
  %1200 = vmatprep.subr.mxu0 0.0
  %1201 = vmatpush1.msra.mxu0 0.0
  %1202 = vmatprep.subr.mxu0 0.0
  %1203 = vmatpush1.msra.mxu0 0.0
  %1204 = vmatprep.subr.mxu0 0.0
  %1205 = vmatpush1.msra.mxu0 0.0
  %1206 = vmatprep.subr.mxu0 0.0
  %1207 = vmatpush1.msra.mxu0 0.0
  %1208 = vmatprep.subr.mxu0 0.0
  %1209 = vmatpush1.msra.mxu0 0.0
  %1210 = vmatprep.subr.mxu0 0.0
  %1211 = vmatpush1.msra.mxu0 0.0
  %1212 = vmatprep.subr.mxu0 0.0
  %1213 = vmatpush1.msra.mxu0 0.0
  %1214 = vmatprep.subr.mxu0 0.0
  %1215 = vmatpush1.msra.mxu0 0.0
  %1216 = vmatprep.subr.mxu0 0.0
  %1217 = vmatpush1.msra.mxu0 0.0
  %1218 = vmatprep.subr.mxu0 0.0
  %1219 = vmatpush1.msra.mxu0 0.0
  %1220 = vmatprep.subr.mxu0 0.0
  %1221 = vmatpush1.msra.mxu0 0.0
  %1222 = vmatprep.subr.mxu0 0.0
  %1223 = vmatpush1.msra.mxu0 0.0
  %1224 = vmatprep.subr.mxu0 0.0
  %1225 = vmatpush1.msra.mxu0 0.0
  %1226 = vmatprep.subr.mxu0 0.0
  %1227 = vmatpush1.msra.mxu0 0.0
  %1228 = vmatprep.subr.mxu0 0.0
  %1229 = vmatpush1.msra.mxu0 0.0
  %1230 = vmatprep.subr.mxu0 0.0
  %1231 = vmatpush1.msra.mxu0 0.0
  %1232 = vmatprep.subr.mxu0 0.0
  %1233 = vmatpush1.msra.mxu0 0.0
  %1234 = vmatprep.subr.mxu0 0.0
  %1235 = vmatpush1.msra.mxu0 0.0
  %1236 = vmatprep.subr.mxu0 0.0
  %1237 = vmatpush1.msra.mxu0 0.0
  %1238 = vmatprep.mubr.f32.mxu0 0.0
  %1239 = vmatmul.mubr.f32.gmra.mrb[0].mxu0 %v1163
  %v1240 = vpop.f32.mrb[0].mxu0
  %v1241 = vadd.f32 0.0, %v1240
  %v1242 = vpop.f32.mrb[0].mxu0
  %1243 = vmatprep.mubr.f32.mxu0 0.0
  %1244 = vmatmul.mubr.f32.gmra.mrb[0].mxu0 %v1166
  %v1245 = vpop.f32.mrb[0].mxu0
  %v1246 = vadd.f32 0.0, %v1245
  %v1247 = vpop.f32.mrb[0].mxu0
  %1248 = vmatprep.mubr.f32.mxu0 0.0
  %1249 = vmatmul.mubr.f32.gmra.mrb[0].mxu0 %v1169
  %v1250 = vpop.f32.mrb[0].mxu0
  %v1251 = vadd.f32 0.0, %v1250
  %v1252 = vpop.f32.mrb[0].mxu0
  %1253 = vmatprep.mubr.f32.mxu0 0.0
  %1254 = vmatmul.mubr.f32.gmra.mrb[0].mxu0 %v1172
  %v1255 = vpop.f32.mrb[0].mxu0
  %v1256 = vadd.f32 0.0, %v1255
  %v1257 = vpop.f32.mrb[0].mxu0
  %1258 = vdwg.mxu0
  %v1260 = vsel %vm326, %v1241, 0
  %v1263 = vsel %vm326, %v1246, 0
  %v1266 = vsel %vm326, %v1251, 0
  %v1269 = vsel %vm326, %v1256, 0
  %1271 = vmatprep.subr.mxu0 0.0
  %1272 = vmatpush1.msra.mxu0 %v705
  %1273 = vmatprep.subr.mxu0 0.0
  %1274 = vmatpush1.msra.mxu0 %v706
  %1275 = vmatprep.subr.mxu0 0.0
  %1276 = vmatpush1.msra.mxu0 0.0
  %1277 = vmatprep.subr.mxu0 0.0
  %1278 = vmatpush1.msra.mxu0 0.0
  %1279 = vmatprep.subr.mxu0 0.0
  %1280 = vmatpush1.msra.mxu0 0.0
  %1281 = vmatprep.subr.mxu0 0.0
  %1282 = vmatpush1.msra.mxu0 0.0
  %1283 = vmatprep.subr.mxu0 0.0
  %1284 = vmatpush1.msra.mxu0 0.0
  %1285 = vmatprep.subr.mxu0 0.0
  %1286 = vmatpush1.msra.mxu0 0.0
  %1287 = vmatprep.subr.mxu0 0.0
  %1288 = vmatpush1.msra.mxu0 0.0
  %1289 = vmatprep.subr.mxu0 0.0
  %1290 = vmatpush1.msra.mxu0 0.0
  %1291 = vmatprep.subr.mxu0 0.0
  %1292 = vmatpush1.msra.mxu0 0.0
  %1293 = vmatprep.subr.mxu0 0.0
  %1294 = vmatpush1.msra.mxu0 0.0
  %1295 = vmatprep.subr.mxu0 0.0
  %1296 = vmatpush1.msra.mxu0 0.0
  %1297 = vmatprep.subr.mxu0 0.0
  %1298 = vmatpush1.msra.mxu0 0.0
  %1299 = vmatprep.subr.mxu0 0.0
  %1300 = vmatpush1.msra.mxu0 0.0
  %1301 = vmatprep.subr.mxu0 0.0
  %1302 = vmatpush1.msra.mxu0 0.0
  %1303 = vmatprep.subr.mxu0 0.0
  %1304 = vmatpush1.msra.mxu0 0.0
  %1305 = vmatprep.subr.mxu0 0.0
  %1306 = vmatpush1.msra.mxu0 0.0
  %1307 = vmatprep.subr.mxu0 0.0
  %1308 = vmatpush1.msra.mxu0 0.0
  %1309 = vmatprep.subr.mxu0 0.0
  %1310 = vmatpush1.msra.mxu0 0.0
  %1311 = vmatprep.subr.mxu0 0.0
  %1312 = vmatpush1.msra.mxu0 0.0
  %1313 = vmatprep.subr.mxu0 0.0
  %1314 = vmatpush1.msra.mxu0 0.0
  %1315 = vmatprep.subr.mxu0 0.0
  %1316 = vmatpush1.msra.mxu0 0.0
  %1317 = vmatprep.subr.mxu0 0.0
  %1318 = vmatpush1.msra.mxu0 0.0
  %1319 = vmatprep.subr.mxu0 0.0
  %1320 = vmatpush1.msra.mxu0 0.0
  %1321 = vmatprep.subr.mxu0 0.0
  %1322 = vmatpush1.msra.mxu0 0.0
  %1323 = vmatprep.subr.mxu0 0.0
  %1324 = vmatpush1.msra.mxu0 0.0
  %1325 = vmatprep.subr.mxu0 0.0
  %1326 = vmatpush1.msra.mxu0 0.0
  %1327 = vmatprep.subr.mxu0 0.0
  %1328 = vmatpush1.msra.mxu0 0.0
  %1329 = vmatprep.subr.mxu0 0.0
  %1330 = vmatpush1.msra.mxu0 0.0
  %1331 = vmatprep.subr.mxu0 0.0
  %1332 = vmatpush1.msra.mxu0 0.0
  %1333 = vmatprep.subr.mxu0 0.0
  %1334 = vmatpush1.msra.mxu0 0.0
  %1335 = vmatprep.mubr.f32.mxu0 0.0
  %1336 = vmatmul.mubr.f32.gmra.mrb[0].mxu0 %v1260
  %v1337 = vpop.f32.mrb[0].mxu0
  %v1338 = vadd.f32 0.0, %v1337
  %v1339 = vpop.f32.mrb[0].mxu0
  %1340 = vmatprep.mubr.f32.mxu0 0.0
  %1341 = vmatmul.mubr.f32.gmra.mrb[0].mxu0 %v1263
  %v1342 = vpop.f32.mrb[0].mxu0
  %v1343 = vadd.f32 0.0, %v1342
  %v1344 = vpop.f32.mrb[0].mxu0
  %1345 = vmatprep.mubr.f32.mxu0 0.0
  %1346 = vmatmul.mubr.f32.gmra.mrb[0].mxu0 %v1266
  %v1347 = vpop.f32.mrb[0].mxu0
  %v1348 = vadd.f32 0.0, %v1347
  %v1349 = vpop.f32.mrb[0].mxu0
  %1350 = vmatprep.mubr.f32.mxu0 0.0
  %1351 = vmatmul.mubr.f32.gmra.mrb[0].mxu0 %v1269
  %v1352 = vpop.f32.mrb[0].mxu0
  %v1353 = vadd.f32 0.0, %v1352
  %v1354 = vpop.f32.mrb[0].mxu0
  %1355 = vdwg.mxu0
  %v1357 = vsel %vm326, %v963, 0
  %v1360 = vsel %vm326, %v968, 0
  %v1363 = vsel %vm326, %v973, 0
  %v1366 = vsel %vm326, %v978, 0
  %1368 = vmatprep.subr.mxu0 0.0
  %1369 = vmatpush1.msra.mxu0 %v703
  %1370 = vmatprep.subr.mxu0 0.0
  %1371 = vmatpush1.msra.mxu0 %v704
  %1372 = vmatprep.subr.mxu0 0.0
  %1373 = vmatpush1.msra.mxu0 0.0
  %1374 = vmatprep.subr.mxu0 0.0
  %1375 = vmatpush1.msra.mxu0 0.0
  %1376 = vmatprep.subr.mxu0 0.0
  %1377 = vmatpush1.msra.mxu0 0.0
  %1378 = vmatprep.subr.mxu0 0.0
  %1379 = vmatpush1.msra.mxu0 0.0
  %1380 = vmatprep.subr.mxu0 0.0
  %1381 = vmatpush1.msra.mxu0 0.0
  %1382 = vmatprep.subr.mxu0 0.0
  %1383 = vmatpush1.msra.mxu0 0.0
  %1384 = vmatprep.subr.mxu0 0.0
  %1385 = vmatpush1.msra.mxu0 0.0
  %1386 = vmatprep.subr.mxu0 0.0
  %1387 = vmatpush1.msra.mxu0 0.0
  %1388 = vmatprep.subr.mxu0 0.0
  %1389 = vmatpush1.msra.mxu0 0.0
  %1390 = vmatprep.subr.mxu0 0.0
  %1391 = vmatpush1.msra.mxu0 0.0
  %1392 = vmatprep.subr.mxu0 0.0
  %1393 = vmatpush1.msra.mxu0 0.0
  %1394 = vmatprep.subr.mxu0 0.0
  %1395 = vmatpush1.msra.mxu0 0.0
  %1396 = vmatprep.subr.mxu0 0.0
  %1397 = vmatpush1.msra.mxu0 0.0
  %1398 = vmatprep.subr.mxu0 0.0
  %1399 = vmatpush1.msra.mxu0 0.0
  %1400 = vmatprep.subr.mxu0 0.0
  %1401 = vmatpush1.msra.mxu0 0.0
  %1402 = vmatprep.subr.mxu0 0.0
  %1403 = vmatpush1.msra.mxu0 0.0
  %1404 = vmatprep.subr.mxu0 0.0
  %1405 = vmatpush1.msra.mxu0 0.0
  %1406 = vmatprep.subr.mxu0 0.0
  %1407 = vmatpush1.msra.mxu0 0.0
  %1408 = vmatprep.subr.mxu0 0.0
  %1409 = vmatpush1.msra.mxu0 0.0
  %1410 = vmatprep.subr.mxu0 0.0
  %1411 = vmatpush1.msra.mxu0 0.0
  %1412 = vmatprep.subr.mxu0 0.0
  %1413 = vmatpush1.msra.mxu0 0.0
  %1414 = vmatprep.subr.mxu0 0.0
  %1415 = vmatpush1.msra.mxu0 0.0
  %1416 = vmatprep.subr.mxu0 0.0
  %1417 = vmatpush1.msra.mxu0 0.0
  %1418 = vmatprep.subr.mxu0 0.0
  %1419 = vmatpush1.msra.mxu0 0.0
  %1420 = vmatprep.subr.mxu0 0.0
  %1421 = vmatpush1.msra.mxu0 0.0
  %1422 = vmatprep.subr.mxu0 0.0
  %1423 = vmatpush1.msra.mxu0 0.0
  %1424 = vmatprep.subr.mxu0 0.0
  %1425 = vmatpush1.msra.mxu0 0.0
  %1426 = vmatprep.subr.mxu0 0.0
  %1427 = vmatpush1.msra.mxu0 0.0
  %1428 = vmatprep.subr.mxu0 0.0
  %1429 = vmatpush1.msra.mxu0 0.0
  %1430 = vmatprep.subr.mxu0 0.0
  %1431 = vmatpush1.msra.mxu0 0.0
  %1432 = vmatprep.mubr.f32.mxu0 0.0
  %1433 = vmatmul.mubr.f32.gmra.mrb[0].mxu0 %v1357
  %v1434 = vpop.f32.mrb[0].mxu0
  %v1435 = vadd.f32 %v1338, %v1434
  %v1436 = vpop.f32.mrb[0].mxu0
  %1437 = vmatprep.mubr.f32.mxu0 0.0
  %1438 = vmatmul.mubr.f32.gmra.mrb[0].mxu0 %v1360
  %v1439 = vpop.f32.mrb[0].mxu0
  %v1440 = vadd.f32 %v1343, %v1439
  %v1441 = vpop.f32.mrb[0].mxu0
  %1442 = vmatprep.mubr.f32.mxu0 0.0
  %1443 = vmatmul.mubr.f32.gmra.mrb[0].mxu0 %v1363
  %v1444 = vpop.f32.mrb[0].mxu0
  %v1445 = vadd.f32 %v1348, %v1444
  %v1446 = vpop.f32.mrb[0].mxu0
  %1447 = vmatprep.mubr.f32.mxu0 0.0
  %1448 = vmatmul.mubr.f32.gmra.mrb[0].mxu0 %v1366
  %v1449 = vpop.f32.mrb[0].mxu0
  %v1450 = vadd.f32 %v1353, %v1449
  %v1451 = vpop.f32.mrb[0].mxu0
  %1452 = vdwg.mxu0
  %v1453 = vadd.f32 %v589, %v1435
  %v1454 = vadd.f32 %v590, %v1440
  %v1455 = vadd.f32 %v591, %v1445
  %v1456 = vadd.f32 %v592, %v1450
  %v1457 = vld [vmem:[%s3 + $0x90] sm:$0x1]
  %v1458 = vlaneseq
  %v1459 = vshrl.u32 %v1458, 7
  %v1460 = vsub.s32 0, %v1459
  %v1461 = vrot.slane %v1457, %v1460
  %v1462 = vadd.f32 %v1453, %v1461
  %v1463 = vadd.f32 %v1454, %v1461
  %v1464 = vadd.f32 %v1455, %v1461
  %v1465 = vadd.f32 %v1456, %v1461
  %v1466 = vld [vmem:[%s3 + $0x98] sm:$0x1]
  %v1467 = vld [vmem:[%s3 + $0xa0] sm:$0x1]
  %v1468 = vsel %vm523, %v1462, 0.0
  %1469 = vadd.xlane.f32.xlu0 %v1468
  %v1470 = vpop.xlane.xlu0 %1469
  %v1471 = vsel %vm523, %v1463, 0.0
  %1472 = vadd.xlane.f32.xlu0 %v1471
  %v1473 = vpop.xlane.xlu0 %1472
  %v1474 = vsel %vm523, %v1464, 0.0
  %1475 = vadd.xlane.f32.xlu0 %v1474
  %v1476 = vpop.xlane.xlu0 %1475
  %v1477 = vsel %vm523, %v1465, 0.0
  %1478 = vadd.xlane.f32.xlu0 %v1477
  %v1479 = vpop.xlane.xlu0 %1478
  %v1480 = vmul.f32 %v1470, %v536
  %v1481 = vmul.f32 %v1473, %v536
  %v1482 = vmul.f32 %v1476, %v536
  %v1483 = vmul.f32 %v1479, %v536
  %v1484 = vsub.f32 %v1462, %v1480
  %v1485 = vsub.f32 %v1463, %v1481
  %v1486 = vsub.f32 %v1464, %v1482
  %v1487 = vsub.f32 %v1465, %v1483
  %v1488 = vmul.f32 %v1484, %v1484
  %v1489 = vmul.f32 %v1485, %v1485
  %v1490 = vmul.f32 %v1486, %v1486
  %v1491 = vmul.f32 %v1487, %v1487
  %v1492 = vsel %vm523, %v1488, 0.0
  %1493 = vadd.xlane.f32.xlu0 %v1492
  %v1494 = vpop.xlane.xlu0 %1493
  %v1495 = vsel %vm523, %v1489, 0.0
  %1496 = vadd.xlane.f32.xlu0 %v1495
  %v1497 = vpop.xlane.xlu0 %1496
  %v1498 = vsel %vm523, %v1490, 0.0
  %1499 = vadd.xlane.f32.xlu0 %v1498
  %v1500 = vpop.xlane.xlu0 %1499
  %v1501 = vsel %vm523, %v1491, 0.0
  %1502 = vadd.xlane.f32.xlu0 %v1501
  %v1503 = vpop.xlane.xlu0 %1502
  %v1504 = vmul.f32 %v1494, %v536
  %v1505 = vmul.f32 %v1497, %v536
  %v1506 = vmul.f32 %v1500, %v536
  %v1507 = vmul.f32 %v1503, %v536
  %v1508 = vadd.f32 %v1504, 1e-05
  %v1509 = vadd.f32 %v1505, 1e-05
  %v1510 = vadd.f32 %v1506, 1e-05
  %v1511 = vadd.f32 %v1507, 1e-05
  %v1512 = vrsqrt.pop %v1508
  %v1513 = vrsqrt.pop %v1509
  %v1514 = vrsqrt.pop %v1510
  %v1515 = vrsqrt.pop %v1511
  %v1516 = vmul.f32 %v1484, %v1512
  %v1517 = vmul.f32 %v1485, %v1513
  %v1518 = vmul.f32 %v1486, %v1514
  %v1519 = vmul.f32 %v1487, %v1515
  %v1520 = vlaneseq
  %v1521 = vshrl.u32 %v1520, 7
  %v1522 = vsub.s32 0, %v1521
  %v1523 = vrot.slane %v1466, %v1522
  %v1524 = vmul.f32 %v1516, %v1523
  %v1525 = vmul.f32 %v1517, %v1523
  %v1526 = vmul.f32 %v1518, %v1523
  %v1527 = vmul.f32 %v1519, %v1523
  %v1528 = vlaneseq
  %v1529 = vshrl.u32 %v1528, 7
  %v1530 = vsub.s32 0, %v1529
  %v1531 = vrot.slane %v1467, %v1530
  %v1532 = vadd.f32 %v1524, %v1531
  %v1533 = vadd.f32 %v1525, %v1531
  %v1534 = vadd.f32 %v1526, %v1531
  %v1535 = vadd.f32 %v1527, %v1531
  %v1536 = vld [vmem:[%s4 + $0x28] sm:$0xff]
  %v1537 = vld [vmem:[%s4 + $0x30] sm:$0xff]
  %v1538 = vld [vmem:[%s4 + $0x38] sm:$0xff]
  %v1539 = vld [vmem:[%s4 + $0x40] sm:$0xff]
  %v1540 = vld [vmem:[%s4 + $0x48] sm:$0x1]
  %v1541 = vlaneseq
  %v1542 = vshrl.u32 %v1541, 7
  %v1543 = vsub.s32 0, %v1542
  %v1544 = vrot.slane %v1540, %v1543
  %v1546 = vsel %vm523, %v1532, 0
  %v1549 = vsel %vm523, %v1533, 0
  %v1552 = vsel %vm523, %v1534, 0
  %v1555 = vsel %vm523, %v1535, 0
  %1557 = vmatprep.subr.mxu0 0.0
  %1558 = vmatpush1.msra.mxu0 %v1536
  %1559 = vmatprep.subr.mxu0 0.0
  %1560 = vmatpush1.msra.mxu0 %v1537
  %1561 = vmatprep.subr.mxu0 0.0
  %1562 = vmatpush1.msra.mxu0 %v1538
  %1563 = vmatprep.subr.mxu0 0.0
  %1564 = vmatpush1.msra.mxu0 %v1539
  %1565 = vmatprep.subr.mxu0 0.0
  %1566 = vmatpush1.msra.mxu0 0.0
  %1567 = vmatprep.subr.mxu0 0.0
  %1568 = vmatpush1.msra.mxu0 0.0
  %1569 = vmatprep.subr.mxu0 0.0
  %1570 = vmatpush1.msra.mxu0 0.0
  %1571 = vmatprep.subr.mxu0 0.0
  %1572 = vmatpush1.msra.mxu0 0.0
  %1573 = vmatprep.subr.mxu0 0.0
  %1574 = vmatpush1.msra.mxu0 0.0
  %1575 = vmatprep.subr.mxu0 0.0
  %1576 = vmatpush1.msra.mxu0 0.0
  %1577 = vmatprep.subr.mxu0 0.0
  %1578 = vmatpush1.msra.mxu0 0.0
  %1579 = vmatprep.subr.mxu0 0.0
  %1580 = vmatpush1.msra.mxu0 0.0
  %1581 = vmatprep.subr.mxu0 0.0
  %1582 = vmatpush1.msra.mxu0 0.0
  %1583 = vmatprep.subr.mxu0 0.0
  %1584 = vmatpush1.msra.mxu0 0.0
  %1585 = vmatprep.subr.mxu0 0.0
  %1586 = vmatpush1.msra.mxu0 0.0
  %1587 = vmatprep.subr.mxu0 0.0
  %1588 = vmatpush1.msra.mxu0 0.0
  %1589 = vmatprep.subr.mxu0 0.0
  %1590 = vmatpush1.msra.mxu0 0.0
  %1591 = vmatprep.subr.mxu0 0.0
  %1592 = vmatpush1.msra.mxu0 0.0
  %1593 = vmatprep.subr.mxu0 0.0
  %1594 = vmatpush1.msra.mxu0 0.0
  %1595 = vmatprep.subr.mxu0 0.0
  %1596 = vmatpush1.msra.mxu0 0.0
  %1597 = vmatprep.subr.mxu0 0.0
  %1598 = vmatpush1.msra.mxu0 0.0
  %1599 = vmatprep.subr.mxu0 0.0
  %1600 = vmatpush1.msra.mxu0 0.0
  %1601 = vmatprep.subr.mxu0 0.0
  %1602 = vmatpush1.msra.mxu0 0.0
  %1603 = vmatprep.subr.mxu0 0.0
  %1604 = vmatpush1.msra.mxu0 0.0
  %1605 = vmatprep.subr.mxu0 0.0
  %1606 = vmatpush1.msra.mxu0 0.0
  %1607 = vmatprep.subr.mxu0 0.0
  %1608 = vmatpush1.msra.mxu0 0.0
  %1609 = vmatprep.subr.mxu0 0.0
  %1610 = vmatpush1.msra.mxu0 0.0
  %1611 = vmatprep.subr.mxu0 0.0
  %1612 = vmatpush1.msra.mxu0 0.0
  %1613 = vmatprep.subr.mxu0 0.0
  %1614 = vmatpush1.msra.mxu0 0.0
  %1615 = vmatprep.subr.mxu0 0.0
  %1616 = vmatpush1.msra.mxu0 0.0
  %1617 = vmatprep.subr.mxu0 0.0
  %1618 = vmatpush1.msra.mxu0 0.0
  %1619 = vmatprep.subr.mxu0 0.0
  %1620 = vmatpush1.msra.mxu0 0.0
  %1621 = vmatprep.mubr.f32.mxu0 0.0
  %1622 = vmatmul.mubr.f32.gmra.mrb[0].mxu0 %v1546
  %v1623 = vpop.f32.mrb[0].mxu0
  %v1624 = vadd.f32 %v1544, %v1623
  %v1625 = vpop.f32.mrb[0].mxu0
  %1626 = vmatprep.mubr.f32.mxu0 0.0
  %1627 = vmatmul.mubr.f32.gmra.mrb[0].mxu0 %v1549
  %v1628 = vpop.f32.mrb[0].mxu0
  %v1629 = vadd.f32 %v1544, %v1628
  %v1630 = vpop.f32.mrb[0].mxu0
  %1631 = vmatprep.mubr.f32.mxu0 0.0
  %1632 = vmatmul.mubr.f32.gmra.mrb[0].mxu0 %v1552
  %v1633 = vpop.f32.mrb[0].mxu0
  %v1634 = vadd.f32 %v1544, %v1633
  %v1635 = vpop.f32.mrb[0].mxu0
  %1636 = vmatprep.mubr.f32.mxu0 0.0
  %1637 = vmatmul.mubr.f32.gmra.mrb[0].mxu0 %v1555
  %v1638 = vpop.f32.mrb[0].mxu0
  %v1639 = vadd.f32 %v1544, %v1638
  %v1640 = vpop.f32.mrb[0].mxu0
  %1641 = vdwg.mxu0
  %v1642 = vmul.f32 %v1624, 0.5
  %v1643 = vmul.f32 %v1629, 0.5
  %v1644 = vmul.f32 %v1634, 0.5
  %v1645 = vmul.f32 %v1639, 0.5
  %v1646 = vmul.f32 %v1624, 0.70710677
  %v1647 = vmul.f32 %v1629, 0.70710677
  %v1648 = vmul.f32 %v1634, 0.70710677
  %v1649 = vmul.f32 %v1639, 0.70710677
  %v1650 = vand.u32 2147483647, %v1646
  %v1651 = vand.u32 2147483647, %v1647
  %v1652 = vand.u32 2147483647, %v1648
  %v1653 = vand.u32 2147483647, %v1649
  %v1654 = vmul.f32 %v1650, 0.3275911
  %v1655 = vmul.f32 %v1651, 0.3275911
  %v1656 = vmul.f32 %v1652, 0.3275911
  %v1657 = vmul.f32 %v1653, 0.3275911
  %v1658 = vadd.f32 %v1654, 1.0
  %v1659 = vadd.f32 %v1655, 1.0
  %v1660 = vadd.f32 %v1656, 1.0
  %v1661 = vadd.f32 %v1657, 1.0
  %v1662 = vrcp.pop %v1658
  %v1663 = vmul.f32 1.0, %v1662
  %v1664 = vrcp.pop %v1659
  %v1665 = vmul.f32 1.0, %v1664
  %v1666 = vrcp.pop %v1660
  %v1667 = vmul.f32 1.0, %v1666
  %v1668 = vrcp.pop %v1661
  %v1669 = vmul.f32 1.0, %v1668
  %v1670 = vmul.f32 %v1663, 1.0614054
  %v1671 = vmul.f32 %v1665, 1.0614054
  %v1672 = vmul.f32 %v1667, 1.0614054
  %v1673 = vmul.f32 %v1669, 1.0614054
  %v1674 = vadd.f32 %v1670, -1.4531521
  %v1675 = vadd.f32 %v1671, -1.4531521
  %v1676 = vadd.f32 %v1672, -1.4531521
  %v1677 = vadd.f32 %v1673, -1.4531521
  %v1678 = vmul.f32 %v1674, %v1663
  %v1679 = vmul.f32 %v1675, %v1665
  %v1680 = vmul.f32 %v1676, %v1667
  %v1681 = vmul.f32 %v1677, %v1669
  %v1682 = vadd.f32 %v1678, 1.4214138
  %v1683 = vadd.f32 %v1679, 1.4214138
  %v1684 = vadd.f32 %v1680, 1.4214138
  %v1685 = vadd.f32 %v1681, 1.4214138
  %v1686 = vmul.f32 %v1682, %v1663
  %v1687 = vmul.f32 %v1683, %v1665
  %v1688 = vmul.f32 %v1684, %v1667
  %v1689 = vmul.f32 %v1685, %v1669
  %v1690 = vadd.f32 %v1686, -0.28449672
  %v1691 = vadd.f32 %v1687, -0.28449672
  %v1692 = vadd.f32 %v1688, -0.28449672
  %v1693 = vadd.f32 %v1689, -0.28449672
  %v1694 = vmul.f32 %v1690, %v1663
  %v1695 = vmul.f32 %v1691, %v1665
  %v1696 = vmul.f32 %v1692, %v1667
  %v1697 = vmul.f32 %v1693, %v1669
  %v1698 = vadd.f32 %v1694, 0.2548296
  %v1699 = vadd.f32 %v1695, 0.2548296
  %v1700 = vadd.f32 %v1696, 0.2548296
  %v1701 = vadd.f32 %v1697, 0.2548296
  %v1702 = vmul.f32 %v1698, %v1663
  %v1703 = vmul.f32 %v1699, %v1665
  %v1704 = vmul.f32 %v1700, %v1667
  %v1705 = vmul.f32 %v1701, %v1669
  %v1706 = vsub.f32 0.0, %v1650
  %v1707 = vsub.f32 0.0, %v1651
  %v1708 = vsub.f32 0.0, %v1652
  %v1709 = vsub.f32 0.0, %v1653
  %v1710 = vmul.f32 %v1706, %v1650
  %v1711 = vmul.f32 %v1707, %v1651
  %v1712 = vmul.f32 %v1708, %v1652
  %v1713 = vmul.f32 %v1709, %v1653
  %v1714 = vmul.f32 %v1710, 1.442695
  %v1715 = vpow.pop %v1714
  %v1716 = vmul.f32 %v1711, 1.442695
  %v1717 = vpow.pop %v1716
  %v1718 = vmul.f32 %v1712, 1.442695
  %v1719 = vpow.pop %v1718
  %v1720 = vmul.f32 %v1713, 1.442695
  %v1721 = vpow.pop %v1720
  %v1722 = vmul.f32 %v1702, %v1715
  %v1723 = vmul.f32 %v1703, %v1717
  %v1724 = vmul.f32 %v1704, %v1719
  %v1725 = vmul.f32 %v1705, %v1721
  %v1726 = vsub.f32 1.0, %v1722
  %v1727 = vsub.f32 1.0, %v1723
  %v1728 = vsub.f32 1.0, %v1724
  %v1729 = vsub.f32 1.0, %v1725
  %vm1730 = vcmp.ge.f32.partialorder %v1646, 0.0
  %vm1731 = vcmp.ge.f32.partialorder %v1647, 0.0
  %vm1732 = vcmp.ge.f32.partialorder %v1648, 0.0
  %vm1733 = vcmp.ge.f32.partialorder %v1649, 0.0
  %v1734 = vsub.f32 0.0, %v1726
  %v1735 = vsub.f32 0.0, %v1727
  %v1736 = vsub.f32 0.0, %v1728
  %v1737 = vsub.f32 0.0, %v1729
  %v1738 = vsel %vm1730, %v1726, %v1734
  %v1739 = vsel %vm1731, %v1727, %v1735
  %v1740 = vsel %vm1732, %v1728, %v1736
  %v1741 = vsel %vm1733, %v1729, %v1737
  %v1742 = vadd.f32 %v1738, 1.0
  %v1743 = vadd.f32 %v1739, 1.0
  %v1744 = vadd.f32 %v1740, 1.0
  %v1745 = vadd.f32 %v1741, 1.0
  %v1746 = vmul.f32 %v1642, %v1742
  %v1747 = vmul.f32 %v1643, %v1743
  %v1748 = vmul.f32 %v1644, %v1744
  %v1749 = vmul.f32 %v1645, %v1745
  %v1750 = vld [vmem:[%s3 + $0xa8] sm:$0xff]
  %v1751 = vld [vmem:[%s3 + $0xb0] sm:$0xff]
  %v1752 = vld [vmem:[%s3 + $0xb8] sm:$0xff]
  %v1753 = vld [vmem:[%s3 + $0xc0] sm:$0xff]
  %v1754 = vld [vmem:[%s3 + $0xc8] sm:$0xff]
  %v1755 = vld [vmem:[%s3 + $0xd0] sm:$0xff]
  %v1756 = vld [vmem:[%s3 + $0xd8] sm:$0xff]
  %v1757 = vld [vmem:[%s3 + $0xe0] sm:$0xff]
  %v1758 = vld [vmem:[%s3 + $0xe8] sm:$0xff]
  %v1759 = vld [vmem:[%s3 + $0xf0] sm:$0xff]
  %v1760 = vld [vmem:[%s3 + $0xf8] sm:$0xff]
  %v1761 = vld [vmem:[%s3 + $0x100] sm:$0xff]
  %v1762 = vld [vmem:[%s3 + $0x108] sm:$0xff]
  %v1763 = vld [vmem:[%s3 + $0x110] sm:$0xff]
  %v1764 = vld [vmem:[%s3 + $0x118] sm:$0xff]
  %v1765 = vld [vmem:[%s3 + $0x120] sm:$0xff]
  %1766 = vmatprep.subr.mxu0 0.0
  %1767 = vmatpush1.msra.mxu0 %v1750
  %1768 = vmatprep.subr.mxu0 0.0
  %1769 = vmatpush1.msra.mxu0 %v1751
  %1770 = vmatprep.subr.mxu0 0.0
  %1771 = vmatpush1.msra.mxu0 %v1752
  %1772 = vmatprep.subr.mxu0 0.0
  %1773 = vmatpush1.msra.mxu0 %v1753
  %1774 = vmatprep.subr.mxu0 0.0
  %1775 = vmatpush1.msra.mxu0 %v1754
  %1776 = vmatprep.subr.mxu0 0.0
  %1777 = vmatpush1.msra.mxu0 %v1755
  %1778 = vmatprep.subr.mxu0 0.0
  %1779 = vmatpush1.msra.mxu0 %v1756
  %1780 = vmatprep.subr.mxu0 0.0
  %1781 = vmatpush1.msra.mxu0 %v1757
  %1782 = vmatprep.subr.mxu0 0.0
  %1783 = vmatpush1.msra.mxu0 %v1758
  %1784 = vmatprep.subr.mxu0 0.0
  %1785 = vmatpush1.msra.mxu0 %v1759
  %1786 = vmatprep.subr.mxu0 0.0
  %1787 = vmatpush1.msra.mxu0 %v1760
  %1788 = vmatprep.subr.mxu0 0.0
  %1789 = vmatpush1.msra.mxu0 %v1761
  %1790 = vmatprep.subr.mxu0 0.0
  %1791 = vmatpush1.msra.mxu0 %v1762
  %1792 = vmatprep.subr.mxu0 0.0
  %1793 = vmatpush1.msra.mxu0 %v1763
  %1794 = vmatprep.subr.mxu0 0.0
  %1795 = vmatpush1.msra.mxu0 %v1764
  %1796 = vmatprep.subr.mxu0 0.0
  %1797 = vmatpush1.msra.mxu0 %v1765
  %1798 = vmatprep.subr.mxu0 0.0
  %1799 = vmatpush1.msra.mxu0 0.0
  %1800 = vmatprep.subr.mxu0 0.0
  %1801 = vmatpush1.msra.mxu0 0.0
  %1802 = vmatprep.subr.mxu0 0.0
  %1803 = vmatpush1.msra.mxu0 0.0
  %1804 = vmatprep.subr.mxu0 0.0
  %1805 = vmatpush1.msra.mxu0 0.0
  %1806 = vmatprep.subr.mxu0 0.0
  %1807 = vmatpush1.msra.mxu0 0.0
  %1808 = vmatprep.subr.mxu0 0.0
  %1809 = vmatpush1.msra.mxu0 0.0
  %1810 = vmatprep.subr.mxu0 0.0
  %1811 = vmatpush1.msra.mxu0 0.0
  %1812 = vmatprep.subr.mxu0 0.0
  %1813 = vmatpush1.msra.mxu0 0.0
  %1814 = vmatprep.subr.mxu0 0.0
  %1815 = vmatpush1.msra.mxu0 0.0
  %1816 = vmatprep.subr.mxu0 0.0
  %1817 = vmatpush1.msra.mxu0 0.0
  %1818 = vmatprep.subr.mxu0 0.0
  %1819 = vmatpush1.msra.mxu0 0.0
  %1820 = vmatprep.subr.mxu0 0.0
  %1821 = vmatpush1.msra.mxu0 0.0
  %1822 = vmatprep.subr.mxu0 0.0
  %1823 = vmatpush1.msra.mxu0 0.0
  %1824 = vmatprep.subr.mxu0 0.0
  %1825 = vmatpush1.msra.mxu0 0.0
  %1826 = vmatprep.subr.mxu0 0.0
  %1827 = vmatpush1.msra.mxu0 0.0
  %1828 = vmatprep.subr.mxu0 0.0
  %1829 = vmatpush1.msra.mxu0 0.0
  %1830 = vmatprep.mubr.f32.mxu0 0.0
  %1831 = vmatmul.mubr.f32.gmra.mrb[0].mxu0 %v1746
  %v1832 = vpop.f32.mrb[0].mxu0
  %v1833 = vadd.f32 0.0, %v1832
  %v1834 = vpop.f32.mrb[0].mxu0
  %1835 = vmatprep.mubr.f32.mxu0 0.0
  %1836 = vmatmul.mubr.f32.gmra.mrb[0].mxu0 %v1747
  %v1837 = vpop.f32.mrb[0].mxu0
  %v1838 = vadd.f32 0.0, %v1837
  %v1839 = vpop.f32.mrb[0].mxu0
  %1840 = vmatprep.mubr.f32.mxu0 0.0
  %1841 = vmatmul.mubr.f32.gmra.mrb[0].mxu0 %v1748
  %v1842 = vpop.f32.mrb[0].mxu0
  %v1843 = vadd.f32 0.0, %v1842
  %v1844 = vpop.f32.mrb[0].mxu0
  %1845 = vmatprep.mubr.f32.mxu0 0.0
  %1846 = vmatmul.mubr.f32.gmra.mrb[0].mxu0 %v1749
  %v1847 = vpop.f32.mrb[0].mxu0
  %v1848 = vadd.f32 0.0, %v1847
  %v1849 = vpop.f32.mrb[0].mxu0
  %1850 = vdwg.mxu0
  %v1851 = vadd.f32 %v1532, %v1833
  %v1852 = vadd.f32 %v1533, %v1838
  %v1853 = vadd.f32 %v1534, %v1843
  %v1854 = vadd.f32 %v1535, %v1848
  %v1855 = vld [vmem:[%s3 + $0x128] sm:$0x1]
  %v1856 = vlaneseq
  %v1857 = vshrl.u32 %v1856, 7
  %v1858 = vsub.s32 0, %v1857
  %v1859 = vrot.slane %v1855, %v1858
  %v1860 = vadd.f32 %v1851, %v1859
  %v1861 = vadd.f32 %v1852, %v1859
  %v1862 = vadd.f32 %v1853, %v1859
  %v1863 = vadd.f32 %v1854, %v1859
  %v1864 = vld [vmem:[%s3 + $0x130] sm:$0x1]
  %v1865 = vld [vmem:[%s3 + $0x138] sm:$0x1]
  %v1866 = vsel %vm523, %v1860, 0.0
  %1867 = vadd.xlane.f32.xlu0 %v1866
  %v1868 = vpop.xlane.xlu0 %1867
  %v1869 = vsel %vm523, %v1861, 0.0
  %1870 = vadd.xlane.f32.xlu0 %v1869
  %v1871 = vpop.xlane.xlu0 %1870
  %v1872 = vsel %vm523, %v1862, 0.0
  %1873 = vadd.xlane.f32.xlu0 %v1872
  %v1874 = vpop.xlane.xlu0 %1873
  %v1875 = vsel %vm523, %v1863, 0.0
  %1876 = vadd.xlane.f32.xlu0 %v1875
  %v1877 = vpop.xlane.xlu0 %1876
  %v1878 = vmul.f32 %v1868, %v536
  %v1879 = vmul.f32 %v1871, %v536
  %v1880 = vmul.f32 %v1874, %v536
  %v1881 = vmul.f32 %v1877, %v536
  %v1882 = vsub.f32 %v1860, %v1878
  %v1883 = vsub.f32 %v1861, %v1879
  %v1884 = vsub.f32 %v1862, %v1880
  %v1885 = vsub.f32 %v1863, %v1881
  %v1886 = vmul.f32 %v1882, %v1882
  %v1887 = vmul.f32 %v1883, %v1883
  %v1888 = vmul.f32 %v1884, %v1884
  %v1889 = vmul.f32 %v1885, %v1885
  %v1890 = vsel %vm523, %v1886, 0.0
  %1891 = vadd.xlane.f32.xlu0 %v1890
  %v1892 = vpop.xlane.xlu0 %1891
  %v1893 = vsel %vm523, %v1887, 0.0
  %1894 = vadd.xlane.f32.xlu0 %v1893
  %v1895 = vpop.xlane.xlu0 %1894
  %v1896 = vsel %vm523, %v1888, 0.0
  %1897 = vadd.xlane.f32.xlu0 %v1896
  %v1898 = vpop.xlane.xlu0 %1897
  %v1899 = vsel %vm523, %v1889, 0.0
  %1900 = vadd.xlane.f32.xlu0 %v1899
  %v1901 = vpop.xlane.xlu0 %1900
  %v1902 = vmul.f32 %v1892, %v536
  %v1903 = vmul.f32 %v1895, %v536
  %v1904 = vmul.f32 %v1898, %v536
  %v1905 = vmul.f32 %v1901, %v536
  %v1906 = vadd.f32 %v1902, 1e-05
  %v1907 = vadd.f32 %v1903, 1e-05
  %v1908 = vadd.f32 %v1904, 1e-05
  %v1909 = vadd.f32 %v1905, 1e-05
  %v1910 = vrsqrt.pop %v1906
  %v1911 = vrsqrt.pop %v1907
  %v1912 = vrsqrt.pop %v1908
  %v1913 = vrsqrt.pop %v1909
  %v1914 = vmul.f32 %v1882, %v1910
  %v1915 = vmul.f32 %v1883, %v1911
  %v1916 = vmul.f32 %v1884, %v1912
  %v1917 = vmul.f32 %v1885, %v1913
  %v1918 = vlaneseq
  %v1919 = vshrl.u32 %v1918, 7
  %v1920 = vsub.s32 0, %v1919
  %v1921 = vrot.slane %v1864, %v1920
  %v1922 = vmul.f32 %v1914, %v1921
  %v1923 = vmul.f32 %v1915, %v1921
  %v1924 = vmul.f32 %v1916, %v1921
  %v1925 = vmul.f32 %v1917, %v1921
  %v1926 = vlaneseq
  %v1927 = vshrl.u32 %v1926, 7
  %v1928 = vsub.s32 0, %v1927
  %v1929 = vrot.slane %v1865, %v1928
  %v1930 = vadd.f32 %v1922, %v1929
  %v1931 = vadd.f32 %v1923, %v1929
  %v1932 = vadd.f32 %v1924, %v1929
  %v1933 = vadd.f32 %v1925, %v1929
  %v1934 = vld [vmem:[%s4 + $0x50] sm:$0xff]
  %v1935 = vld [vmem:[%s4 + $0x58] sm:$0xff]
  %v1936 = vld [vmem:[%s4 + $0x60] sm:$0xff]
  %v1937 = vld [vmem:[%s4 + $0x68] sm:$0xff]
  %v1938 = vld [vmem:[%s4 + $0x70] sm:$0x1]
  %v1939 = vlaneseq
  %v1940 = vshrl.u32 %v1939, 7
  %v1941 = vsub.s32 0, %v1940
  %v1942 = vrot.slane %v1938, %v1941
  %v1944 = vsel %vm523, %v1930, 0
  %v1947 = vsel %vm523, %v1931, 0
  %v1950 = vsel %vm523, %v1932, 0
  %v1953 = vsel %vm523, %v1933, 0
  %1955 = vmatprep.subr.mxu0 0.0
  %1956 = vmatpush1.msra.mxu0 %v1934
  %1957 = vmatprep.subr.mxu0 0.0
  %1958 = vmatpush1.msra.mxu0 %v1935
  %1959 = vmatprep.subr.mxu0 0.0
  %1960 = vmatpush1.msra.mxu0 %v1936
  %1961 = vmatprep.subr.mxu0 0.0
  %1962 = vmatpush1.msra.mxu0 %v1937
  %1963 = vmatprep.subr.mxu0 0.0
  %1964 = vmatpush1.msra.mxu0 0.0
  %1965 = vmatprep.subr.mxu0 0.0
  %1966 = vmatpush1.msra.mxu0 0.0
  %1967 = vmatprep.subr.mxu0 0.0
  %1968 = vmatpush1.msra.mxu0 0.0
  %1969 = vmatprep.subr.mxu0 0.0
  %1970 = vmatpush1.msra.mxu0 0.0
  %1971 = vmatprep.subr.mxu0 0.0
  %1972 = vmatpush1.msra.mxu0 0.0
  %1973 = vmatprep.subr.mxu0 0.0
  %1974 = vmatpush1.msra.mxu0 0.0
  %1975 = vmatprep.subr.mxu0 0.0
  %1976 = vmatpush1.msra.mxu0 0.0
  %1977 = vmatprep.subr.mxu0 0.0
  %1978 = vmatpush1.msra.mxu0 0.0
  %1979 = vmatprep.subr.mxu0 0.0
  %1980 = vmatpush1.msra.mxu0 0.0
  %1981 = vmatprep.subr.mxu0 0.0
  %1982 = vmatpush1.msra.mxu0 0.0
  %1983 = vmatprep.subr.mxu0 0.0
  %1984 = vmatpush1.msra.mxu0 0.0
  %1985 = vmatprep.subr.mxu0 0.0
  %1986 = vmatpush1.msra.mxu0 0.0
  %1987 = vmatprep.subr.mxu0 0.0
  %1988 = vmatpush1.msra.mxu0 0.0
  %1989 = vmatprep.subr.mxu0 0.0
  %1990 = vmatpush1.msra.mxu0 0.0
  %1991 = vmatprep.subr.mxu0 0.0
  %1992 = vmatpush1.msra.mxu0 0.0
  %1993 = vmatprep.subr.mxu0 0.0
  %1994 = vmatpush1.msra.mxu0 0.0
  %1995 = vmatprep.subr.mxu0 0.0
  %1996 = vmatpush1.msra.mxu0 0.0
  %1997 = vmatprep.subr.mxu0 0.0
  %1998 = vmatpush1.msra.mxu0 0.0
  %1999 = vmatprep.subr.mxu0 0.0
  %2000 = vmatpush1.msra.mxu0 0.0
  %2001 = vmatprep.subr.mxu0 0.0
  %2002 = vmatpush1.msra.mxu0 0.0
  %2003 = vmatprep.subr.mxu0 0.0
  %2004 = vmatpush1.msra.mxu0 0.0
  %2005 = vmatprep.subr.mxu0 0.0
  %2006 = vmatpush1.msra.mxu0 0.0
  %2007 = vmatprep.subr.mxu0 0.0
  %2008 = vmatpush1.msra.mxu0 0.0
  %2009 = vmatprep.subr.mxu0 0.0
  %2010 = vmatpush1.msra.mxu0 0.0
  %2011 = vmatprep.subr.mxu0 0.0
  %2012 = vmatpush1.msra.mxu0 0.0
  %2013 = vmatprep.subr.mxu0 0.0
  %2014 = vmatpush1.msra.mxu0 0.0
  %2015 = vmatprep.subr.mxu0 0.0
  %2016 = vmatpush1.msra.mxu0 0.0
  %2017 = vmatprep.subr.mxu0 0.0
  %2018 = vmatpush1.msra.mxu0 0.0
  %2019 = vmatprep.mubr.f32.mxu0 0.0
  %2020 = vmatmul.mubr.f32.gmra.mrb[0].mxu0 %v1944
  %v2021 = vpop.f32.mrb[0].mxu0
  %v2022 = vadd.f32 %v1942, %v2021
  %v2023 = vpop.f32.mrb[0].mxu0
  %2024 = vmatprep.mubr.f32.mxu0 0.0
  %2025 = vmatmul.mubr.f32.gmra.mrb[0].mxu0 %v1947
  %v2026 = vpop.f32.mrb[0].mxu0
  %v2027 = vadd.f32 %v1942, %v2026
  %v2028 = vpop.f32.mrb[0].mxu0
  %2029 = vmatprep.mubr.f32.mxu0 0.0
  %2030 = vmatmul.mubr.f32.gmra.mrb[0].mxu0 %v1950
  %v2031 = vpop.f32.mrb[0].mxu0
  %v2032 = vadd.f32 %v1942, %v2031
  %v2033 = vpop.f32.mrb[0].mxu0
  %2034 = vmatprep.mubr.f32.mxu0 0.0
  %2035 = vmatmul.mubr.f32.gmra.mrb[0].mxu0 %v1953
  %v2036 = vpop.f32.mrb[0].mxu0
  %v2037 = vadd.f32 %v1942, %v2036
  %v2038 = vpop.f32.mrb[0].mxu0
  %2039 = vdwg.mxu0
  %v2040 = vld [vmem:[%s3 + $0x140] sm:$0xff]
  %v2041 = vld [vmem:[%s3 + $0x148] sm:$0xff]
  %v2042 = vld [vmem:[%s3 + $0x150] sm:$0xff]
  %v2043 = vld [vmem:[%s3 + $0x158] sm:$0xff]
  %2048 = vrot.lane.b32.xlu0 %v2022, 96
  %v2049 = vpop.permute.xlu0 %2048
  %2050 = vrot.lane.b32.xlu0 %v2027, 96
  %v2051 = vpop.permute.xlu0 %2050
  %2052 = vrot.lane.b32.xlu0 %v2032, 96
  %v2053 = vpop.permute.xlu0 %2052
  %2054 = vrot.lane.b32.xlu0 %v2037, 96
  %v2055 = vpop.permute.xlu0 %2054
  %v2056 = vsel %vm326, %v2022, 0
  %v2058 = vsel %vm326, %v2027, 0
  %v2060 = vsel %vm326, %v2032, 0
  %v2062 = vsel %vm326, %v2037, 0
  %v2064 = vsel %vm326, %v2049, 0
  %v2066 = vsel %vm326, %v2051, 0
  %v2068 = vsel %vm326, %v2053, 0
  %v2070 = vsel %vm326, %v2055, 0
  %2072 = vmatprep.subr.mxu0 0.0
  %2073 = vmatpush1.xpose.msra.mxu0 %v2064
  %2074 = vmatprep.subr.mxu0 0.0
  %2075 = vmatpush1.xpose.msra.mxu0 %v2066
  %2076 = vmatprep.subr.mxu0 0.0
  %2077 = vmatpush1.xpose.msra.mxu0 %v2068
  %2078 = vmatprep.subr.mxu0 0.0
  %2079 = vmatpush1.xpose.msra.mxu0 %v2070
  %2080 = vmatprep.subr.mxu0 0.0
  %2081 = vmatpush1.xpose.msra.mxu0 0.0
  %2082 = vmatprep.subr.mxu0 0.0
  %2083 = vmatpush1.xpose.msra.mxu0 0.0
  %2084 = vmatprep.subr.mxu0 0.0
  %2085 = vmatpush1.xpose.msra.mxu0 0.0
  %2086 = vmatprep.subr.mxu0 0.0
  %2087 = vmatpush1.xpose.msra.mxu0 0.0
  %2088 = vmatprep.subr.mxu0 0.0
  %2089 = vmatpush1.xpose.msra.mxu0 0.0
  %2090 = vmatprep.subr.mxu0 0.0
  %2091 = vmatpush1.xpose.msra.mxu0 0.0
  %2092 = vmatprep.subr.mxu0 0.0
  %2093 = vmatpush1.xpose.msra.mxu0 0.0
  %2094 = vmatprep.subr.mxu0 0.0
  %2095 = vmatpush1.xpose.msra.mxu0 0.0
  %2096 = vmatprep.subr.mxu0 0.0
  %2097 = vmatpush1.xpose.msra.mxu0 0.0
  %2098 = vmatprep.subr.mxu0 0.0
  %2099 = vmatpush1.xpose.msra.mxu0 0.0
  %2100 = vmatprep.subr.mxu0 0.0
  %2101 = vmatpush1.xpose.msra.mxu0 0.0
  %2102 = vmatprep.subr.mxu0 0.0
  %2103 = vmatpush1.xpose.msra.mxu0 0.0
  %2104 = vmatprep.subr.mxu0 0.0
  %2105 = vmatpush1.xpose.msra.mxu0 0.0
  %2106 = vmatprep.subr.mxu0 0.0
  %2107 = vmatpush1.xpose.msra.mxu0 0.0
  %2108 = vmatprep.subr.mxu0 0.0
  %2109 = vmatpush1.xpose.msra.mxu0 0.0
  %2110 = vmatprep.subr.mxu0 0.0
  %2111 = vmatpush1.xpose.msra.mxu0 0.0
  %2112 = vmatprep.subr.mxu0 0.0
  %2113 = vmatpush1.xpose.msra.mxu0 0.0
  %2114 = vmatprep.subr.mxu0 0.0
  %2115 = vmatpush1.xpose.msra.mxu0 0.0
  %2116 = vmatprep.subr.mxu0 0.0
  %2117 = vmatpush1.xpose.msra.mxu0 0.0
  %2118 = vmatprep.subr.mxu0 0.0
  %2119 = vmatpush1.xpose.msra.mxu0 0.0
  %2120 = vmatprep.subr.mxu0 0.0
  %2121 = vmatpush1.xpose.msra.mxu0 0.0
  %2122 = vmatprep.subr.mxu0 0.0
  %2123 = vmatpush1.xpose.msra.mxu0 0.0
  %2124 = vmatprep.subr.mxu0 0.0
  %2125 = vmatpush1.xpose.msra.mxu0 0.0
  %2126 = vmatprep.subr.mxu0 0.0
  %2127 = vmatpush1.xpose.msra.mxu0 0.0
  %2128 = vmatprep.subr.mxu0 0.0
  %2129 = vmatpush1.xpose.msra.mxu0 0.0
  %2130 = vmatprep.subr.mxu0 0.0
  %2131 = vmatpush1.xpose.msra.mxu0 0.0
  %2132 = vmatprep.subr.mxu0 0.0
  %2133 = vmatpush1.xpose.msra.mxu0 0.0
  %2134 = vmatprep.subr.mxu0 0.0
  %2135 = vmatpush1.xpose.msra.mxu0 0.0
  %2136 = vmatprep.mubr.f32.mxu0 0.0
  %2137 = vmatmul.mubr.f32.gmra.mrb[0].mxu0 %v2056
  %v2138 = vpop.f32.mrb[0].mxu0
  %v2139 = vadd.f32 0.0, %v2138
  %v2140 = vpop.f32.mrb[0].mxu0
  %2141 = vmatprep.mubr.f32.mxu0 0.0
  %2142 = vmatmul.mubr.f32.gmra.mrb[0].mxu0 %v2058
  %v2143 = vpop.f32.mrb[0].mxu0
  %v2144 = vadd.f32 0.0, %v2143
  %v2145 = vpop.f32.mrb[0].mxu0
  %2146 = vmatprep.mubr.f32.mxu0 0.0
  %2147 = vmatmul.mubr.f32.gmra.mrb[0].mxu0 %v2060
  %v2148 = vpop.f32.mrb[0].mxu0
  %v2149 = vadd.f32 0.0, %v2148
  %v2150 = vpop.f32.mrb[0].mxu0
  %2151 = vmatprep.mubr.f32.mxu0 0.0
  %2152 = vmatmul.mubr.f32.gmra.mrb[0].mxu0 %v2062
  %v2153 = vpop.f32.mrb[0].mxu0
  %v2154 = vadd.f32 0.0, %v2153
  %v2155 = vpop.f32.mrb[0].mxu0
  %2156 = vdwg.mxu0
  %v2157 = vmul.f32 %v2139, 0.25
  %v2158 = vmul.f32 %v2144, 0.25
  %v2159 = vmul.f32 %v2149, 0.25
  %v2160 = vmul.f32 %v2154, 0.25
  %v2161 = vadd.f32 %v2157, %v593
  %v2162 = vadd.f32 %v2158, %v594
  %v2163 = vadd.f32 %v2159, %v595
  %v2164 = vadd.f32 %v2160, %v596
  %v2165 = vsel %vm523, %v2161, -inf
  %2166 = vmax.xlane.f32.xlu0 %v2165
  %v2167 = vpop.xlane.xlu0 %2166
  %v2168 = vsel %vm523, %v2162, -inf
  %2169 = vmax.xlane.f32.xlu0 %v2168
  %v2170 = vpop.xlane.xlu0 %2169
  %v2171 = vsel %vm523, %v2163, -inf
  %2172 = vmax.xlane.f32.xlu0 %v2171
  %v2173 = vpop.xlane.xlu0 %2172
  %v2174 = vsel %vm523, %v2164, -inf
  %2175 = vmax.xlane.f32.xlu0 %v2174
  %v2176 = vpop.xlane.xlu0 %2175
  %v2177 = vsub.f32 %v2161, %v2167
  %v2178 = vsub.f32 %v2162, %v2170
  %v2179 = vsub.f32 %v2163, %v2173
  %v2180 = vsub.f32 %v2164, %v2176
  %v2181 = vmul.f32 %v2177, 1.442695
  %v2182 = vpow.pop %v2181
  %v2183 = vmul.f32 %v2178, 1.442695
  %v2184 = vpow.pop %v2183
  %v2185 = vmul.f32 %v2179, 1.442695
  %v2186 = vpow.pop %v2185
  %v2187 = vmul.f32 %v2180, 1.442695
  %v2188 = vpow.pop %v2187
  %v2189 = vsel %vm523, %v2182, 0.0
  %2190 = vadd.xlane.f32.xlu0 %v2189
  %v2191 = vpop.xlane.xlu0 %2190
  %v2192 = vsel %vm523, %v2184, 0.0
  %2193 = vadd.xlane.f32.xlu0 %v2192
  %v2194 = vpop.xlane.xlu0 %2193
  %v2195 = vsel %vm523, %v2186, 0.0
  %2196 = vadd.xlane.f32.xlu0 %v2195
  %v2197 = vpop.xlane.xlu0 %2196
  %v2198 = vsel %vm523, %v2188, 0.0
  %2199 = vadd.xlane.f32.xlu0 %v2198
  %v2200 = vpop.xlane.xlu0 %2199
  %v2201 = vrcp.pop %v2191
  %v2202 = vrcp.pop %v2194
  %v2203 = vrcp.pop %v2197
  %v2204 = vrcp.pop %v2200
  %v2205 = vmul.f32 %v2182, %v2201
  %v2206 = vmul.f32 %v2184, %v2202
  %v2207 = vmul.f32 %v2186, %v2203
  %v2208 = vmul.f32 %v2188, %v2204
  %2209 = vrot.lane.b32.xlu0 %v2022, 64
  %v2210 = vpop.permute.xlu0 %2209
  %2211 = vrot.lane.b32.xlu0 %v2027, 64
  %v2212 = vpop.permute.xlu0 %2211
  %2213 = vrot.lane.b32.xlu0 %v2032, 64
  %v2214 = vpop.permute.xlu0 %2213
  %2215 = vrot.lane.b32.xlu0 %v2037, 64
  %v2216 = vpop.permute.xlu0 %2215
  %v2222 = vsel %vm523, %v2205, 0
  %v2225 = vsel %vm523, %v2206, 0
  %v2228 = vsel %vm523, %v2207, 0
  %v2231 = vsel %vm523, %v2208, 0
  %2233 = vmatprep.subr.mxu0 0.0
  %2234 = vmatpush1.msra.mxu0 %v2210
  %2235 = vmatprep.subr.mxu0 0.0
  %2236 = vmatpush1.msra.mxu0 %v2212
  %2237 = vmatprep.subr.mxu0 0.0
  %2238 = vmatpush1.msra.mxu0 %v2214
  %2239 = vmatprep.subr.mxu0 0.0
  %2240 = vmatpush1.msra.mxu0 %v2216
  %2241 = vmatprep.subr.mxu0 0.0
  %2242 = vmatpush1.msra.mxu0 0.0
  %2243 = vmatprep.subr.mxu0 0.0
  %2244 = vmatpush1.msra.mxu0 0.0
  %2245 = vmatprep.subr.mxu0 0.0
  %2246 = vmatpush1.msra.mxu0 0.0
  %2247 = vmatprep.subr.mxu0 0.0
  %2248 = vmatpush1.msra.mxu0 0.0
  %2249 = vmatprep.subr.mxu0 0.0
  %2250 = vmatpush1.msra.mxu0 0.0
  %2251 = vmatprep.subr.mxu0 0.0
  %2252 = vmatpush1.msra.mxu0 0.0
  %2253 = vmatprep.subr.mxu0 0.0
  %2254 = vmatpush1.msra.mxu0 0.0
  %2255 = vmatprep.subr.mxu0 0.0
  %2256 = vmatpush1.msra.mxu0 0.0
  %2257 = vmatprep.subr.mxu0 0.0
  %2258 = vmatpush1.msra.mxu0 0.0
  %2259 = vmatprep.subr.mxu0 0.0
  %2260 = vmatpush1.msra.mxu0 0.0
  %2261 = vmatprep.subr.mxu0 0.0
  %2262 = vmatpush1.msra.mxu0 0.0
  %2263 = vmatprep.subr.mxu0 0.0
  %2264 = vmatpush1.msra.mxu0 0.0
  %2265 = vmatprep.subr.mxu0 0.0
  %2266 = vmatpush1.msra.mxu0 0.0
  %2267 = vmatprep.subr.mxu0 0.0
  %2268 = vmatpush1.msra.mxu0 0.0
  %2269 = vmatprep.subr.mxu0 0.0
  %2270 = vmatpush1.msra.mxu0 0.0
  %2271 = vmatprep.subr.mxu0 0.0
  %2272 = vmatpush1.msra.mxu0 0.0
  %2273 = vmatprep.subr.mxu0 0.0
  %2274 = vmatpush1.msra.mxu0 0.0
  %2275 = vmatprep.subr.mxu0 0.0
  %2276 = vmatpush1.msra.mxu0 0.0
  %2277 = vmatprep.subr.mxu0 0.0
  %2278 = vmatpush1.msra.mxu0 0.0
  %2279 = vmatprep.subr.mxu0 0.0
  %2280 = vmatpush1.msra.mxu0 0.0
  %2281 = vmatprep.subr.mxu0 0.0
  %2282 = vmatpush1.msra.mxu0 0.0
  %2283 = vmatprep.subr.mxu0 0.0
  %2284 = vmatpush1.msra.mxu0 0.0
  %2285 = vmatprep.subr.mxu0 0.0
  %2286 = vmatpush1.msra.mxu0 0.0
  %2287 = vmatprep.subr.mxu0 0.0
  %2288 = vmatpush1.msra.mxu0 0.0
  %2289 = vmatprep.subr.mxu0 0.0
  %2290 = vmatpush1.msra.mxu0 0.0
  %2291 = vmatprep.subr.mxu0 0.0
  %2292 = vmatpush1.msra.mxu0 0.0
  %2293 = vmatprep.subr.mxu0 0.0
  %2294 = vmatpush1.msra.mxu0 0.0
  %2295 = vmatprep.subr.mxu0 0.0
  %2296 = vmatpush1.msra.mxu0 0.0
  %2297 = vmatprep.mubr.f32.mxu0 0.0
  %2298 = vmatmul.mubr.f32.gmra.mrb[0].mxu0 %v2222
  %v2299 = vpop.f32.mrb[0].mxu0
  %v2300 = vadd.f32 0.0, %v2299
  %v2301 = vpop.f32.mrb[0].mxu0
  %2302 = vmatprep.mubr.f32.mxu0 0.0
  %2303 = vmatmul.mubr.f32.gmra.mrb[0].mxu0 %v2225
  %v2304 = vpop.f32.mrb[0].mxu0
  %v2305 = vadd.f32 0.0, %v2304
  %v2306 = vpop.f32.mrb[0].mxu0
  %2307 = vmatprep.mubr.f32.mxu0 0.0
  %2308 = vmatmul.mubr.f32.gmra.mrb[0].mxu0 %v2228
  %v2309 = vpop.f32.mrb[0].mxu0
  %v2310 = vadd.f32 0.0, %v2309
  %v2311 = vpop.f32.mrb[0].mxu0
  %2312 = vmatprep.mubr.f32.mxu0 0.0
  %2313 = vmatmul.mubr.f32.gmra.mrb[0].mxu0 %v2231
  %v2314 = vpop.f32.mrb[0].mxu0
  %v2315 = vadd.f32 0.0, %v2314
  %v2316 = vpop.f32.mrb[0].mxu0
  %2317 = vdwg.mxu0
  %2318 = vrot.lane.b32.xlu0 %v2022, 112
  %v2319 = vpop.permute.xlu0 %2318
  %2320 = vrot.lane.b32.xlu0 %v2027, 112
  %v2321 = vpop.permute.xlu0 %2320
  %2322 = vrot.lane.b32.xlu0 %v2032, 112
  %v2323 = vpop.permute.xlu0 %2322
  %2324 = vrot.lane.b32.xlu0 %v2037, 112
  %v2325 = vpop.permute.xlu0 %2324
  %2326 = vrot.lane.b32.xlu0 %v2022, 80
  %v2327 = vpop.permute.xlu0 %2326
  %2328 = vrot.lane.b32.xlu0 %v2027, 80
  %v2329 = vpop.permute.xlu0 %2328
  %2330 = vrot.lane.b32.xlu0 %v2032, 80
  %v2331 = vpop.permute.xlu0 %2330
  %2332 = vrot.lane.b32.xlu0 %v2037, 80
  %v2333 = vpop.permute.xlu0 %2332
  %v2334 = vsel %vm326, %v2319, 0
  %v2336 = vsel %vm326, %v2321, 0
  %v2338 = vsel %vm326, %v2323, 0
  %v2340 = vsel %vm326, %v2325, 0
  %v2342 = vsel %vm326, %v2327, 0
  %v2344 = vsel %vm326, %v2329, 0
  %v2346 = vsel %vm326, %v2331, 0
  %v2348 = vsel %vm326, %v2333, 0
  %2350 = vmatprep.subr.mxu0 0.0
  %2351 = vmatpush1.xpose.msra.mxu0 %v2342
  %2352 = vmatprep.subr.mxu0 0.0
  %2353 = vmatpush1.xpose.msra.mxu0 %v2344
  %2354 = vmatprep.subr.mxu0 0.0
  %2355 = vmatpush1.xpose.msra.mxu0 %v2346
  %2356 = vmatprep.subr.mxu0 0.0
  %2357 = vmatpush1.xpose.msra.mxu0 %v2348
  %2358 = vmatprep.subr.mxu0 0.0
  %2359 = vmatpush1.xpose.msra.mxu0 0.0
  %2360 = vmatprep.subr.mxu0 0.0
  %2361 = vmatpush1.xpose.msra.mxu0 0.0
  %2362 = vmatprep.subr.mxu0 0.0
  %2363 = vmatpush1.xpose.msra.mxu0 0.0
  %2364 = vmatprep.subr.mxu0 0.0
  %2365 = vmatpush1.xpose.msra.mxu0 0.0
  %2366 = vmatprep.subr.mxu0 0.0
  %2367 = vmatpush1.xpose.msra.mxu0 0.0
  %2368 = vmatprep.subr.mxu0 0.0
  %2369 = vmatpush1.xpose.msra.mxu0 0.0
  %2370 = vmatprep.subr.mxu0 0.0
  %2371 = vmatpush1.xpose.msra.mxu0 0.0
  %2372 = vmatprep.subr.mxu0 0.0
  %2373 = vmatpush1.xpose.msra.mxu0 0.0
  %2374 = vmatprep.subr.mxu0 0.0
  %2375 = vmatpush1.xpose.msra.mxu0 0.0
  %2376 = vmatprep.subr.mxu0 0.0
  %2377 = vmatpush1.xpose.msra.mxu0 0.0
  %2378 = vmatprep.subr.mxu0 0.0
  %2379 = vmatpush1.xpose.msra.mxu0 0.0
  %2380 = vmatprep.subr.mxu0 0.0
  %2381 = vmatpush1.xpose.msra.mxu0 0.0
  %2382 = vmatprep.subr.mxu0 0.0
  %2383 = vmatpush1.xpose.msra.mxu0 0.0
  %2384 = vmatprep.subr.mxu0 0.0
  %2385 = vmatpush1.xpose.msra.mxu0 0.0
  %2386 = vmatprep.subr.mxu0 0.0
  %2387 = vmatpush1.xpose.msra.mxu0 0.0
  %2388 = vmatprep.subr.mxu0 0.0
  %2389 = vmatpush1.xpose.msra.mxu0 0.0
  %2390 = vmatprep.subr.mxu0 0.0
  %2391 = vmatpush1.xpose.msra.mxu0 0.0
  %2392 = vmatprep.subr.mxu0 0.0
  %2393 = vmatpush1.xpose.msra.mxu0 0.0
  %2394 = vmatprep.subr.mxu0 0.0
  %2395 = vmatpush1.xpose.msra.mxu0 0.0
  %2396 = vmatprep.subr.mxu0 0.0
  %2397 = vmatpush1.xpose.msra.mxu0 0.0
  %2398 = vmatprep.subr.mxu0 0.0
  %2399 = vmatpush1.xpose.msra.mxu0 0.0
  %2400 = vmatprep.subr.mxu0 0.0
  %2401 = vmatpush1.xpose.msra.mxu0 0.0
  %2402 = vmatprep.subr.mxu0 0.0
  %2403 = vmatpush1.xpose.msra.mxu0 0.0
  %2404 = vmatprep.subr.mxu0 0.0
  %2405 = vmatpush1.xpose.msra.mxu0 0.0
  %2406 = vmatprep.subr.mxu0 0.0
  %2407 = vmatpush1.xpose.msra.mxu0 0.0
  %2408 = vmatprep.subr.mxu0 0.0
  %2409 = vmatpush1.xpose.msra.mxu0 0.0
  %2410 = vmatprep.subr.mxu0 0.0
  %2411 = vmatpush1.xpose.msra.mxu0 0.0
  %2412 = vmatprep.subr.mxu0 0.0
  %2413 = vmatpush1.xpose.msra.mxu0 0.0
  %2414 = vmatprep.mubr.f32.mxu0 0.0
  %2415 = vmatmul.mubr.f32.gmra.mrb[0].mxu0 %v2334
  %v2416 = vpop.f32.mrb[0].mxu0
  %v2417 = vadd.f32 0.0, %v2416
  %v2418 = vpop.f32.mrb[0].mxu0
  %2419 = vmatprep.mubr.f32.mxu0 0.0
  %2420 = vmatmul.mubr.f32.gmra.mrb[0].mxu0 %v2336
  %v2421 = vpop.f32.mrb[0].mxu0
  %v2422 = vadd.f32 0.0, %v2421
  %v2423 = vpop.f32.mrb[0].mxu0
  %2424 = vmatprep.mubr.f32.mxu0 0.0
  %2425 = vmatmul.mubr.f32.gmra.mrb[0].mxu0 %v2338
  %v2426 = vpop.f32.mrb[0].mxu0
  %v2427 = vadd.f32 0.0, %v2426
  %v2428 = vpop.f32.mrb[0].mxu0
  %2429 = vmatprep.mubr.f32.mxu0 0.0
  %2430 = vmatmul.mubr.f32.gmra.mrb[0].mxu0 %v2340
  %v2431 = vpop.f32.mrb[0].mxu0
  %v2432 = vadd.f32 0.0, %v2431
  %v2433 = vpop.f32.mrb[0].mxu0
  %2434 = vdwg.mxu0
  %v2435 = vmul.f32 %v2417, 0.25
  %v2436 = vmul.f32 %v2422, 0.25
  %v2437 = vmul.f32 %v2427, 0.25
  %v2438 = vmul.f32 %v2432, 0.25
  %v2439 = vadd.f32 %v2435, %v593
  %v2440 = vadd.f32 %v2436, %v594
  %v2441 = vadd.f32 %v2437, %v595
  %v2442 = vadd.f32 %v2438, %v596
  %v2443 = vsel %vm523, %v2439, -inf
  %2444 = vmax.xlane.f32.xlu0 %v2443
  %v2445 = vpop.xlane.xlu0 %2444
  %v2446 = vsel %vm523, %v2440, -inf
  %2447 = vmax.xlane.f32.xlu0 %v2446
  %v2448 = vpop.xlane.xlu0 %2447
  %v2449 = vsel %vm523, %v2441, -inf
  %2450 = vmax.xlane.f32.xlu0 %v2449
  %v2451 = vpop.xlane.xlu0 %2450
  %v2452 = vsel %vm523, %v2442, -inf
  %2453 = vmax.xlane.f32.xlu0 %v2452
  %v2454 = vpop.xlane.xlu0 %2453
  %v2455 = vsub.f32 %v2439, %v2445
  %v2456 = vsub.f32 %v2440, %v2448
  %v2457 = vsub.f32 %v2441, %v2451
  %v2458 = vsub.f32 %v2442, %v2454
  %v2459 = vmul.f32 %v2455, 1.442695
  %v2460 = vpow.pop %v2459
  %v2461 = vmul.f32 %v2456, 1.442695
  %v2462 = vpow.pop %v2461
  %v2463 = vmul.f32 %v2457, 1.442695
  %v2464 = vpow.pop %v2463
  %v2465 = vmul.f32 %v2458, 1.442695
  %v2466 = vpow.pop %v2465
  %v2467 = vsel %vm523, %v2460, 0.0
  %2468 = vadd.xlane.f32.xlu0 %v2467
  %v2469 = vpop.xlane.xlu0 %2468
  %v2470 = vsel %vm523, %v2462, 0.0
  %2471 = vadd.xlane.f32.xlu0 %v2470
  %v2472 = vpop.xlane.xlu0 %2471
  %v2473 = vsel %vm523, %v2464, 0.0
  %2474 = vadd.xlane.f32.xlu0 %v2473
  %v2475 = vpop.xlane.xlu0 %2474
  %v2476 = vsel %vm523, %v2466, 0.0
  %2477 = vadd.xlane.f32.xlu0 %v2476
  %v2478 = vpop.xlane.xlu0 %2477
  %v2479 = vrcp.pop %v2469
  %v2480 = vrcp.pop %v2472
  %v2481 = vrcp.pop %v2475
  %v2482 = vrcp.pop %v2478
  %v2483 = vmul.f32 %v2460, %v2479
  %v2484 = vmul.f32 %v2462, %v2480
  %v2485 = vmul.f32 %v2464, %v2481
  %v2486 = vmul.f32 %v2466, %v2482
  %2487 = vrot.lane.b32.xlu0 %v2022, 48
  %v2488 = vpop.permute.xlu0 %2487
  %2489 = vrot.lane.b32.xlu0 %v2027, 48
  %v2490 = vpop.permute.xlu0 %2489
  %2491 = vrot.lane.b32.xlu0 %v2032, 48
  %v2492 = vpop.permute.xlu0 %2491
  %2493 = vrot.lane.b32.xlu0 %v2037, 48
  %v2494 = vpop.permute.xlu0 %2493
  %v2500 = vsel %vm523, %v2483, 0
  %v2503 = vsel %vm523, %v2484, 0
  %v2506 = vsel %vm523, %v2485, 0
  %v2509 = vsel %vm523, %v2486, 0
  %2511 = vmatprep.subr.mxu0 0.0
  %2512 = vmatpush1.msra.mxu0 %v2488
  %2513 = vmatprep.subr.mxu0 0.0
  %2514 = vmatpush1.msra.mxu0 %v2490
  %2515 = vmatprep.subr.mxu0 0.0
  %2516 = vmatpush1.msra.mxu0 %v2492
  %2517 = vmatprep.subr.mxu0 0.0
  %2518 = vmatpush1.msra.mxu0 %v2494
  %2519 = vmatprep.subr.mxu0 0.0
  %2520 = vmatpush1.msra.mxu0 0.0
  %2521 = vmatprep.subr.mxu0 0.0
  %2522 = vmatpush1.msra.mxu0 0.0
  %2523 = vmatprep.subr.mxu0 0.0
  %2524 = vmatpush1.msra.mxu0 0.0
  %2525 = vmatprep.subr.mxu0 0.0
  %2526 = vmatpush1.msra.mxu0 0.0
  %2527 = vmatprep.subr.mxu0 0.0
  %2528 = vmatpush1.msra.mxu0 0.0
  %2529 = vmatprep.subr.mxu0 0.0
  %2530 = vmatpush1.msra.mxu0 0.0
  %2531 = vmatprep.subr.mxu0 0.0
  %2532 = vmatpush1.msra.mxu0 0.0
  %2533 = vmatprep.subr.mxu0 0.0
  %2534 = vmatpush1.msra.mxu0 0.0
  %2535 = vmatprep.subr.mxu0 0.0
  %2536 = vmatpush1.msra.mxu0 0.0
  %2537 = vmatprep.subr.mxu0 0.0
  %2538 = vmatpush1.msra.mxu0 0.0
  %2539 = vmatprep.subr.mxu0 0.0
  %2540 = vmatpush1.msra.mxu0 0.0
  %2541 = vmatprep.subr.mxu0 0.0
  %2542 = vmatpush1.msra.mxu0 0.0
  %2543 = vmatprep.subr.mxu0 0.0
  %2544 = vmatpush1.msra.mxu0 0.0
  %2545 = vmatprep.subr.mxu0 0.0
  %2546 = vmatpush1.msra.mxu0 0.0
  %2547 = vmatprep.subr.mxu0 0.0
  %2548 = vmatpush1.msra.mxu0 0.0
  %2549 = vmatprep.subr.mxu0 0.0
  %2550 = vmatpush1.msra.mxu0 0.0
  %2551 = vmatprep.subr.mxu0 0.0
  %2552 = vmatpush1.msra.mxu0 0.0
  %2553 = vmatprep.subr.mxu0 0.0
  %2554 = vmatpush1.msra.mxu0 0.0
  %2555 = vmatprep.subr.mxu0 0.0
  %2556 = vmatpush1.msra.mxu0 0.0
  %2557 = vmatprep.subr.mxu0 0.0
  %2558 = vmatpush1.msra.mxu0 0.0
  %2559 = vmatprep.subr.mxu0 0.0
  %2560 = vmatpush1.msra.mxu0 0.0
  %2561 = vmatprep.subr.mxu0 0.0
  %2562 = vmatpush1.msra.mxu0 0.0
  %2563 = vmatprep.subr.mxu0 0.0
  %2564 = vmatpush1.msra.mxu0 0.0
  %2565 = vmatprep.subr.mxu0 0.0
  %2566 = vmatpush1.msra.mxu0 0.0
  %2567 = vmatprep.subr.mxu0 0.0
  %2568 = vmatpush1.msra.mxu0 0.0
  %2569 = vmatprep.subr.mxu0 0.0
  %2570 = vmatpush1.msra.mxu0 0.0
  %2571 = vmatprep.subr.mxu0 0.0
  %2572 = vmatpush1.msra.mxu0 0.0
  %2573 = vmatprep.subr.mxu0 0.0
  %2574 = vmatpush1.msra.mxu0 0.0
  %2575 = vmatprep.mubr.f32.mxu0 0.0
  %2576 = vmatmul.mubr.f32.gmra.mrb[0].mxu0 %v2500
  %v2577 = vpop.f32.mrb[0].mxu0
  %v2578 = vadd.f32 0.0, %v2577
  %v2579 = vpop.f32.mrb[0].mxu0
  %2580 = vmatprep.mubr.f32.mxu0 0.0
  %2581 = vmatmul.mubr.f32.gmra.mrb[0].mxu0 %v2503
  %v2582 = vpop.f32.mrb[0].mxu0
  %v2583 = vadd.f32 0.0, %v2582
  %v2584 = vpop.f32.mrb[0].mxu0
  %2585 = vmatprep.mubr.f32.mxu0 0.0
  %2586 = vmatmul.mubr.f32.gmra.mrb[0].mxu0 %v2506
  %v2587 = vpop.f32.mrb[0].mxu0
  %v2588 = vadd.f32 0.0, %v2587
  %v2589 = vpop.f32.mrb[0].mxu0
  %2590 = vmatprep.mubr.f32.mxu0 0.0
  %2591 = vmatmul.mubr.f32.gmra.mrb[0].mxu0 %v2509
  %v2592 = vpop.f32.mrb[0].mxu0
  %v2593 = vadd.f32 0.0, %v2592
  %v2594 = vpop.f32.mrb[0].mxu0
  %2595 = vdwg.mxu0
  %v2597 = vsel %vm326, %v2578, 0
  %v2600 = vsel %vm326, %v2583, 0
  %v2603 = vsel %vm326, %v2588, 0
  %v2606 = vsel %vm326, %v2593, 0
  %2608 = vmatprep.subr.mxu0 0.0
  %2609 = vmatpush1.msra.mxu0 %v2042
  %2610 = vmatprep.subr.mxu0 0.0
  %2611 = vmatpush1.msra.mxu0 %v2043
  %2612 = vmatprep.subr.mxu0 0.0
  %2613 = vmatpush1.msra.mxu0 0.0
  %2614 = vmatprep.subr.mxu0 0.0
  %2615 = vmatpush1.msra.mxu0 0.0
  %2616 = vmatprep.subr.mxu0 0.0
  %2617 = vmatpush1.msra.mxu0 0.0
  %2618 = vmatprep.subr.mxu0 0.0
  %2619 = vmatpush1.msra.mxu0 0.0
  %2620 = vmatprep.subr.mxu0 0.0
  %2621 = vmatpush1.msra.mxu0 0.0
  %2622 = vmatprep.subr.mxu0 0.0
  %2623 = vmatpush1.msra.mxu0 0.0
  %2624 = vmatprep.subr.mxu0 0.0
  %2625 = vmatpush1.msra.mxu0 0.0
  %2626 = vmatprep.subr.mxu0 0.0
  %2627 = vmatpush1.msra.mxu0 0.0
  %2628 = vmatprep.subr.mxu0 0.0
  %2629 = vmatpush1.msra.mxu0 0.0
  %2630 = vmatprep.subr.mxu0 0.0
  %2631 = vmatpush1.msra.mxu0 0.0
  %2632 = vmatprep.subr.mxu0 0.0
  %2633 = vmatpush1.msra.mxu0 0.0
  %2634 = vmatprep.subr.mxu0 0.0
  %2635 = vmatpush1.msra.mxu0 0.0
  %2636 = vmatprep.subr.mxu0 0.0
  %2637 = vmatpush1.msra.mxu0 0.0
  %2638 = vmatprep.subr.mxu0 0.0
  %2639 = vmatpush1.msra.mxu0 0.0
  %2640 = vmatprep.subr.mxu0 0.0
  %2641 = vmatpush1.msra.mxu0 0.0
  %2642 = vmatprep.subr.mxu0 0.0
  %2643 = vmatpush1.msra.mxu0 0.0
  %2644 = vmatprep.subr.mxu0 0.0
  %2645 = vmatpush1.msra.mxu0 0.0
  %2646 = vmatprep.subr.mxu0 0.0
  %2647 = vmatpush1.msra.mxu0 0.0
  %2648 = vmatprep.subr.mxu0 0.0
  %2649 = vmatpush1.msra.mxu0 0.0
  %2650 = vmatprep.subr.mxu0 0.0
  %2651 = vmatpush1.msra.mxu0 0.0
  %2652 = vmatprep.subr.mxu0 0.0
  %2653 = vmatpush1.msra.mxu0 0.0
  %2654 = vmatprep.subr.mxu0 0.0
  %2655 = vmatpush1.msra.mxu0 0.0
  %2656 = vmatprep.subr.mxu0 0.0
  %2657 = vmatpush1.msra.mxu0 0.0
  %2658 = vmatprep.subr.mxu0 0.0
  %2659 = vmatpush1.msra.mxu0 0.0
  %2660 = vmatprep.subr.mxu0 0.0
  %2661 = vmatpush1.msra.mxu0 0.0
  %2662 = vmatprep.subr.mxu0 0.0
  %2663 = vmatpush1.msra.mxu0 0.0
  %2664 = vmatprep.subr.mxu0 0.0
  %2665 = vmatpush1.msra.mxu0 0.0
  %2666 = vmatprep.subr.mxu0 0.0
  %2667 = vmatpush1.msra.mxu0 0.0
  %2668 = vmatprep.subr.mxu0 0.0
  %2669 = vmatpush1.msra.mxu0 0.0
  %2670 = vmatprep.subr.mxu0 0.0
  %2671 = vmatpush1.msra.mxu0 0.0
  %2672 = vmatprep.mubr.f32.mxu0 0.0
  %2673 = vmatmul.mubr.f32.gmra.mrb[0].mxu0 %v2597
  %v2674 = vpop.f32.mrb[0].mxu0
  %v2675 = vadd.f32 0.0, %v2674
  %v2676 = vpop.f32.mrb[0].mxu0
  %2677 = vmatprep.mubr.f32.mxu0 0.0
  %2678 = vmatmul.mubr.f32.gmra.mrb[0].mxu0 %v2600
  %v2679 = vpop.f32.mrb[0].mxu0
  %v2680 = vadd.f32 0.0, %v2679
  %v2681 = vpop.f32.mrb[0].mxu0
  %2682 = vmatprep.mubr.f32.mxu0 0.0
  %2683 = vmatmul.mubr.f32.gmra.mrb[0].mxu0 %v2603
  %v2684 = vpop.f32.mrb[0].mxu0
  %v2685 = vadd.f32 0.0, %v2684
  %v2686 = vpop.f32.mrb[0].mxu0
  %2687 = vmatprep.mubr.f32.mxu0 0.0
  %2688 = vmatmul.mubr.f32.gmra.mrb[0].mxu0 %v2606
  %v2689 = vpop.f32.mrb[0].mxu0
  %v2690 = vadd.f32 0.0, %v2689
  %v2691 = vpop.f32.mrb[0].mxu0
  %2692 = vdwg.mxu0
  %v2694 = vsel %vm326, %v2300, 0
  %v2697 = vsel %vm326, %v2305, 0
  %v2700 = vsel %vm326, %v2310, 0
  %v2703 = vsel %vm326, %v2315, 0
  %2705 = vmatprep.subr.mxu0 0.0
  %2706 = vmatpush1.msra.mxu0 %v2040
  %2707 = vmatprep.subr.mxu0 0.0
  %2708 = vmatpush1.msra.mxu0 %v2041
  %2709 = vmatprep.subr.mxu0 0.0
  %2710 = vmatpush1.msra.mxu0 0.0
  %2711 = vmatprep.subr.mxu0 0.0
  %2712 = vmatpush1.msra.mxu0 0.0
  %2713 = vmatprep.subr.mxu0 0.0
  %2714 = vmatpush1.msra.mxu0 0.0
  %2715 = vmatprep.subr.mxu0 0.0
  %2716 = vmatpush1.msra.mxu0 0.0
  %2717 = vmatprep.subr.mxu0 0.0
  %2718 = vmatpush1.msra.mxu0 0.0
  %2719 = vmatprep.subr.mxu0 0.0
  %2720 = vmatpush1.msra.mxu0 0.0
  %2721 = vmatprep.subr.mxu0 0.0
  %2722 = vmatpush1.msra.mxu0 0.0
  %2723 = vmatprep.subr.mxu0 0.0
  %2724 = vmatpush1.msra.mxu0 0.0
  %2725 = vmatprep.subr.mxu0 0.0
  %2726 = vmatpush1.msra.mxu0 0.0
  %2727 = vmatprep.subr.mxu0 0.0
  %2728 = vmatpush1.msra.mxu0 0.0
  %2729 = vmatprep.subr.mxu0 0.0
  %2730 = vmatpush1.msra.mxu0 0.0
  %2731 = vmatprep.subr.mxu0 0.0
  %2732 = vmatpush1.msra.mxu0 0.0
  %2733 = vmatprep.subr.mxu0 0.0
  %2734 = vmatpush1.msra.mxu0 0.0
  %2735 = vmatprep.subr.mxu0 0.0
  %2736 = vmatpush1.msra.mxu0 0.0
  %2737 = vmatprep.subr.mxu0 0.0
  %2738 = vmatpush1.msra.mxu0 0.0
  %2739 = vmatprep.subr.mxu0 0.0
  %2740 = vmatpush1.msra.mxu0 0.0
  %2741 = vmatprep.subr.mxu0 0.0
  %2742 = vmatpush1.msra.mxu0 0.0
  %2743 = vmatprep.subr.mxu0 0.0
  %2744 = vmatpush1.msra.mxu0 0.0
  %2745 = vmatprep.subr.mxu0 0.0
  %2746 = vmatpush1.msra.mxu0 0.0
  %2747 = vmatprep.subr.mxu0 0.0
  %2748 = vmatpush1.msra.mxu0 0.0
  %2749 = vmatprep.subr.mxu0 0.0
  %2750 = vmatpush1.msra.mxu0 0.0
  %2751 = vmatprep.subr.mxu0 0.0
  %2752 = vmatpush1.msra.mxu0 0.0
  %2753 = vmatprep.subr.mxu0 0.0
  %2754 = vmatpush1.msra.mxu0 0.0
  %2755 = vmatprep.subr.mxu0 0.0
  %2756 = vmatpush1.msra.mxu0 0.0
  %2757 = vmatprep.subr.mxu0 0.0
  %2758 = vmatpush1.msra.mxu0 0.0
  %2759 = vmatprep.subr.mxu0 0.0
  %2760 = vmatpush1.msra.mxu0 0.0
  %2761 = vmatprep.subr.mxu0 0.0
  %2762 = vmatpush1.msra.mxu0 0.0
  %2763 = vmatprep.subr.mxu0 0.0
  %2764 = vmatpush1.msra.mxu0 0.0
  %2765 = vmatprep.subr.mxu0 0.0
  %2766 = vmatpush1.msra.mxu0 0.0
  %2767 = vmatprep.subr.mxu0 0.0
  %2768 = vmatpush1.msra.mxu0 0.0
  %2769 = vmatprep.mubr.f32.mxu0 0.0
  %2770 = vmatmul.mubr.f32.gmra.mrb[0].mxu0 %v2694
  %v2771 = vpop.f32.mrb[0].mxu0
  %v2772 = vadd.f32 %v2675, %v2771
  %v2773 = vpop.f32.mrb[0].mxu0
  %2774 = vmatprep.mubr.f32.mxu0 0.0
  %2775 = vmatmul.mubr.f32.gmra.mrb[0].mxu0 %v2697
  %v2776 = vpop.f32.mrb[0].mxu0
  %v2777 = vadd.f32 %v2680, %v2776
  %v2778 = vpop.f32.mrb[0].mxu0
  %2779 = vmatprep.mubr.f32.mxu0 0.0
  %2780 = vmatmul.mubr.f32.gmra.mrb[0].mxu0 %v2700
  %v2781 = vpop.f32.mrb[0].mxu0
  %v2782 = vadd.f32 %v2685, %v2781
  %v2783 = vpop.f32.mrb[0].mxu0
  %2784 = vmatprep.mubr.f32.mxu0 0.0
  %2785 = vmatmul.mubr.f32.gmra.mrb[0].mxu0 %v2703
  %v2786 = vpop.f32.mrb[0].mxu0
  %v2787 = vadd.f32 %v2690, %v2786
  %v2788 = vpop.f32.mrb[0].mxu0
  %2789 = vdwg.mxu0
  %v2790 = vadd.f32 %v1930, %v2772
  %v2791 = vadd.f32 %v1931, %v2777
  %v2792 = vadd.f32 %v1932, %v2782
  %v2793 = vadd.f32 %v1933, %v2787
  %v2794 = vld [vmem:[%s3 + $0x160] sm:$0x1]
  %v2795 = vlaneseq
  %v2796 = vshrl.u32 %v2795, 7
  %v2797 = vsub.s32 0, %v2796
  %v2798 = vrot.slane %v2794, %v2797
  %v2799 = vadd.f32 %v2790, %v2798
  %v2800 = vadd.f32 %v2791, %v2798
  %v2801 = vadd.f32 %v2792, %v2798
  %v2802 = vadd.f32 %v2793, %v2798
  %v2803 = vld [vmem:[%s3 + $0x168] sm:$0x1]
  %v2804 = vld [vmem:[%s3 + $0x170] sm:$0x1]
  %v2805 = vsel %vm523, %v2799, 0.0
  %2806 = vadd.xlane.f32.xlu0 %v2805
  %v2807 = vpop.xlane.xlu0 %2806
  %v2808 = vsel %vm523, %v2800, 0.0
  %2809 = vadd.xlane.f32.xlu0 %v2808
  %v2810 = vpop.xlane.xlu0 %2809
  %v2811 = vsel %vm523, %v2801, 0.0
  %2812 = vadd.xlane.f32.xlu0 %v2811
  %v2813 = vpop.xlane.xlu0 %2812
  %v2814 = vsel %vm523, %v2802, 0.0
  %2815 = vadd.xlane.f32.xlu0 %v2814
  %v2816 = vpop.xlane.xlu0 %2815
  %v2817 = vmul.f32 %v2807, %v536
  %v2818 = vmul.f32 %v2810, %v536
  %v2819 = vmul.f32 %v2813, %v536
  %v2820 = vmul.f32 %v2816, %v536
  %v2821 = vsub.f32 %v2799, %v2817
  %v2822 = vsub.f32 %v2800, %v2818
  %v2823 = vsub.f32 %v2801, %v2819
  %v2824 = vsub.f32 %v2802, %v2820
  %v2825 = vmul.f32 %v2821, %v2821
  %v2826 = vmul.f32 %v2822, %v2822
  %v2827 = vmul.f32 %v2823, %v2823
  %v2828 = vmul.f32 %v2824, %v2824
  %v2829 = vsel %vm523, %v2825, 0.0
  %2830 = vadd.xlane.f32.xlu0 %v2829
  %v2831 = vpop.xlane.xlu0 %2830
  %v2832 = vsel %vm523, %v2826, 0.0
  %2833 = vadd.xlane.f32.xlu0 %v2832
  %v2834 = vpop.xlane.xlu0 %2833
  %v2835 = vsel %vm523, %v2827, 0.0
  %2836 = vadd.xlane.f32.xlu0 %v2835
  %v2837 = vpop.xlane.xlu0 %2836
  %v2838 = vsel %vm523, %v2828, 0.0
  %2839 = vadd.xlane.f32.xlu0 %v2838
  %v2840 = vpop.xlane.xlu0 %2839
  %v2841 = vmul.f32 %v2831, %v536
  %v2842 = vmul.f32 %v2834, %v536
  %v2843 = vmul.f32 %v2837, %v536
  %v2844 = vmul.f32 %v2840, %v536
  %v2845 = vadd.f32 %v2841, 1e-05
  %v2846 = vadd.f32 %v2842, 1e-05
  %v2847 = vadd.f32 %v2843, 1e-05
  %v2848 = vadd.f32 %v2844, 1e-05
  %v2849 = vrsqrt.pop %v2845
  %v2850 = vrsqrt.pop %v2846
  %v2851 = vrsqrt.pop %v2847
  %v2852 = vrsqrt.pop %v2848
  %v2853 = vmul.f32 %v2821, %v2849
  %v2854 = vmul.f32 %v2822, %v2850
  %v2855 = vmul.f32 %v2823, %v2851
  %v2856 = vmul.f32 %v2824, %v2852
  %v2857 = vlaneseq
  %v2858 = vshrl.u32 %v2857, 7
  %v2859 = vsub.s32 0, %v2858
  %v2860 = vrot.slane %v2803, %v2859
  %v2861 = vmul.f32 %v2853, %v2860
  %v2862 = vmul.f32 %v2854, %v2860
  %v2863 = vmul.f32 %v2855, %v2860
  %v2864 = vmul.f32 %v2856, %v2860
  %v2865 = vlaneseq
  %v2866 = vshrl.u32 %v2865, 7
  %v2867 = vsub.s32 0, %v2866
  %v2868 = vrot.slane %v2804, %v2867
  %v2869 = vadd.f32 %v2861, %v2868
  %v2870 = vadd.f32 %v2862, %v2868
  %v2871 = vadd.f32 %v2863, %v2868
  %v2872 = vadd.f32 %v2864, %v2868
  %v2873 = vld [vmem:[%s4 + $0x78] sm:$0xff]
  %v2874 = vld [vmem:[%s4 + $0x80] sm:$0xff]
  %v2875 = vld [vmem:[%s4 + $0x88] sm:$0xff]
  %v2876 = vld [vmem:[%s4 + $0x90] sm:$0xff]
  %v2877 = vld [vmem:[%s4 + $0x98] sm:$0x1]
  %v2878 = vlaneseq
  %v2879 = vshrl.u32 %v2878, 7
  %v2880 = vsub.s32 0, %v2879
  %v2881 = vrot.slane %v2877, %v2880
  %v2883 = vsel %vm523, %v2869, 0
  %v2886 = vsel %vm523, %v2870, 0
  %v2889 = vsel %vm523, %v2871, 0
  %v2892 = vsel %vm523, %v2872, 0
  %2894 = vmatprep.subr.mxu0 0.0
  %2895 = vmatpush1.msra.mxu0 %v2873
  %2896 = vmatprep.subr.mxu0 0.0
  %2897 = vmatpush1.msra.mxu0 %v2874
  %2898 = vmatprep.subr.mxu0 0.0
  %2899 = vmatpush1.msra.mxu0 %v2875
  %2900 = vmatprep.subr.mxu0 0.0
  %2901 = vmatpush1.msra.mxu0 %v2876
  %2902 = vmatprep.subr.mxu0 0.0
  %2903 = vmatpush1.msra.mxu0 0.0
  %2904 = vmatprep.subr.mxu0 0.0
  %2905 = vmatpush1.msra.mxu0 0.0
  %2906 = vmatprep.subr.mxu0 0.0
  %2907 = vmatpush1.msra.mxu0 0.0
  %2908 = vmatprep.subr.mxu0 0.0
  %2909 = vmatpush1.msra.mxu0 0.0
  %2910 = vmatprep.subr.mxu0 0.0
  %2911 = vmatpush1.msra.mxu0 0.0
  %2912 = vmatprep.subr.mxu0 0.0
  %2913 = vmatpush1.msra.mxu0 0.0
  %2914 = vmatprep.subr.mxu0 0.0
  %2915 = vmatpush1.msra.mxu0 0.0
  %2916 = vmatprep.subr.mxu0 0.0
  %2917 = vmatpush1.msra.mxu0 0.0
  %2918 = vmatprep.subr.mxu0 0.0
  %2919 = vmatpush1.msra.mxu0 0.0
  %2920 = vmatprep.subr.mxu0 0.0
  %2921 = vmatpush1.msra.mxu0 0.0
  %2922 = vmatprep.subr.mxu0 0.0
  %2923 = vmatpush1.msra.mxu0 0.0
  %2924 = vmatprep.subr.mxu0 0.0
  %2925 = vmatpush1.msra.mxu0 0.0
  %2926 = vmatprep.subr.mxu0 0.0
  %2927 = vmatpush1.msra.mxu0 0.0
  %2928 = vmatprep.subr.mxu0 0.0
  %2929 = vmatpush1.msra.mxu0 0.0
  %2930 = vmatprep.subr.mxu0 0.0
  %2931 = vmatpush1.msra.mxu0 0.0
  %2932 = vmatprep.subr.mxu0 0.0
  %2933 = vmatpush1.msra.mxu0 0.0
  %2934 = vmatprep.subr.mxu0 0.0
  %2935 = vmatpush1.msra.mxu0 0.0
  %2936 = vmatprep.subr.mxu0 0.0
  %2937 = vmatpush1.msra.mxu0 0.0
  %2938 = vmatprep.subr.mxu0 0.0
  %2939 = vmatpush1.msra.mxu0 0.0
  %2940 = vmatprep.subr.mxu0 0.0
  %2941 = vmatpush1.msra.mxu0 0.0
  %2942 = vmatprep.subr.mxu0 0.0
  %2943 = vmatpush1.msra.mxu0 0.0
  %2944 = vmatprep.subr.mxu0 0.0
  %2945 = vmatpush1.msra.mxu0 0.0
  %2946 = vmatprep.subr.mxu0 0.0
  %2947 = vmatpush1.msra.mxu0 0.0
  %2948 = vmatprep.subr.mxu0 0.0
  %2949 = vmatpush1.msra.mxu0 0.0
  %2950 = vmatprep.subr.mxu0 0.0
  %2951 = vmatpush1.msra.mxu0 0.0
  %2952 = vmatprep.subr.mxu0 0.0
  %2953 = vmatpush1.msra.mxu0 0.0
  %2954 = vmatprep.subr.mxu0 0.0
  %2955 = vmatpush1.msra.mxu0 0.0
  %2956 = vmatprep.subr.mxu0 0.0
  %2957 = vmatpush1.msra.mxu0 0.0
  %2958 = vmatprep.mubr.f32.mxu0 0.0
  %2959 = vmatmul.mubr.f32.gmra.mrb[0].mxu0 %v2883
  %v2960 = vpop.f32.mrb[0].mxu0
  %v2961 = vadd.f32 %v2881, %v2960
  %v2962 = vpop.f32.mrb[0].mxu0
  %2963 = vmatprep.mubr.f32.mxu0 0.0
  %2964 = vmatmul.mubr.f32.gmra.mrb[0].mxu0 %v2886
  %v2965 = vpop.f32.mrb[0].mxu0
  %v2966 = vadd.f32 %v2881, %v2965
  %v2967 = vpop.f32.mrb[0].mxu0
  %2968 = vmatprep.mubr.f32.mxu0 0.0
  %2969 = vmatmul.mubr.f32.gmra.mrb[0].mxu0 %v2889
  %v2970 = vpop.f32.mrb[0].mxu0
  %v2971 = vadd.f32 %v2881, %v2970
  %v2972 = vpop.f32.mrb[0].mxu0
  %2973 = vmatprep.mubr.f32.mxu0 0.0
  %2974 = vmatmul.mubr.f32.gmra.mrb[0].mxu0 %v2892
  %v2975 = vpop.f32.mrb[0].mxu0
  %v2976 = vadd.f32 %v2881, %v2975
  %v2977 = vpop.f32.mrb[0].mxu0
  %2978 = vdwg.mxu0
  %v2979 = vmul.f32 %v2961, 0.5
  %v2980 = vmul.f32 %v2966, 0.5
  %v2981 = vmul.f32 %v2971, 0.5
  %v2982 = vmul.f32 %v2976, 0.5
  %v2983 = vmul.f32 %v2961, 0.70710677
  %v2984 = vmul.f32 %v2966, 0.70710677
  %v2985 = vmul.f32 %v2971, 0.70710677
  %v2986 = vmul.f32 %v2976, 0.70710677
  %v2987 = vand.u32 2147483647, %v2983
  %v2988 = vand.u32 2147483647, %v2984
  %v2989 = vand.u32 2147483647, %v2985
  %v2990 = vand.u32 2147483647, %v2986
  %v2991 = vmul.f32 %v2987, 0.3275911
  %v2992 = vmul.f32 %v2988, 0.3275911
  %v2993 = vmul.f32 %v2989, 0.3275911
  %v2994 = vmul.f32 %v2990, 0.3275911
  %v2995 = vadd.f32 %v2991, 1.0
  %v2996 = vadd.f32 %v2992, 1.0
  %v2997 = vadd.f32 %v2993, 1.0
  %v2998 = vadd.f32 %v2994, 1.0
  %v2999 = vrcp.pop %v2995
  %v3000 = vmul.f32 1.0, %v2999
  %v3001 = vrcp.pop %v2996
  %v3002 = vmul.f32 1.0, %v3001
  %v3003 = vrcp.pop %v2997
  %v3004 = vmul.f32 1.0, %v3003
  %v3005 = vrcp.pop %v2998
  %v3006 = vmul.f32 1.0, %v3005
  %v3007 = vmul.f32 %v3000, 1.0614054
  %v3008 = vmul.f32 %v3002, 1.0614054
  %v3009 = vmul.f32 %v3004, 1.0614054
  %v3010 = vmul.f32 %v3006, 1.0614054
  %v3011 = vadd.f32 %v3007, -1.4531521
  %v3012 = vadd.f32 %v3008, -1.4531521
  %v3013 = vadd.f32 %v3009, -1.4531521
  %v3014 = vadd.f32 %v3010, -1.4531521
  %v3015 = vmul.f32 %v3011, %v3000
  %v3016 = vmul.f32 %v3012, %v3002
  %v3017 = vmul.f32 %v3013, %v3004
  %v3018 = vmul.f32 %v3014, %v3006
  %v3019 = vadd.f32 %v3015, 1.4214138
  %v3020 = vadd.f32 %v3016, 1.4214138
  %v3021 = vadd.f32 %v3017, 1.4214138
  %v3022 = vadd.f32 %v3018, 1.4214138
  %v3023 = vmul.f32 %v3019, %v3000
  %v3024 = vmul.f32 %v3020, %v3002
  %v3025 = vmul.f32 %v3021, %v3004
  %v3026 = vmul.f32 %v3022, %v3006
  %v3027 = vadd.f32 %v3023, -0.28449672
  %v3028 = vadd.f32 %v3024, -0.28449672
  %v3029 = vadd.f32 %v3025, -0.28449672
  %v3030 = vadd.f32 %v3026, -0.28449672
  %v3031 = vmul.f32 %v3027, %v3000
  %v3032 = vmul.f32 %v3028, %v3002
  %v3033 = vmul.f32 %v3029, %v3004
  %v3034 = vmul.f32 %v3030, %v3006
  %v3035 = vadd.f32 %v3031, 0.2548296
  %v3036 = vadd.f32 %v3032, 0.2548296
  %v3037 = vadd.f32 %v3033, 0.2548296
  %v3038 = vadd.f32 %v3034, 0.2548296
  %v3039 = vmul.f32 %v3035, %v3000
  %v3040 = vmul.f32 %v3036, %v3002
  %v3041 = vmul.f32 %v3037, %v3004
  %v3042 = vmul.f32 %v3038, %v3006
  %v3043 = vsub.f32 0.0, %v2987
  %v3044 = vsub.f32 0.0, %v2988
  %v3045 = vsub.f32 0.0, %v2989
  %v3046 = vsub.f32 0.0, %v2990
  %v3047 = vmul.f32 %v3043, %v2987
  %v3048 = vmul.f32 %v3044, %v2988
  %v3049 = vmul.f32 %v3045, %v2989
  %v3050 = vmul.f32 %v3046, %v2990
  %v3051 = vmul.f32 %v3047, 1.442695
  %v3052 = vpow.pop %v3051
  %v3053 = vmul.f32 %v3048, 1.442695
  %v3054 = vpow.pop %v3053
  %v3055 = vmul.f32 %v3049, 1.442695
  %v3056 = vpow.pop %v3055
  %v3057 = vmul.f32 %v3050, 1.442695
  %v3058 = vpow.pop %v3057
  %v3059 = vmul.f32 %v3039, %v3052
  %v3060 = vmul.f32 %v3040, %v3054
  %v3061 = vmul.f32 %v3041, %v3056
  %v3062 = vmul.f32 %v3042, %v3058
  %v3063 = vsub.f32 1.0, %v3059
  %v3064 = vsub.f32 1.0, %v3060
  %v3065 = vsub.f32 1.0, %v3061
  %v3066 = vsub.f32 1.0, %v3062
  %vm3067 = vcmp.ge.f32.partialorder %v2983, 0.0
  %vm3068 = vcmp.ge.f32.partialorder %v2984, 0.0
  %vm3069 = vcmp.ge.f32.partialorder %v2985, 0.0
  %vm3070 = vcmp.ge.f32.partialorder %v2986, 0.0
  %v3071 = vsub.f32 0.0, %v3063
  %v3072 = vsub.f32 0.0, %v3064
  %v3073 = vsub.f32 0.0, %v3065
  %v3074 = vsub.f32 0.0, %v3066
  %v3075 = vsel %vm3067, %v3063, %v3071
  %v3076 = vsel %vm3068, %v3064, %v3072
  %v3077 = vsel %vm3069, %v3065, %v3073
  %v3078 = vsel %vm3070, %v3066, %v3074
  %v3079 = vadd.f32 %v3075, 1.0
  %v3080 = vadd.f32 %v3076, 1.0
  %v3081 = vadd.f32 %v3077, 1.0
  %v3082 = vadd.f32 %v3078, 1.0
  %v3083 = vmul.f32 %v2979, %v3079
  %v3084 = vmul.f32 %v2980, %v3080
  %v3085 = vmul.f32 %v2981, %v3081
  %v3086 = vmul.f32 %v2982, %v3082
  %v3087 = vld [vmem:[%s3 + $0x178] sm:$0xff]
  %v3088 = vld [vmem:[%s3 + $0x180] sm:$0xff]
  %v3089 = vld [vmem:[%s3 + $0x188] sm:$0xff]
  %v3090 = vld [vmem:[%s3 + $0x190] sm:$0xff]
  %v3091 = vld [vmem:[%s3 + $0x198] sm:$0xff]
  %v3092 = vld [vmem:[%s3 + $0x1a0] sm:$0xff]
  %v3093 = vld [vmem:[%s3 + $0x1a8] sm:$0xff]
  %v3094 = vld [vmem:[%s3 + $0x1b0] sm:$0xff]
  %v3095 = vld [vmem:[%s3 + $0x1b8] sm:$0xff]
  %v3096 = vld [vmem:[%s3 + $0x1c0] sm:$0xff]
  %v3097 = vld [vmem:[%s3 + $0x1c8] sm:$0xff]
  %v3098 = vld [vmem:[%s3 + $0x1d0] sm:$0xff]
  %v3099 = vld [vmem:[%s3 + $0x1d8] sm:$0xff]
  %v3100 = vld [vmem:[%s3 + $0x1e0] sm:$0xff]
  %v3101 = vld [vmem:[%s3 + $0x1e8] sm:$0xff]
  %v3102 = vld [vmem:[%s3 + $0x1f0] sm:$0xff]
  %3103 = vmatprep.subr.mxu0 0.0
  %3104 = vmatpush1.msra.mxu0 %v3087
  %3105 = vmatprep.subr.mxu0 0.0
  %3106 = vmatpush1.msra.mxu0 %v3088
  %3107 = vmatprep.subr.mxu0 0.0
  %3108 = vmatpush1.msra.mxu0 %v3089
  %3109 = vmatprep.subr.mxu0 0.0
  %3110 = vmatpush1.msra.mxu0 %v3090
  %3111 = vmatprep.subr.mxu0 0.0
  %3112 = vmatpush1.msra.mxu0 %v3091
  %3113 = vmatprep.subr.mxu0 0.0
  %3114 = vmatpush1.msra.mxu0 %v3092
  %3115 = vmatprep.subr.mxu0 0.0
  %3116 = vmatpush1.msra.mxu0 %v3093
  %3117 = vmatprep.subr.mxu0 0.0
  %3118 = vmatpush1.msra.mxu0 %v3094
  %3119 = vmatprep.subr.mxu0 0.0
  %3120 = vmatpush1.msra.mxu0 %v3095
  %3121 = vmatprep.subr.mxu0 0.0
  %3122 = vmatpush1.msra.mxu0 %v3096
  %3123 = vmatprep.subr.mxu0 0.0
  %3124 = vmatpush1.msra.mxu0 %v3097
  %3125 = vmatprep.subr.mxu0 0.0
  %3126 = vmatpush1.msra.mxu0 %v3098
  %3127 = vmatprep.subr.mxu0 0.0
  %3128 = vmatpush1.msra.mxu0 %v3099
  %3129 = vmatprep.subr.mxu0 0.0
  %3130 = vmatpush1.msra.mxu0 %v3100
  %3131 = vmatprep.subr.mxu0 0.0
  %3132 = vmatpush1.msra.mxu0 %v3101
  %3133 = vmatprep.subr.mxu0 0.0
  %3134 = vmatpush1.msra.mxu0 %v3102
  %3135 = vmatprep.subr.mxu0 0.0
  %3136 = vmatpush1.msra.mxu0 0.0
  %3137 = vmatprep.subr.mxu0 0.0
  %3138 = vmatpush1.msra.mxu0 0.0
  %3139 = vmatprep.subr.mxu0 0.0
  %3140 = vmatpush1.msra.mxu0 0.0
  %3141 = vmatprep.subr.mxu0 0.0
  %3142 = vmatpush1.msra.mxu0 0.0
  %3143 = vmatprep.subr.mxu0 0.0
  %3144 = vmatpush1.msra.mxu0 0.0
  %3145 = vmatprep.subr.mxu0 0.0
  %3146 = vmatpush1.msra.mxu0 0.0
  %3147 = vmatprep.subr.mxu0 0.0
  %3148 = vmatpush1.msra.mxu0 0.0
  %3149 = vmatprep.subr.mxu0 0.0
  %3150 = vmatpush1.msra.mxu0 0.0
  %3151 = vmatprep.subr.mxu0 0.0
  %3152 = vmatpush1.msra.mxu0 0.0
  %3153 = vmatprep.subr.mxu0 0.0
  %3154 = vmatpush1.msra.mxu0 0.0
  %3155 = vmatprep.subr.mxu0 0.0
  %3156 = vmatpush1.msra.mxu0 0.0
  %3157 = vmatprep.subr.mxu0 0.0
  %3158 = vmatpush1.msra.mxu0 0.0
  %3159 = vmatprep.subr.mxu0 0.0
  %3160 = vmatpush1.msra.mxu0 0.0
  %3161 = vmatprep.subr.mxu0 0.0
  %3162 = vmatpush1.msra.mxu0 0.0
  %3163 = vmatprep.subr.mxu0 0.0
  %3164 = vmatpush1.msra.mxu0 0.0
  %3165 = vmatprep.subr.mxu0 0.0
  %3166 = vmatpush1.msra.mxu0 0.0
  %3167 = vmatprep.mubr.f32.mxu0 0.0
  %3168 = vmatmul.mubr.f32.gmra.mrb[0].mxu0 %v3083
  %v3169 = vpop.f32.mrb[0].mxu0
  %v3170 = vadd.f32 0.0, %v3169
  %v3171 = vpop.f32.mrb[0].mxu0
  %3172 = vmatprep.mubr.f32.mxu0 0.0
  %3173 = vmatmul.mubr.f32.gmra.mrb[0].mxu0 %v3084
  %v3174 = vpop.f32.mrb[0].mxu0
  %v3175 = vadd.f32 0.0, %v3174
  %v3176 = vpop.f32.mrb[0].mxu0
  %3177 = vmatprep.mubr.f32.mxu0 0.0
  %3178 = vmatmul.mubr.f32.gmra.mrb[0].mxu0 %v3085
  %v3179 = vpop.f32.mrb[0].mxu0
  %v3180 = vadd.f32 0.0, %v3179
  %v3181 = vpop.f32.mrb[0].mxu0
  %3182 = vmatprep.mubr.f32.mxu0 0.0
  %3183 = vmatmul.mubr.f32.gmra.mrb[0].mxu0 %v3086
  %v3184 = vpop.f32.mrb[0].mxu0
  %v3185 = vadd.f32 0.0, %v3184
  %v3186 = vpop.f32.mrb[0].mxu0
  %3187 = vdwg.mxu0
  %v3188 = vadd.f32 %v2869, %v3170
  %v3189 = vadd.f32 %v2870, %v3175
  %v3190 = vadd.f32 %v2871, %v3180
  %v3191 = vadd.f32 %v2872, %v3185
  %v3192 = vld [vmem:[%s3 + $0x1f8] sm:$0x1]
  %v3193 = vlaneseq
  %v3194 = vshrl.u32 %v3193, 7
  %v3195 = vsub.s32 0, %v3194
  %v3196 = vrot.slane %v3192, %v3195
  %v3197 = vadd.f32 %v3188, %v3196
  %v3198 = vadd.f32 %v3189, %v3196
  %v3199 = vadd.f32 %v3190, %v3196
  %v3200 = vadd.f32 %v3191, %v3196
  %v3201 = vld [vmem:[%s3 + $0x200] sm:$0x1]
  %v3202 = vld [vmem:[%s3 + $0x208] sm:$0x1]
  %v3203 = vsel %vm523, %v3197, 0.0
  %3204 = vadd.xlane.f32.xlu0 %v3203
  %v3205 = vpop.xlane.xlu0 %3204
  %v3206 = vsel %vm523, %v3198, 0.0
  %3207 = vadd.xlane.f32.xlu0 %v3206
  %v3208 = vpop.xlane.xlu0 %3207
  %v3209 = vsel %vm523, %v3199, 0.0
  %3210 = vadd.xlane.f32.xlu0 %v3209
  %v3211 = vpop.xlane.xlu0 %3210
  %v3212 = vsel %vm523, %v3200, 0.0
  %3213 = vadd.xlane.f32.xlu0 %v3212
  %v3214 = vpop.xlane.xlu0 %3213
  %v3215 = vmul.f32 %v3205, %v536
  %v3216 = vmul.f32 %v3208, %v536
  %v3217 = vmul.f32 %v3211, %v536
  %v3218 = vmul.f32 %v3214, %v536
  %v3219 = vsub.f32 %v3197, %v3215
  %v3220 = vsub.f32 %v3198, %v3216
  %v3221 = vsub.f32 %v3199, %v3217
  %v3222 = vsub.f32 %v3200, %v3218
  %v3223 = vmul.f32 %v3219, %v3219
  %v3224 = vmul.f32 %v3220, %v3220
  %v3225 = vmul.f32 %v3221, %v3221
  %v3226 = vmul.f32 %v3222, %v3222
  %v3227 = vsel %vm523, %v3223, 0.0
  %3228 = vadd.xlane.f32.xlu0 %v3227
  %v3229 = vpop.xlane.xlu0 %3228
  %v3230 = vsel %vm523, %v3224, 0.0
  %3231 = vadd.xlane.f32.xlu0 %v3230
  %v3232 = vpop.xlane.xlu0 %3231
  %v3233 = vsel %vm523, %v3225, 0.0
  %3234 = vadd.xlane.f32.xlu0 %v3233
  %v3235 = vpop.xlane.xlu0 %3234
  %v3236 = vsel %vm523, %v3226, 0.0
  %3237 = vadd.xlane.f32.xlu0 %v3236
  %v3238 = vpop.xlane.xlu0 %3237
  %v3239 = vmul.f32 %v3229, %v536
  %v3240 = vmul.f32 %v3232, %v536
  %v3241 = vmul.f32 %v3235, %v536
  %v3242 = vmul.f32 %v3238, %v536
  %v3243 = vadd.f32 %v3239, 1e-05
  %v3244 = vadd.f32 %v3240, 1e-05
  %v3245 = vadd.f32 %v3241, 1e-05
  %v3246 = vadd.f32 %v3242, 1e-05
  %v3247 = vrsqrt.pop %v3243
  %v3248 = vrsqrt.pop %v3244
  %v3249 = vrsqrt.pop %v3245
  %v3250 = vrsqrt.pop %v3246
  %v3251 = vmul.f32 %v3219, %v3247
  %v3252 = vmul.f32 %v3220, %v3248
  %v3253 = vmul.f32 %v3221, %v3249
  %v3254 = vmul.f32 %v3222, %v3250
  %v3255 = vlaneseq
  %v3256 = vshrl.u32 %v3255, 7
  %v3257 = vsub.s32 0, %v3256
  %v3258 = vrot.slane %v3201, %v3257
  %v3259 = vmul.f32 %v3251, %v3258
  %v3260 = vmul.f32 %v3252, %v3258
  %v3261 = vmul.f32 %v3253, %v3258
  %v3262 = vmul.f32 %v3254, %v3258
  %v3263 = vlaneseq
  %v3264 = vshrl.u32 %v3263, 7
  %v3265 = vsub.s32 0, %v3264
  %v3266 = vrot.slane %v3202, %v3265
  %v3267 = vadd.f32 %v3259, %v3266
  %v3268 = vadd.f32 %v3260, %v3266
  %v3269 = vadd.f32 %v3261, %v3266
  %v3270 = vadd.f32 %v3262, %v3266
  %v3271 = vld [vmem:[%s3 + $0x250] sm:$0xff]
  %v3272 = vld [vmem:[%s3 + $0x258] sm:$0xff]
  %v3274 = vsel %vm523, %v3271, 0
  %v3277 = vsel %vm523, %v3272, 0
  %3279 = vmatprep.subr.mxu0 0.0
  %3280 = vmatpush1.msra.mxu0 %v3267
  %3281 = vmatprep.subr.mxu0 0.0
  %3282 = vmatpush1.msra.mxu0 %v3268
  %3283 = vmatprep.subr.mxu0 0.0
  %3284 = vmatpush1.msra.mxu0 %v3269
  %3285 = vmatprep.subr.mxu0 0.0
  %3286 = vmatpush1.msra.mxu0 %v3270
  %3287 = vmatprep.subr.mxu0 0.0
  %3288 = vmatpush1.msra.mxu0 0.0
  %3289 = vmatprep.subr.mxu0 0.0
  %3290 = vmatpush1.msra.mxu0 0.0
  %3291 = vmatprep.subr.mxu0 0.0
  %3292 = vmatpush1.msra.mxu0 0.0
  %3293 = vmatprep.subr.mxu0 0.0
  %3294 = vmatpush1.msra.mxu0 0.0
  %3295 = vmatprep.subr.mxu0 0.0
  %3296 = vmatpush1.msra.mxu0 0.0
  %3297 = vmatprep.subr.mxu0 0.0
  %3298 = vmatpush1.msra.mxu0 0.0
  %3299 = vmatprep.subr.mxu0 0.0
  %3300 = vmatpush1.msra.mxu0 0.0
  %3301 = vmatprep.subr.mxu0 0.0
  %3302 = vmatpush1.msra.mxu0 0.0
  %3303 = vmatprep.subr.mxu0 0.0
  %3304 = vmatpush1.msra.mxu0 0.0
  %3305 = vmatprep.subr.mxu0 0.0
  %3306 = vmatpush1.msra.mxu0 0.0
  %3307 = vmatprep.subr.mxu0 0.0
  %3308 = vmatpush1.msra.mxu0 0.0
  %3309 = vmatprep.subr.mxu0 0.0
  %3310 = vmatpush1.msra.mxu0 0.0
  %3311 = vmatprep.subr.mxu0 0.0
  %3312 = vmatpush1.msra.mxu0 0.0
  %3313 = vmatprep.subr.mxu0 0.0
  %3314 = vmatpush1.msra.mxu0 0.0
  %3315 = vmatprep.subr.mxu0 0.0
  %3316 = vmatpush1.msra.mxu0 0.0
  %3317 = vmatprep.subr.mxu0 0.0
  %3318 = vmatpush1.msra.mxu0 0.0
  %3319 = vmatprep.subr.mxu0 0.0
  %3320 = vmatpush1.msra.mxu0 0.0
  %3321 = vmatprep.subr.mxu0 0.0
  %3322 = vmatpush1.msra.mxu0 0.0
  %3323 = vmatprep.subr.mxu0 0.0
  %3324 = vmatpush1.msra.mxu0 0.0
  %3325 = vmatprep.subr.mxu0 0.0
  %3326 = vmatpush1.msra.mxu0 0.0
  %3327 = vmatprep.subr.mxu0 0.0
  %3328 = vmatpush1.msra.mxu0 0.0
  %3329 = vmatprep.subr.mxu0 0.0
  %3330 = vmatpush1.msra.mxu0 0.0
  %3331 = vmatprep.subr.mxu0 0.0
  %3332 = vmatpush1.msra.mxu0 0.0
  %3333 = vmatprep.subr.mxu0 0.0
  %3334 = vmatpush1.msra.mxu0 0.0
  %3335 = vmatprep.subr.mxu0 0.0
  %3336 = vmatpush1.msra.mxu0 0.0
  %3337 = vmatprep.subr.mxu0 0.0
  %3338 = vmatpush1.msra.mxu0 0.0
  %3339 = vmatprep.subr.mxu0 0.0
  %3340 = vmatpush1.msra.mxu0 0.0
  %3341 = vmatprep.subr.mxu0 0.0
  %3342 = vmatpush1.msra.mxu0 0.0
  %3343 = vmatprep.mubr.f32.mxu0 0.0
  %3344 = vmatmul.mubr.f32.gmra.mrb[0].mxu0 %v3274
  %v3345 = vpop.f32.mrb[0].mxu0
  %v3346 = vadd.f32 0.0, %v3345
  %v3347 = vpop.f32.mrb[0].mxu0
  %3348 = vmatprep.mubr.f32.mxu0 0.0
  %3349 = vmatmul.mubr.f32.gmra.mrb[0].mxu0 %v3277
  %v3350 = vpop.f32.mrb[0].mxu0
  %v3351 = vadd.f32 0.0, %v3350
  %v3352 = vpop.f32.mrb[0].mxu0
  %3353 = vdwg.mxu0
  %v3354 = vld [vmem:[%s3 + $0x260] sm:$0xff]
  %v3355 = vld [vmem:[%s3 + $0x268] sm:$0xff]
  %v3357 = vsel %vm523, %v3354, 0
  %v3360 = vsel %vm523, %v3355, 0
  %3362 = vmatprep.subr.mxu0 0.0
  %3363 = vmatpush1.msra.mxu0 %v3267
  %3364 = vmatprep.subr.mxu0 0.0
  %3365 = vmatpush1.msra.mxu0 %v3268
  %3366 = vmatprep.subr.mxu0 0.0
  %3367 = vmatpush1.msra.mxu0 %v3269
  %3368 = vmatprep.subr.mxu0 0.0
  %3369 = vmatpush1.msra.mxu0 %v3270
  %3370 = vmatprep.subr.mxu0 0.0
  %3371 = vmatpush1.msra.mxu0 0.0
  %3372 = vmatprep.subr.mxu0 0.0
  %3373 = vmatpush1.msra.mxu0 0.0
  %3374 = vmatprep.subr.mxu0 0.0
  %3375 = vmatpush1.msra.mxu0 0.0
  %3376 = vmatprep.subr.mxu0 0.0
  %3377 = vmatpush1.msra.mxu0 0.0
  %3378 = vmatprep.subr.mxu0 0.0
  %3379 = vmatpush1.msra.mxu0 0.0
  %3380 = vmatprep.subr.mxu0 0.0
  %3381 = vmatpush1.msra.mxu0 0.0
  %3382 = vmatprep.subr.mxu0 0.0
  %3383 = vmatpush1.msra.mxu0 0.0
  %3384 = vmatprep.subr.mxu0 0.0
  %3385 = vmatpush1.msra.mxu0 0.0
  %3386 = vmatprep.subr.mxu0 0.0
  %3387 = vmatpush1.msra.mxu0 0.0
  %3388 = vmatprep.subr.mxu0 0.0
  %3389 = vmatpush1.msra.mxu0 0.0
  %3390 = vmatprep.subr.mxu0 0.0
  %3391 = vmatpush1.msra.mxu0 0.0
  %3392 = vmatprep.subr.mxu0 0.0
  %3393 = vmatpush1.msra.mxu0 0.0
  %3394 = vmatprep.subr.mxu0 0.0
  %3395 = vmatpush1.msra.mxu0 0.0
  %3396 = vmatprep.subr.mxu0 0.0
  %3397 = vmatpush1.msra.mxu0 0.0
  %3398 = vmatprep.subr.mxu0 0.0
  %3399 = vmatpush1.msra.mxu0 0.0
  %3400 = vmatprep.subr.mxu0 0.0
  %3401 = vmatpush1.msra.mxu0 0.0
  %3402 = vmatprep.subr.mxu0 0.0
  %3403 = vmatpush1.msra.mxu0 0.0
  %3404 = vmatprep.subr.mxu0 0.0
  %3405 = vmatpush1.msra.mxu0 0.0
  %3406 = vmatprep.subr.mxu0 0.0
  %3407 = vmatpush1.msra.mxu0 0.0
  %3408 = vmatprep.subr.mxu0 0.0
  %3409 = vmatpush1.msra.mxu0 0.0
  %3410 = vmatprep.subr.mxu0 0.0
  %3411 = vmatpush1.msra.mxu0 0.0
  %3412 = vmatprep.subr.mxu0 0.0
  %3413 = vmatpush1.msra.mxu0 0.0
  %3414 = vmatprep.subr.mxu0 0.0
  %3415 = vmatpush1.msra.mxu0 0.0
  %3416 = vmatprep.subr.mxu0 0.0
  %3417 = vmatpush1.msra.mxu0 0.0
  %3418 = vmatprep.subr.mxu0 0.0
  %3419 = vmatpush1.msra.mxu0 0.0
  %3420 = vmatprep.subr.mxu0 0.0
  %3421 = vmatpush1.msra.mxu0 0.0
  %3422 = vmatprep.subr.mxu0 0.0
  %3423 = vmatpush1.msra.mxu0 0.0
  %3424 = vmatprep.subr.mxu0 0.0
  %3425 = vmatpush1.msra.mxu0 0.0
  %3426 = vmatprep.mubr.f32.mxu0 0.0
  %3427 = vmatmul.mubr.f32.gmra.mrb[0].mxu0 %v3357
  %v3428 = vpop.f32.mrb[0].mxu0
  %v3429 = vadd.f32 0.0, %v3428
  %v3430 = vpop.f32.mrb[0].mxu0
  %3431 = vmatprep.mubr.f32.mxu0 0.0
  %3432 = vmatmul.mubr.f32.gmra.mrb[0].mxu0 %v3360
  %v3433 = vpop.f32.mrb[0].mxu0
  %v3434 = vadd.f32 0.0, %v3433
  %v3435 = vpop.f32.mrb[0].mxu0
  %3436 = vdwg.mxu0
  %v3437 = vld [vmem:[%s4 + $0xa0] sm:$0xff]
  %v3438 = vld [vmem:[%s4 + $0xa8] sm:$0xff]
  %v3439 = vld [vmem:[%s4 + $0xb0] sm:$0xff]
  %v3440 = vld [vmem:[%s4 + $0xb8] sm:$0xff]
  %v3441 = vld [vmem:[%s4 + $0xc0] sm:$0xff]
  %v3442 = vld [vmem:[%s4 + $0xc8] sm:$0xff]
  %v3443 = vld [vmem:[%s4 + $0xd0] sm:$0xff]
  %v3444 = vld [vmem:[%s4 + $0xd8] sm:$0xff]
  %v3446 = vsel %vm523, %v3346, 0
  %v3449 = vsel %vm523, %v3351, 0
  %3451 = vmatprep.subr.mxu0 0.0
  %3452 = vmatpush1.msra.mxu0 %v3441
  %3453 = vmatprep.subr.mxu0 0.0
  %3454 = vmatpush1.msra.mxu0 %v3442
  %3455 = vmatprep.subr.mxu0 0.0
  %3456 = vmatpush1.msra.mxu0 %v3443
  %3457 = vmatprep.subr.mxu0 0.0
  %3458 = vmatpush1.msra.mxu0 %v3444
  %3459 = vmatprep.subr.mxu0 0.0
  %3460 = vmatpush1.msra.mxu0 0.0
  %3461 = vmatprep.subr.mxu0 0.0
  %3462 = vmatpush1.msra.mxu0 0.0
  %3463 = vmatprep.subr.mxu0 0.0
  %3464 = vmatpush1.msra.mxu0 0.0
  %3465 = vmatprep.subr.mxu0 0.0
  %3466 = vmatpush1.msra.mxu0 0.0
  %3467 = vmatprep.subr.mxu0 0.0
  %3468 = vmatpush1.msra.mxu0 0.0
  %3469 = vmatprep.subr.mxu0 0.0
  %3470 = vmatpush1.msra.mxu0 0.0
  %3471 = vmatprep.subr.mxu0 0.0
  %3472 = vmatpush1.msra.mxu0 0.0
  %3473 = vmatprep.subr.mxu0 0.0
  %3474 = vmatpush1.msra.mxu0 0.0
  %3475 = vmatprep.subr.mxu0 0.0
  %3476 = vmatpush1.msra.mxu0 0.0
  %3477 = vmatprep.subr.mxu0 0.0
  %3478 = vmatpush1.msra.mxu0 0.0
  %3479 = vmatprep.subr.mxu0 0.0
  %3480 = vmatpush1.msra.mxu0 0.0
  %3481 = vmatprep.subr.mxu0 0.0
  %3482 = vmatpush1.msra.mxu0 0.0
  %3483 = vmatprep.subr.mxu0 0.0
  %3484 = vmatpush1.msra.mxu0 0.0
  %3485 = vmatprep.subr.mxu0 0.0
  %3486 = vmatpush1.msra.mxu0 0.0
  %3487 = vmatprep.subr.mxu0 0.0
  %3488 = vmatpush1.msra.mxu0 0.0
  %3489 = vmatprep.subr.mxu0 0.0
  %3490 = vmatpush1.msra.mxu0 0.0
  %3491 = vmatprep.subr.mxu0 0.0
  %3492 = vmatpush1.msra.mxu0 0.0
  %3493 = vmatprep.subr.mxu0 0.0
  %3494 = vmatpush1.msra.mxu0 0.0
  %3495 = vmatprep.subr.mxu0 0.0
  %3496 = vmatpush1.msra.mxu0 0.0
  %3497 = vmatprep.subr.mxu0 0.0
  %3498 = vmatpush1.msra.mxu0 0.0
  %3499 = vmatprep.subr.mxu0 0.0
  %3500 = vmatpush1.msra.mxu0 0.0
  %3501 = vmatprep.subr.mxu0 0.0
  %3502 = vmatpush1.msra.mxu0 0.0
  %3503 = vmatprep.subr.mxu0 0.0
  %3504 = vmatpush1.msra.mxu0 0.0
  %3505 = vmatprep.subr.mxu0 0.0
  %3506 = vmatpush1.msra.mxu0 0.0
  %3507 = vmatprep.subr.mxu0 0.0
  %3508 = vmatpush1.msra.mxu0 0.0
  %3509 = vmatprep.subr.mxu0 0.0
  %3510 = vmatpush1.msra.mxu0 0.0
  %3511 = vmatprep.subr.mxu0 0.0
  %3512 = vmatpush1.msra.mxu0 0.0
  %3513 = vmatprep.subr.mxu0 0.0
  %3514 = vmatpush1.msra.mxu0 0.0
  %3515 = vmatprep.mubr.f32.mxu0 0.0
  %3516 = vmatmul.mubr.f32.gmra.mrb[0].mxu0 %v3446
  %v3517 = vpop.f32.mrb[0].mxu0
  %v3518 = vadd.f32 0.0, %v3517
  %v3519 = vpop.f32.mrb[0].mxu0
  %3520 = vmatprep.mubr.f32.mxu0 0.0
  %3521 = vmatmul.mubr.f32.gmra.mrb[0].mxu0 %v3449
  %v3522 = vpop.f32.mrb[0].mxu0
  %v3523 = vadd.f32 0.0, %v3522
  %v3524 = vpop.f32.mrb[0].mxu0
  %3525 = vdwg.mxu0
  %v3527 = vsel %vm523, %v3429, 0
  %v3530 = vsel %vm523, %v3434, 0
  %3532 = vmatprep.subr.mxu0 0.0
  %3533 = vmatpush1.msra.mxu0 %v3437
  %3534 = vmatprep.subr.mxu0 0.0
  %3535 = vmatpush1.msra.mxu0 %v3438
  %3536 = vmatprep.subr.mxu0 0.0
  %3537 = vmatpush1.msra.mxu0 %v3439
  %3538 = vmatprep.subr.mxu0 0.0
  %3539 = vmatpush1.msra.mxu0 %v3440
  %3540 = vmatprep.subr.mxu0 0.0
  %3541 = vmatpush1.msra.mxu0 0.0
  %3542 = vmatprep.subr.mxu0 0.0
  %3543 = vmatpush1.msra.mxu0 0.0
  %3544 = vmatprep.subr.mxu0 0.0
  %3545 = vmatpush1.msra.mxu0 0.0
  %3546 = vmatprep.subr.mxu0 0.0
  %3547 = vmatpush1.msra.mxu0 0.0
  %3548 = vmatprep.subr.mxu0 0.0
  %3549 = vmatpush1.msra.mxu0 0.0
  %3550 = vmatprep.subr.mxu0 0.0
  %3551 = vmatpush1.msra.mxu0 0.0
  %3552 = vmatprep.subr.mxu0 0.0
  %3553 = vmatpush1.msra.mxu0 0.0
  %3554 = vmatprep.subr.mxu0 0.0
  %3555 = vmatpush1.msra.mxu0 0.0
  %3556 = vmatprep.subr.mxu0 0.0
  %3557 = vmatpush1.msra.mxu0 0.0
  %3558 = vmatprep.subr.mxu0 0.0
  %3559 = vmatpush1.msra.mxu0 0.0
  %3560 = vmatprep.subr.mxu0 0.0
  %3561 = vmatpush1.msra.mxu0 0.0
  %3562 = vmatprep.subr.mxu0 0.0
  %3563 = vmatpush1.msra.mxu0 0.0
  %3564 = vmatprep.subr.mxu0 0.0
  %3565 = vmatpush1.msra.mxu0 0.0
  %3566 = vmatprep.subr.mxu0 0.0
  %3567 = vmatpush1.msra.mxu0 0.0
  %3568 = vmatprep.subr.mxu0 0.0
  %3569 = vmatpush1.msra.mxu0 0.0
  %3570 = vmatprep.subr.mxu0 0.0
  %3571 = vmatpush1.msra.mxu0 0.0
  %3572 = vmatprep.subr.mxu0 0.0
  %3573 = vmatpush1.msra.mxu0 0.0
  %3574 = vmatprep.subr.mxu0 0.0
  %3575 = vmatpush1.msra.mxu0 0.0
  %3576 = vmatprep.subr.mxu0 0.0
  %3577 = vmatpush1.msra.mxu0 0.0
  %3578 = vmatprep.subr.mxu0 0.0
  %3579 = vmatpush1.msra.mxu0 0.0
  %3580 = vmatprep.subr.mxu0 0.0
  %3581 = vmatpush1.msra.mxu0 0.0
  %3582 = vmatprep.subr.mxu0 0.0
  %3583 = vmatpush1.msra.mxu0 0.0
  %3584 = vmatprep.subr.mxu0 0.0
  %3585 = vmatpush1.msra.mxu0 0.0
  %3586 = vmatprep.subr.mxu0 0.0
  %3587 = vmatpush1.msra.mxu0 0.0
  %3588 = vmatprep.subr.mxu0 0.0
  %3589 = vmatpush1.msra.mxu0 0.0
  %3590 = vmatprep.subr.mxu0 0.0
  %3591 = vmatpush1.msra.mxu0 0.0
  %3592 = vmatprep.subr.mxu0 0.0
  %3593 = vmatpush1.msra.mxu0 0.0
  %3594 = vmatprep.subr.mxu0 0.0
  %3595 = vmatpush1.msra.mxu0 0.0
  %3596 = vmatprep.mubr.f32.mxu0 0.0
  %3597 = vmatmul.mubr.f32.gmra.mrb[0].mxu0 %v3527
  %v3598 = vpop.f32.mrb[0].mxu0
  %v3599 = vadd.f32 %v3518, %v3598
  %v3600 = vpop.f32.mrb[0].mxu0
  %3601 = vmatprep.mubr.f32.mxu0 0.0
  %3602 = vmatmul.mubr.f32.gmra.mrb[0].mxu0 %v3530
  %v3603 = vpop.f32.mrb[0].mxu0
  %v3604 = vadd.f32 %v3523, %v3603
  %v3605 = vpop.f32.mrb[0].mxu0
  %3606 = vdwg.mxu0
  %v3607 = vld [vmem:[%s4 + $0xe0] sm:$0x1]
  %v3608 = vlaneseq
  %v3609 = vshrl.u32 %v3608, 7
  %v3610 = vsub.s32 0, %v3609
  %v3611 = vrot.slane %v3607, %v3610
  %v3612 = vadd.f32 %v3599, %v3611
  %v3613 = vadd.f32 %v3604, %v3611
  %v3614 = vld [vmem:[%s4 + $0xe8] sm:$0x1]
  %v3615 = vtanh.pop %v3612
  %v3616 = vtanh.pop %v3613
  %v3617 = vsub.f32 %v3615, %v3612
  %v3618 = vsub.f32 %v3616, %v3613
  %v3619 = vlaneseq
  %v3620 = vshrl.u32 %v3619, 7
  %v3621 = vsub.s32 0, %v3620
  %v3622 = vrot.slane %v3614, %v3621
  %v3623 = vmul.f32 %v3622, %v3617
  %v3624 = vmul.f32 %v3622, %v3618
  %v3625 = vadd.f32 %v3612, %v3623
  %v3626 = vadd.f32 %v3613, %v3624
  %3627 = vst [vmem:[%s5] sm:$0xff] %v3625
  %3628 = vst [vmem:[%s5 + $0x8] sm:$0xff] %v3626
  // Predicated region
  $region22: #{forward.1} parent=0 // pred_check
    _
  $region23: #{forward.1} parent=0 // pred_check_branch
    %3630 = sbr.rel (0) target = $region25
  $region24: #{forward.1} parent=0 // pred_region
    _
  $region25: #{forward.1} parent=0 // pred_fallthru
    _
  // Predicated region
  $region26: #{forward.1} parent=0 // pred_check
    _
  $region27: #{forward.1} parent=0 // pred_check_branch
    %3632 = sbr.rel (0) target = $region29
  $region28: #{forward.1} parent=0 // pred_region
    _
  $region29: #{forward.1} parent=0 // pred_fallthru
    _

</llo_original>
